<compile_context>
chip_gen: v5e
topology: v5e:2x2
jax: 0.10.0
libtpu: 0.0.40
codegen_flags: <defaults>
</compile_context>

<pallas_src>
import functools
import math

import jax
import jax.numpy as jnp
from jax import lax
from jax.experimental import pallas as pl
from jax.experimental.pallas import tpu as pltpu

NEG_INF = -100000.0


def _round_up(x, m):
    return ((x + m - 1) // m) * m


def _mha_kernel(q_ref, k_ref, v_ref, m_ref,
                wq_ref, wk_ref, wv_ref, wo_ref,
                o_ref,
                qproj_ref, kproj_ref, vproj_ref, ctx_ref,
                *, num_heads, kd_pad, vd_pad):
    """One (batch, query-tile) grid step; heads statically unrolled."""
    qi = pl.program_id(1)

    # --- K/V projection hoist: only on the first query tile of each batch; the
    # result stays resident in VMEM scratch for all remaining query tiles.
    @pl.when(qi == 0)
    def _project_kv():
        kproj_ref[...] = jnp.dot(
            k_ref[0], wk_ref[...],
            preferred_element_type=jnp.float32).astype(jnp.bfloat16)
        vproj_ref[...] = jnp.dot(
            v_ref[0], wv_ref[...],
            preferred_element_type=jnp.float32).astype(jnp.bfloat16)

    # Q projection for this tile: one lane-dense MXU matmul for all heads.
    # 1/sqrt(key_dim) is already folded into Wq.
    qproj_ref[...] = jnp.dot(
        q_ref[0], wq_ref[...],
        preferred_element_type=jnp.float32).astype(jnp.bfloat16)

    # Additive mask bias, computed once per block, shared by all heads.
    # (1 - mask) * NEG_INF == 0 where keep, NEG_INF where masked.
    bias = (1.0 - m_ref[0].astype(jnp.float32)) * NEG_INF        # [tq, mkl] f32

    for h in range(num_heads):                                   # static unroll
        # All slices are at 128-aligned lane offsets (kd_pad/vd_pad % 128 == 0).
        q_h = qproj_ref[:, h * kd_pad:(h + 1) * kd_pad]          # [tq,  kd_pad]
        k_h = kproj_ref[:, h * kd_pad:(h + 1) * kd_pad]          # [mkl, kd_pad]
        v_h = vproj_ref[:, h * vd_pad:(h + 1) * vd_pad]          # [mkl, vd_pad]

        # q_h @ k_h^T without materializing a transpose.
        att = lax.dot_general(q_h, k_h, (((1,), (1,)), ((), ())),
                              preferred_element_type=jnp.float32)  # [tq, mkl]
        att = att + bias

        # Numerically stable softmax, normalization deferred past the PV matmul.
        att = att - jnp.max(att, axis=-1, keepdims=True)
        p = jnp.exp(att)
        inv_l = pl.reciprocal(jnp.sum(p, axis=-1, keepdims=True), approx=True)
        ctx_h = jnp.dot(p.astype(jnp.bfloat16), v_h,
                        preferred_element_type=jnp.float32) * inv_l  # [tq, vd_pad]
        ctx_ref[:, h * vd_pad:(h + 1) * vd_pad] = ctx_h.astype(jnp.bfloat16)

    # Single fused output projection from the lane-dense ctx slab.
    out = jnp.dot(ctx_ref[...], wo_ref[...],
                  preferred_element_type=jnp.float32)
    o_ref[0] = out.astype(o_ref.dtype)                            # one store


def _pick_q_tile(mql):
    # 128 query rows fill the MXU M dim on v5e and keep the f32 [tq, mkl]
    # score intermediates small; larger tiles gain little on v6e/v7x.
    if mql % 128 == 0:
        return 128
    # TODO(synk): pad ragged mql to a multiple of 128 instead of one big tile.
    return mql


def _pad_head_cols(w, num_heads, d, d_pad):
    """[rows, nh*d] head-major -> [rows, nh*d_pad], zero-padded per head."""
    if d == d_pad:
        return w
    rows = w.shape[0]
    w = w.reshape(rows, num_heads, d)
    w = jnp.pad(w, ((0, 0), (0, 0), (0, d_pad - d)))
    return w.reshape(rows, num_heads * d_pad)


def _pad_head_rows(w, num_heads, d, d_pad):
    """[nh*d, cols] head-major -> [nh*d_pad, cols], zero-padded per head."""
    if d == d_pad:
        return w
    cols = w.shape[1]
    w = w.reshape(num_heads, d, cols)
    w = jnp.pad(w, ((0, 0), (0, d_pad - d), (0, 0)))
    return w.reshape(num_heads * d_pad, cols)


def _vmem_limit_bytes(tq, mkl, model_dim, nhk, nhv, weight_bufs):
    """Scoped-VMEM request sized from the real per-step footprint (+ headroom)."""
    bf16, f32 = 2, 4
    blocks = 2 * (tq * model_dim * bf16        # q (double-buffered)
                  + 2 * mkl * model_dim * bf16  # k, v
                  + tq * mkl * 1                # int8 mask
                  + tq * model_dim * f32)       # f32 output
    weights = weight_bufs * bf16 * (2 * model_dim * nhk
                                    + model_dim * nhv + nhv * model_dim)
    scratch = bf16 * (tq * nhk + mkl * nhk + mkl * nhv + tq * nhv)
    interm = 2 * tq * mkl * f32 + tq * max(nhk, nhv) * f32 + tq * model_dim * f32
    est = blocks + weights + scratch + interm
    return int(min(max(2 * est, 32 << 20), 96 << 20))


def _build_mha_call(bs, mql, mkl, model_dim, tq, num_heads, kd_pad, vd_pad,
                    single_buffer_weights):
    nhk = num_heads * kd_pad
    nhv = num_heads * vd_pad

    def w_spec(shape):
        if single_buffer_weights:
            # Constant index map -> fetched once; a single buffer halves the
            # weights' VMEM footprint (matters most on v7x's 64 MiB VMEM).
            return pl.BlockSpec(shape, lambda b, qi: (0, 0),
                                pipeline_mode=pl.Buffered(1))
        return pl.BlockSpec(shape, lambda b, qi: (0, 0))

    kernel = functools.partial(_mha_kernel, num_heads=num_heads,
                               kd_pad=kd_pad, vd_pad=vd_pad)
    weight_bufs = 1 if single_buffer_weights else 2

    return pl.pallas_call(
        kernel,
        out_shape=jax.ShapeDtypeStruct((bs, mql, model_dim), jnp.float32),
        grid_spec=pltpu.PrefetchScalarGridSpec(
            num_scalar_prefetch=0,
            grid=(bs, mql // tq),
            in_specs=[
                pl.BlockSpec((1, tq, model_dim),  lambda b, qi: (b, qi, 0)),  # query
                pl.BlockSpec((1, mkl, model_dim), lambda b, qi: (b, 0, 0)),   # key
                pl.BlockSpec((1, mkl, model_dim), lambda b, qi: (b, 0, 0)),   # value
                pl.BlockSpec((1, tq, mkl),        lambda b, qi: (b, qi, 0)),  # mask int8
                w_spec((model_dim, nhk)),                                     # Wq (scaled)
                w_spec((model_dim, nhk)),                                     # Wk
                w_spec((model_dim, nhv)),                                     # Wv
                w_spec((nhv, model_dim)),                                     # Wo
            ],
            out_specs=pl.BlockSpec((1, tq, model_dim), lambda b, qi: (b, qi, 0)),
            scratch_shapes=[
                pltpu.VMEM((tq, nhk), jnp.bfloat16),    # Q projection slab
                pltpu.VMEM((mkl, nhk), jnp.bfloat16),   # hoisted K projection
                pltpu.VMEM((mkl, nhv), jnp.bfloat16),   # hoisted V projection
                pltpu.VMEM((tq, nhv), jnp.bfloat16),    # per-head ctx slab
            ]),
        compiler_params=pltpu.CompilerParams(
            # batch "parallel" (megacore / v7x 2-TC sharding); qi "arbitrary"
            # so the qi == 0 K/V-projection hoist is valid on every core.
            dimension_semantics=("parallel", "arbitrary"),
            vmem_limit_bytes=_vmem_limit_bytes(tq, mkl, model_dim, nhk, nhv,
                                               weight_bufs)),
    )


def multi_head_attention(query, key, value, mask, wq, wk, wv, wo,
                         *, num_heads, key_dim, value_dim):
    """Pallas multi-head attention.

    query : [bs, mql, model_dim]  f32
    key   : [bs, mkl, model_dim]  f32
    value : [bs, mkl, model_dim]  f32
    mask  : [bs, mql, mkl]        int (0 = masked)
    wq,wk : [model_dim, nh*kd]    packed head-major (out feature = h*kd + d)
    wv    : [model_dim, nh*vd]
    wo    : [nh*vd, model_dim]
    returns [bs, mql, model_dim] f32
    """
    bs, mql, model_dim = query.shape
    _, mkl, _ = key.shape

    # Lane-align each head to a multiple of 128 (zero padding -> math unchanged).
    kd_pad = _round_up(key_dim, 128)
    vd_pad = _round_up(value_dim, 128)

    # Fold attention scale into Wq; bf16 MXU operands; int8 mask stream.
    scale = 1.0 / math.sqrt(key_dim)
    wq_p = _pad_head_cols((wq * scale).astype(jnp.bfloat16), num_heads,
                          key_dim, kd_pad)
    wk_p = _pad_head_cols(wk.astype(jnp.bfloat16), num_heads, key_dim, kd_pad)
    wv_p = _pad_head_cols(wv.astype(jnp.bfloat16), num_heads, value_dim, vd_pad)
    wo_p = _pad_head_rows(wo.astype(jnp.bfloat16), num_heads, value_dim, vd_pad)

    q_b = query.astype(jnp.bfloat16)
    k_b = key.astype(jnp.bfloat16)
    v_b = value.astype(jnp.bfloat16)
    m_i8 = mask.astype(jnp.int8)

    tq = _pick_q_tile(mql)
    args = (q_b, k_b, v_b, m_i8, wq_p, wk_p, wv_p, wo_p)

    # TODO(synk): for very long sequences (esp. v7x 64 MiB VMEM) add a kv-tile
    # grid axis with an online-softmax (m, l, acc) accumulator instead of
    # loading the whole key length per step.
    try:
        return _build_mha_call(bs, mql, mkl, model_dim, tq, num_heads,
                               kd_pad, vd_pad, single_buffer_weights=True)(*args)
    except Exception:
        # pipeline_mode=pl.Buffered(1) support varies across JAX versions;
        # fall back to default double-buffered weights (correct, more VMEM).
        return _build_mha_call(bs, mql, mkl, model_dim, tq, num_heads,
                               kd_pad, vd_pad, single_buffer_weights=False)(*args)


def multi_head_attention_ref(query, key, value, mask, wq, wk, wv, wo,
                             *, num_heads, key_dim, value_dim):
    """Pure-JAX f32 reference mirroring the PyTorch module semantics."""
    bs, mql, model_dim = query.shape
    _, mkl, _ = key.shape
    q = query @ wq        # [bs, mql, nh*kd]
    k = key @ wk          # [bs, mkl, nh*kd]
    v = value @ wv        # [bs, mkl, nh*vd]
    q = q.reshape(bs, mql, num_heads, key_dim).transpose(2, 0, 1, 3)
    k = k.reshape(bs, mkl, num_heads, key_dim).transpose(2, 0, 1, 3)
    v = v.reshape(bs, mkl, num_heads, value_dim).transpose(2, 0, 1, 3)
    att = jnp.einsum("hbqd,hbkd->hbqk", q, k) / math.sqrt(key_dim)
    att = att + (1.0 - mask.astype(jnp.float32))[None] * NEG_INF
    p = jax.nn.softmax(att, axis=-1)
    o = jnp.einsum("hbqk,hbkd->hbqd", p, v)
    o = o.transpose(1, 2, 0, 3).reshape(bs, mql, num_heads * value_dim)
    return o @ wo


if __name__ == "__main__":
    # Small, deterministic example consistent with the module's forward.
    batch = 2
    max_query_len = 8
    max_key_len = 8
    model_dim = 32
    num_heads = 4
    key_dim = 8
    value_dim = 8

    rng = jax.random.PRNGKey(0)
    ks = jax.random.split(rng, 8)

    query = jax.random.normal(ks[0], (batch, max_query_len, model_dim), jnp.float32)
    key_ = jax.random.normal(ks[1], (batch, max_key_len, model_dim), jnp.float32)
    value = jax.random.normal(ks[2], (batch, max_key_len, model_dim), jnp.float32)
    mask = (jax.random.uniform(ks[3], (batch, max_query_len, max_key_len)) > 0.3
            ).astype(jnp.int32)

    # Deterministic synthetic weights (nn.Linear-style uniform init, no bias),
    # packed head-major: wq/wk/wv = [model_dim, nh*dim], wo = [nh*vd, model_dim].
    bound_in = 1.0 / math.sqrt(model_dim)
    bound_o = 1.0 / math.sqrt(value_dim * num_heads)
    wq = jax.random.uniform(ks[4], (model_dim, num_heads * key_dim),
                            jnp.float32, -bound_in, bound_in)
    wk = jax.random.uniform(ks[5], (model_dim, num_heads * key_dim),
                            jnp.float32, -bound_in, bound_in)
    wv = jax.random.uniform(ks[6], (model_dim, num_heads * value_dim),
                            jnp.float32, -bound_in, bound_in)
    wo = jax.random.uniform(ks[7], (num_heads * value_dim, model_dim),
                            jnp.float32, -bound_o, bound_o)

    out = multi_head_attention(query, key_, value, mask, wq, wk, wv, wo,
                               num_heads=num_heads, key_dim=key_dim,
                               value_dim=value_dim)
    out = jax.block_until_ready(out)

    ref = multi_head_attention_ref(query, key_, value, mask, wq, wk, wv, wo,
                                   num_heads=num_heads, key_dim=key_dim,
                                   value_dim=value_dim)
    assert out.shape == (batch, max_query_len, model_dim)
    # bf16 MXU operands + approx reciprocal => relaxed (but bug-catching) tolerance.
    assert jnp.allclose(out, ref, atol=3e-2, rtol=3e-2), (
        "mismatch vs reference, max abs diff = "
        f"{float(jnp.max(jnp.abs(out - ref)))}")

    print("KERNEL_OK")
</pallas_src>

<mosaic_0001>
module attributes {stable_mosaic.version = 11 : i64} {
  func.func @_mha_kernel(%arg0: i32, %arg1: i32, %arg2: memref<1x8x32xbf16, #tpu.memory_space<vmem>>, %arg3: memref<1x8x32xbf16, #tpu.memory_space<vmem>>, %arg4: memref<1x8x32xbf16, #tpu.memory_space<vmem>>, %arg5: memref<1x8x8xi8, #tpu.memory_space<vmem>>, %arg6: memref<32x512xbf16, #tpu.memory_space<vmem>>, %arg7: memref<32x512xbf16, #tpu.memory_space<vmem>>, %arg8: memref<32x512xbf16, #tpu.memory_space<vmem>>, %arg9: memref<512x32xbf16, #tpu.memory_space<vmem>>, %arg10: memref<1x8x32xf32, #tpu.memory_space<vmem>>, %arg11: memref<8x512xbf16, #tpu.memory_space<vmem>>, %arg12: memref<8x512xbf16, #tpu.memory_space<vmem>>, %arg13: memref<8x512xbf16, #tpu.memory_space<vmem>>, %arg14: memref<8x512xbf16, #tpu.memory_space<vmem>>) attributes {dimension_semantics = [#tpu.dimension_semantics<parallel>, #tpu.dimension_semantics<arbitrary>], iteration_bounds = array<i64: 2, 1>, scalar_prefetch = 0 : i64, scratch_operands = 4 : i64, tpu.core_type = #tpu.core_type<tc>, window_params = [{transform_indices = @transform_0, window_bounds = array<i64: 1, 8, 32>}, {transform_indices = @transform_1, window_bounds = array<i64: 1, 8, 32>}, {transform_indices = @transform_2, window_bounds = array<i64: 1, 8, 32>}, {transform_indices = @transform_3, window_bounds = array<i64: 1, 8, 8>}, {pipeline_mode = #tpu.pipeline_mode<synchronous>, transform_indices = @transform_4, window_bounds = array<i64: 32, 512>}, {pipeline_mode = #tpu.pipeline_mode<synchronous>, transform_indices = @transform_5, window_bounds = array<i64: 32, 512>}, {pipeline_mode = #tpu.pipeline_mode<synchronous>, transform_indices = @transform_6, window_bounds = array<i64: 32, 512>}, {pipeline_mode = #tpu.pipeline_mode<synchronous>, transform_indices = @transform_7, window_bounds = array<i64: 512, 32>}, {transform_indices = @transform_8, window_bounds = array<i64: 1, 8, 32>}]} {
    %c0_i32 = arith.constant 0 : i32
    %0 = arith.cmpi eq, %arg1, %c0_i32 : i32
    %1 = arith.extui %0 : i1 to i32
    %c0_i32_0 = arith.constant 0 : i32
    %2 = arith.cmpi ne, %1, %c0_i32_0 : i32
    scf.if %2 {
      %c0_65 = arith.constant 0 : index
      %c0_66 = arith.constant 0 : index
      %c0_67 = arith.constant 0 : index
      %98 = vector.load %arg3[%c0_65, %c0_66, %c0_67] : memref<1x8x32xbf16, #tpu.memory_space<vmem>>, vector<1x8x32xbf16>
      %99 = vector.shape_cast %98 : vector<1x8x32xbf16> to vector<8x32xbf16>
      %c0_68 = arith.constant 0 : index
      %c0_69 = arith.constant 0 : index
      %100 = vector.load %arg7[%c0_68, %c0_69] : memref<32x512xbf16, #tpu.memory_space<vmem>>, vector<32x512xbf16>
      %cst_70 = arith.constant dense<0.000000e+00> : vector<8x512xf32>
      %101 = tpu.matmul %99, %100, %cst_70 {dimension_numbers = #tpu.dot_dimension_numbers<[1], [0], [0], [1], [0, 0, 1, 1], [], []>} : vector<8x32xbf16>, vector<32x512xbf16>, vector<8x512xf32> -> vector<8x512xf32>
      %102 = arith.truncf %101 : vector<8x512xf32> to vector<8x512xbf16>
      %c0_71 = arith.constant 0 : index
      %c0_72 = arith.constant 0 : index
      %103 = vector.load %arg12[%c0_71, %c0_72] : memref<8x512xbf16, #tpu.memory_space<vmem>>, vector<8x512xbf16>
      tpu.vector_store %arg12[%c0_71, %c0_72], %102 {strides = array<i32>} : memref<8x512xbf16, #tpu.memory_space<vmem>>, vector<8x512xbf16>,
      %c0_73 = arith.constant 0 : index
      %c0_74 = arith.constant 0 : index
      %c0_75 = arith.constant 0 : index
      %104 = vector.load %arg4[%c0_73, %c0_74, %c0_75] : memref<1x8x32xbf16, #tpu.memory_space<vmem>>, vector<1x8x32xbf16>
      %105 = vector.shape_cast %104 : vector<1x8x32xbf16> to vector<8x32xbf16>
      %c0_76 = arith.constant 0 : index
      %c0_77 = arith.constant 0 : index
      %106 = vector.load %arg8[%c0_76, %c0_77] : memref<32x512xbf16, #tpu.memory_space<vmem>>, vector<32x512xbf16>
      %cst_78 = arith.constant dense<0.000000e+00> : vector<8x512xf32>
      %107 = tpu.matmul %105, %106, %cst_78 {dimension_numbers = #tpu.dot_dimension_numbers<[1], [0], [0], [1], [0, 0, 1, 1], [], []>} : vector<8x32xbf16>, vector<32x512xbf16>, vector<8x512xf32> -> vector<8x512xf32>
      %108 = arith.truncf %107 : vector<8x512xf32> to vector<8x512xbf16>
      %c0_79 = arith.constant 0 : index
      %c0_80 = arith.constant 0 : index
      %109 = vector.load %arg13[%c0_79, %c0_80] : memref<8x512xbf16, #tpu.memory_space<vmem>>, vector<8x512xbf16>
      tpu.vector_store %arg13[%c0_79, %c0_80], %108 {strides = array<i32>} : memref<8x512xbf16, #tpu.memory_space<vmem>>, vector<8x512xbf16>,
    } else {
    }
    %c0 = arith.constant 0 : index
    %c0_1 = arith.constant 0 : index
    %c0_2 = arith.constant 0 : index
    %3 = vector.load %arg2[%c0, %c0_1, %c0_2] : memref<1x8x32xbf16, #tpu.memory_space<vmem>>, vector<1x8x32xbf16>
    %4 = vector.shape_cast %3 : vector<1x8x32xbf16> to vector<8x32xbf16>
    %c0_3 = arith.constant 0 : index
    %c0_4 = arith.constant 0 : index
    %5 = vector.load %arg6[%c0_3, %c0_4] : memref<32x512xbf16, #tpu.memory_space<vmem>>, vector<32x512xbf16>
    %cst = arith.constant dense<0.000000e+00> : vector<8x512xf32>
    %6 = tpu.matmul %4, %5, %cst {dimension_numbers = #tpu.dot_dimension_numbers<[1], [0], [0], [1], [0, 0, 1, 1], [], []>} : vector<8x32xbf16>, vector<32x512xbf16>, vector<8x512xf32> -> vector<8x512xf32>
    %7 = arith.truncf %6 : vector<8x512xf32> to vector<8x512xbf16>
    %c0_5 = arith.constant 0 : index
    %c0_6 = arith.constant 0 : index
    %8 = vector.load %arg11[%c0_5, %c0_6] : memref<8x512xbf16, #tpu.memory_space<vmem>>, vector<8x512xbf16>
    tpu.vector_store %arg11[%c0_5, %c0_6], %7 {strides = array<i32>} : memref<8x512xbf16, #tpu.memory_space<vmem>>, vector<8x512xbf16>,
    %c0_7 = arith.constant 0 : index
    %c0_8 = arith.constant 0 : index
    %c0_9 = arith.constant 0 : index
    %9 = vector.load %arg5[%c0_7, %c0_8, %c0_9] : memref<1x8x8xi8, #tpu.memory_space<vmem>>, vector<1x8x8xi8>
    %10 = vector.shape_cast %9 : vector<1x8x8xi8> to vector<8x8xi8>
    %11 = arith.sitofp %10 : vector<8x8xi8> to vector<8x8xf32>
    %cst_10 = arith.constant 1.000000e+00 : f32
    %12 = vector.broadcast %cst_10 : f32 to vector<8x8xf32>
    %13 = arith.subf %12, %11 : vector<8x8xf32>
    %cst_11 = arith.constant -1.000000e+05 : f32
    %14 = vector.broadcast %cst_11 : f32 to vector<8x8xf32>
    %15 = arith.mulf %13, %14 : vector<8x8xf32>
    %c0_12 = arith.constant 0 : index
    %c0_13 = arith.constant 0 : index
    %16 = vector.load %arg11[%c0_12, %c0_13] : memref<8x512xbf16, #tpu.memory_space<vmem>>, vector<8x128xbf16>
    %c0_14 = arith.constant 0 : index
    %c0_15 = arith.constant 0 : index
    %17 = vector.load %arg12[%c0_14, %c0_15] : memref<8x512xbf16, #tpu.memory_space<vmem>>, vector<8x128xbf16>
    %c0_16 = arith.constant 0 : index
    %c0_17 = arith.constant 0 : index
    %18 = vector.load %arg13[%c0_16, %c0_17] : memref<8x512xbf16, #tpu.memory_space<vmem>>, vector<8x128xbf16>
    %cst_18 = arith.constant dense<0.000000e+00> : vector<8x8xf32>
    %19 = tpu.matmul %16, %17, %cst_18 {dimension_numbers = #tpu.dot_dimension_numbers<[1], [1], [0], [0], [0, 0, 1, 0], [], []>} : vector<8x128xbf16>, vector<8x128xbf16>, vector<8x8xf32> -> vector<8x8xf32>
    %20 = arith.addf %19, %15 : vector<8x8xf32>
    %cst_19 = arith.constant dense<0xFF800000> : vector<8xf32>
    %21 = vector.multi_reduction <maximumf>, %20, %cst_19 [1] : vector<8x8xf32> to vector<8xf32>
    %22 = vector.shape_cast %21 : vector<8xf32> to vector<8x1xf32>
    %23 = vector.broadcast %22 : vector<8x1xf32> to vector<8x8xf32>
    %24 = arith.subf %20, %23 : vector<8x8xf32>
    %25 = math.exp %24 : vector<8x8xf32>
    %cst_20 = arith.constant dense<0.000000e+00> : vector<8xf32>
    %26 = vector.multi_reduction <add>, %25, %cst_20 [1] : vector<8x8xf32> to vector<8xf32>
    %27 = vector.shape_cast %26 : vector<8xf32> to vector<8x1xf32>
    %28 = tpu.reciprocal %27 {approx = true} : vector<8x1xf32> -> vector<8x1xf32>
    %29 = arith.truncf %25 : vector<8x8xf32> to vector<8x8xbf16>
    %cst_21 = arith.constant dense<0.000000e+00> : vector<8x128xf32>
    %30 = tpu.matmul %29, %18, %cst_21 {dimension_numbers = #tpu.dot_dimension_numbers<[1], [0], [0], [1], [0, 0, 1, 1], [], []>} : vector<8x8xbf16>, vector<8x128xbf16>, vector<8x128xf32> -> vector<8x128xf32>
    %31 = vector.broadcast %28 : vector<8x1xf32> to vector<8x128xf32>
    %32 = arith.mulf %30, %31 : vector<8x128xf32>
    %33 = arith.truncf %32 : vector<8x128xf32> to vector<8x128xbf16>
    %c0_22 = arith.constant 0 : index
    %c0_23 = arith.constant 0 : index
    %34 = vector.load %arg14[%c0_22, %c0_23] : memref<8x512xbf16, #tpu.memory_space<vmem>>, vector<8x128xbf16>
    tpu.vector_store %arg14[%c0_22, %c0_23], %33 {strides = array<i32>} : memref<8x512xbf16, #tpu.memory_space<vmem>>, vector<8x128xbf16>,
    %c0_24 = arith.constant 0 : index
    %c128 = arith.constant 128 : index
    %35 = vector.load %arg11[%c0_24, %c128] : memref<8x512xbf16, #tpu.memory_space<vmem>>, vector<8x128xbf16>
    %c0_25 = arith.constant 0 : index
    %c128_26 = arith.constant 128 : index
    %36 = vector.load %arg12[%c0_25, %c128_26] : memref<8x512xbf16, #tpu.memory_space<vmem>>, vector<8x128xbf16>
    %c0_27 = arith.constant 0 : index
    %c128_28 = arith.constant 128 : index
    %37 = vector.load %arg13[%c0_27, %c128_28] : memref<8x512xbf16, #tpu.memory_space<vmem>>, vector<8x128xbf16>
    %cst_29 = arith.constant dense<0.000000e+00> : vector<8x8xf32>
    %38 = tpu.matmul %35, %36, %cst_29 {dimension_numbers = #tpu.dot_dimension_numbers<[1], [1], [0], [0], [0, 0, 1, 0], [], []>} : vector<8x128xbf16>, vector<8x128xbf16>, vector<8x8xf32> -> vector<8x8xf32>
    %39 = arith.addf %38, %15 : vector<8x8xf32>
    %cst_30 = arith.constant dense<0xFF800000> : vector<8xf32>
    %40 = vector.multi_reduction <maximumf>, %39, %cst_30 [1] : vector<8x8xf32> to vector<8xf32>
    %41 = vector.shape_cast %40 : vector<8xf32> to vector<8x1xf32>
    %42 = vector.broadcast %41 : vector<8x1xf32> to vector<8x8xf32>
    %43 = arith.subf %39, %42 : vector<8x8xf32>
    %44 = math.exp %43 : vector<8x8xf32>
    %cst_31 = arith.constant dense<0.000000e+00> : vector<8xf32>
    %45 = vector.multi_reduction <add>, %44, %cst_31 [1] : vector<8x8xf32> to vector<8xf32>
    %46 = vector.shape_cast %45 : vector<8xf32> to vector<8x1xf32>
    %47 = tpu.reciprocal %46 {approx = true} : vector<8x1xf32> -> vector<8x1xf32>
    %48 = arith.truncf %44 : vector<8x8xf32> to vector<8x8xbf16>
    %cst_32 = arith.constant dense<0.000000e+00> : vector<8x128xf32>
    %49 = tpu.matmul %48, %37, %cst_32 {dimension_numbers = #tpu.dot_dimension_numbers<[1], [0], [0], [1], [0, 0, 1, 1], [], []>} : vector<8x8xbf16>, vector<8x128xbf16>, vector<8x128xf32> -> vector<8x128xf32>
    %50 = vector.broadcast %47 : vector<8x1xf32> to vector<8x128xf32>
    %51 = arith.mulf %49, %50 : vector<8x128xf32>
    %52 = arith.truncf %51 : vector<8x128xf32> to vector<8x128xbf16>
    %c0_33 = arith.constant 0 : index
    %c128_34 = arith.constant 128 : index
    %53 = vector.load %arg14[%c0_33, %c128_34] : memref<8x512xbf16, #tpu.memory_space<vmem>>, vector<8x128xbf16>
    tpu.vector_store %arg14[%c0_33, %c128_34], %52 {strides = array<i32>} : memref<8x512xbf16, #tpu.memory_space<vmem>>, vector<8x128xbf16>,
    %c0_35 = arith.constant 0 : index
    %c256 = arith.constant 256 : index
    %54 = vector.load %arg11[%c0_35, %c256] : memref<8x512xbf16, #tpu.memory_space<vmem>>, vector<8x128xbf16>
    %c0_36 = arith.constant 0 : index
    %c256_37 = arith.constant 256 : index
    %55 = vector.load %arg12[%c0_36, %c256_37] : memref<8x512xbf16, #tpu.memory_space<vmem>>, vector<8x128xbf16>
    %c0_38 = arith.constant 0 : index
    %c256_39 = arith.constant 256 : index
    %56 = vector.load %arg13[%c0_38, %c256_39] : memref<8x512xbf16, #tpu.memory_space<vmem>>, vector<8x128xbf16>
    %cst_40 = arith.constant dense<0.000000e+00> : vector<8x8xf32>
    %57 = tpu.matmul %54, %55, %cst_40 {dimension_numbers = #tpu.dot_dimension_numbers<[1], [1], [0], [0], [0, 0, 1, 0], [], []>} : vector<8x128xbf16>, vector<8x128xbf16>, vector<8x8xf32> -> vector<8x8xf32>
    %58 = arith.addf %57, %15 : vector<8x8xf32>
    %cst_41 = arith.constant dense<0xFF800000> : vector<8xf32>
    %59 = vector.multi_reduction <maximumf>, %58, %cst_41 [1] : vector<8x8xf32> to vector<8xf32>
    %60 = vector.shape_cast %59 : vector<8xf32> to vector<8x1xf32>
    %61 = vector.broadcast %60 : vector<8x1xf32> to vector<8x8xf32>
    %62 = arith.subf %58, %61 : vector<8x8xf32>
    %63 = math.exp %62 : vector<8x8xf32>
    %cst_42 = arith.constant dense<0.000000e+00> : vector<8xf32>
    %64 = vector.multi_reduction <add>, %63, %cst_42 [1] : vector<8x8xf32> to vector<8xf32>
    %65 = vector.shape_cast %64 : vector<8xf32> to vector<8x1xf32>
    %66 = tpu.reciprocal %65 {approx = true} : vector<8x1xf32> -> vector<8x1xf32>
    %67 = arith.truncf %63 : vector<8x8xf32> to vector<8x8xbf16>
    %cst_43 = arith.constant dense<0.000000e+00> : vector<8x128xf32>
    %68 = tpu.matmul %67, %56, %cst_43 {dimension_numbers = #tpu.dot_dimension_numbers<[1], [0], [0], [1], [0, 0, 1, 1], [], []>} : vector<8x8xbf16>, vector<8x128xbf16>, vector<8x128xf32> -> vector<8x128xf32>
    %69 = vector.broadcast %66 : vector<8x1xf32> to vector<8x128xf32>
    %70 = arith.mulf %68, %69 : vector<8x128xf32>
    %71 = arith.truncf %70 : vector<8x128xf32> to vector<8x128xbf16>
    %c0_44 = arith.constant 0 : index
    %c256_45 = arith.constant 256 : index
    %72 = vector.load %arg14[%c0_44, %c256_45] : memref<8x512xbf16, #tpu.memory_space<vmem>>, vector<8x128xbf16>
    tpu.vector_store %arg14[%c0_44, %c256_45], %71 {strides = array<i32>} : memref<8x512xbf16, #tpu.memory_space<vmem>>, vector<8x128xbf16>,
    %c0_46 = arith.constant 0 : index
    %c384 = arith.constant 384 : index
    %73 = vector.load %arg11[%c0_46, %c384] : memref<8x512xbf16, #tpu.memory_space<vmem>>, vector<8x128xbf16>
    %c0_47 = arith.constant 0 : index
    %c384_48 = arith.constant 384 : index
    %74 = vector.load %arg12[%c0_47, %c384_48] : memref<8x512xbf16, #tpu.memory_space<vmem>>, vector<8x128xbf16>
    %c0_49 = arith.constant 0 : index
    %c384_50 = arith.constant 384 : index
    %75 = vector.load %arg13[%c0_49, %c384_50] : memref<8x512xbf16, #tpu.memory_space<vmem>>, vector<8x128xbf16>
    %cst_51 = arith.constant dense<0.000000e+00> : vector<8x8xf32>
    %76 = tpu.matmul %73, %74, %cst_51 {dimension_numbers = #tpu.dot_dimension_numbers<[1], [1], [0], [0], [0, 0, 1, 0], [], []>} : vector<8x128xbf16>, vector<8x128xbf16>, vector<8x8xf32> -> vector<8x8xf32>
    %77 = arith.addf %76, %15 : vector<8x8xf32>
    %cst_52 = arith.constant dense<0xFF800000> : vector<8xf32>
    %78 = vector.multi_reduction <maximumf>, %77, %cst_52 [1] : vector<8x8xf32> to vector<8xf32>
    %79 = vector.shape_cast %78 : vector<8xf32> to vector<8x1xf32>
    %80 = vector.broadcast %79 : vector<8x1xf32> to vector<8x8xf32>
    %81 = arith.subf %77, %80 : vector<8x8xf32>
    %82 = math.exp %81 : vector<8x8xf32>
    %cst_53 = arith.constant dense<0.000000e+00> : vector<8xf32>
    %83 = vector.multi_reduction <add>, %82, %cst_53 [1] : vector<8x8xf32> to vector<8xf32>
    %84 = vector.shape_cast %83 : vector<8xf32> to vector<8x1xf32>
    %85 = tpu.reciprocal %84 {approx = true} : vector<8x1xf32> -> vector<8x1xf32>
    %86 = arith.truncf %82 : vector<8x8xf32> to vector<8x8xbf16>
    %cst_54 = arith.constant dense<0.000000e+00> : vector<8x128xf32>
    %87 = tpu.matmul %86, %75, %cst_54 {dimension_numbers = #tpu.dot_dimension_numbers<[1], [0], [0], [1], [0, 0, 1, 1], [], []>} : vector<8x8xbf16>, vector<8x128xbf16>, vector<8x128xf32> -> vector<8x128xf32>
    %88 = vector.broadcast %85 : vector<8x1xf32> to vector<8x128xf32>
    %89 = arith.mulf %87, %88 : vector<8x128xf32>
    %90 = arith.truncf %89 : vector<8x128xf32> to vector<8x128xbf16>
    %c0_55 = arith.constant 0 : index
    %c384_56 = arith.constant 384 : index
    %91 = vector.load %arg14[%c0_55, %c384_56] : memref<8x512xbf16, #tpu.memory_space<vmem>>, vector<8x128xbf16>
    tpu.vector_store %arg14[%c0_55, %c384_56], %90 {strides = array<i32>} : memref<8x512xbf16, #tpu.memory_space<vmem>>, vector<8x128xbf16>,
    %c0_57 = arith.constant 0 : index
    %c0_58 = arith.constant 0 : index
    %92 = vector.load %arg14[%c0_57, %c0_58] : memref<8x512xbf16, #tpu.memory_space<vmem>>, vector<8x512xbf16>
    %c0_59 = arith.constant 0 : index
    %c0_60 = arith.constant 0 : index
    %93 = vector.load %arg9[%c0_59, %c0_60] : memref<512x32xbf16, #tpu.memory_space<vmem>>, vector<512x32xbf16>
    %cst_61 = arith.constant dense<0.000000e+00> : vector<8x32xf32>
    %94 = tpu.matmul %92, %93, %cst_61 {dimension_numbers = #tpu.dot_dimension_numbers<[1], [0], [0], [1], [0, 0, 1, 1], [], []>} : vector<8x512xbf16>, vector<512x32xbf16>, vector<8x32xf32> -> vector<8x32xf32>
    %c0_62 = arith.constant 0 : index
    %c0_63 = arith.constant 0 : index
    %c0_64 = arith.constant 0 : index
    %95 = vector.load %arg10[%c0_62, %c0_63, %c0_64] : memref<1x8x32xf32, #tpu.memory_space<vmem>>, vector<1x8x32xf32>
    %96 = vector.shape_cast %95 : vector<1x8x32xf32> to vector<8x32xf32>
    %97 = vector.shape_cast %94 : vector<8x32xf32> to vector<1x8x32xf32>
    tpu.vector_store %arg10[%c0_62, %c0_63, %c0_64], %97 {strides = array<i32>} : memref<1x8x32xf32, #tpu.memory_space<vmem>>, vector<1x8x32xf32>,
    return
  }
  func.func @transform_0(%arg0: i32, %arg1: i32) -> (i32, i32, i32) {
    %c0_i32 = arith.constant 0 : i32
    %c0_i32_0 = arith.constant 0 : i32
    return %arg0, %arg1, %c0_i32 : i32, i32, i32
  }
  func.func @transform_1(%arg0: i32, %arg1: i32) -> (i32, i32, i32) {
    %c0_i32 = arith.constant 0 : i32
    %c0_i32_0 = arith.constant 0 : i32
    %c0_i32_1 = arith.constant 0 : i32
    return %arg0, %c0_i32, %c0_i32_0 : i32, i32, i32
  }
  func.func @transform_2(%arg0: i32, %arg1: i32) -> (i32, i32, i32) {
    %c0_i32 = arith.constant 0 : i32
    %c0_i32_0 = arith.constant 0 : i32
    %c0_i32_1 = arith.constant 0 : i32
    return %arg0, %c0_i32, %c0_i32_0 : i32, i32, i32
  }
  func.func @transform_3(%arg0: i32, %arg1: i32) -> (i32, i32, i32) {
    %c0_i32 = arith.constant 0 : i32
    %c0_i32_0 = arith.constant 0 : i32
    return %arg0, %arg1, %c0_i32 : i32, i32, i32
  }
  func.func @transform_4(%arg0: i32, %arg1: i32) -> (i32, i32) {
    %c0_i32 = arith.constant 0 : i32
    %c0_i32_0 = arith.constant 0 : i32
    %c0_i32_1 = arith.constant 0 : i32
    return %c0_i32, %c0_i32_0 : i32, i32
  }
  func.func @transform_5(%arg0: i32, %arg1: i32) -> (i32, i32) {
    %c0_i32 = arith.constant 0 : i32
    %c0_i32_0 = arith.constant 0 : i32
    %c0_i32_1 = arith.constant 0 : i32
    return %c0_i32, %c0_i32_0 : i32, i32
  }
  func.func @transform_6(%arg0: i32, %arg1: i32) -> (i32, i32) {
    %c0_i32 = arith.constant 0 : i32
    %c0_i32_0 = arith.constant 0 : i32
    %c0_i32_1 = arith.constant 0 : i32
    return %c0_i32, %c0_i32_0 : i32, i32
  }
  func.func @transform_7(%arg0: i32, %arg1: i32) -> (i32, i32) {
    %c0_i32 = arith.constant 0 : i32
    %c0_i32_0 = arith.constant 0 : i32
    %c0_i32_1 = arith.constant 0 : i32
    return %c0_i32, %c0_i32_0 : i32, i32
  }
  func.func @transform_8(%arg0: i32, %arg1: i32) -> (i32, i32, i32) {
    %c0_i32 = arith.constant 0 : i32
    %c0_i32_0 = arith.constant 0 : i32
    return %arg0, %arg1, %c0_i32 : i32, i32, i32
  }
}

module attributes {stable_mosaic.version = 11 : i64} {
  func.func @_mha_kernel(%arg0: i32, %arg1: i32, %arg2: memref<1x8x32xbf16, #tpu.memory_space<vmem>>, %arg3: memref<1x8x32xbf16, #tpu.memory_space<vmem>>, %arg4: memref<1x8x32xbf16, #tpu.memory_space<vmem>>, %arg5: memref<1x8x8xi8, #tpu.memory_space<vmem>>, %arg6: memref<32x512xbf16, #tpu.memory_space<vmem>>, %arg7: memref<32x512xbf16, #tpu.memory_space<vmem>>, %arg8: memref<32x512xbf16, #tpu.memory_space<vmem>>, %arg9: memref<512x32xbf16, #tpu.memory_space<vmem>>, %arg10: memref<1x8x32xf32, #tpu.memory_space<vmem>>, %arg11: memref<8x512xbf16, #tpu.memory_space<vmem>>, %arg12: memref<8x512xbf16, #tpu.memory_space<vmem>>, %arg13: memref<8x512xbf16, #tpu.memory_space<vmem>>, %arg14: memref<8x512xbf16, #tpu.memory_space<vmem>>) attributes {dimension_semantics = [#tpu.dimension_semantics<parallel>, #tpu.dimension_semantics<arbitrary>], iteration_bounds = array<i64: 2, 1>, scalar_prefetch = 0 : i64, scratch_operands = 4 : i64, tpu.core_type = #tpu.core_type<tc>, window_params = [{transform_indices = @transform_0, window_bounds = array<i64: 1, 8, 32>}, {transform_indices = @transform_1, window_bounds = array<i64: 1, 8, 32>}, {transform_indices = @transform_2, window_bounds = array<i64: 1, 8, 32>}, {transform_indices = @transform_3, window_bounds = array<i64: 1, 8, 8>}, {pipeline_mode = #tpu.pipeline_mode<synchronous>, transform_indices = @transform_4, window_bounds = array<i64: 32, 512>}, {pipeline_mode = #tpu.pipeline_mode<synchronous>, transform_indices = @transform_5, window_bounds = array<i64: 32, 512>}, {pipeline_mode = #tpu.pipeline_mode<synchronous>, transform_indices = @transform_6, window_bounds = array<i64: 32, 512>}, {pipeline_mode = #tpu.pipeline_mode<synchronous>, transform_indices = @transform_7, window_bounds = array<i64: 512, 32>}, {transform_indices = @transform_8, window_bounds = array<i64: 1, 8, 32>}]} {
    %c0_i32 = arith.constant 0 : i32
    %0 = arith.cmpi eq, %arg1, %c0_i32 : i32
    %1 = arith.extui %0 : i1 to i32
    %c0_i32_0 = arith.constant 0 : i32
    %2 = arith.cmpi ne, %1, %c0_i32_0 : i32
    scf.if %2 {
      %c0_65 = arith.constant 0 : index
      %c0_66 = arith.constant 0 : index
      %c0_67 = arith.constant 0 : index
      %98 = vector.load %arg3[%c0_65, %c0_66, %c0_67] : memref<1x8x32xbf16, #tpu.memory_space<vmem>>, vector<1x8x32xbf16>
      %99 = vector.shape_cast %98 : vector<1x8x32xbf16> to vector<8x32xbf16>
      %c0_68 = arith.constant 0 : index
      %c0_69 = arith.constant 0 : index
      %100 = vector.load %arg7[%c0_68, %c0_69] : memref<32x512xbf16, #tpu.memory_space<vmem>>, vector<32x512xbf16>
      %cst_70 = arith.constant dense<0.000000e+00> : vector<8x512xf32>
      %101 = tpu.matmul %99, %100, %cst_70 {dimension_numbers = #tpu.dot_dimension_numbers<[1], [0], [0], [1], [0, 0, 1, 1], [], []>} : vector<8x32xbf16>, vector<32x512xbf16>, vector<8x512xf32> -> vector<8x512xf32>
      %102 = arith.truncf %101 : vector<8x512xf32> to vector<8x512xbf16>
      %c0_71 = arith.constant 0 : index
      %c0_72 = arith.constant 0 : index
      %103 = vector.load %arg12[%c0_71, %c0_72] : memref<8x512xbf16, #tpu.memory_space<vmem>>, vector<8x512xbf16>
      tpu.vector_store %arg12[%c0_71, %c0_72], %102 {strides = array<i32>} : memref<8x512xbf16, #tpu.memory_space<vmem>>, vector<8x512xbf16>,
      %c0_73 = arith.constant 0 : index
      %c0_74 = arith.constant 0 : index
      %c0_75 = arith.constant 0 : index
      %104 = vector.load %arg4[%c0_73, %c0_74, %c0_75] : memref<1x8x32xbf16, #tpu.memory_space<vmem>>, vector<1x8x32xbf16>
      %105 = vector.shape_cast %104 : vector<1x8x32xbf16> to vector<8x32xbf16>
      %c0_76 = arith.constant 0 : index
      %c0_77 = arith.constant 0 : index
      %106 = vector.load %arg8[%c0_76, %c0_77] : memref<32x512xbf16, #tpu.memory_space<vmem>>, vector<32x512xbf16>
      %cst_78 = arith.constant dense<0.000000e+00> : vector<8x512xf32>
      %107 = tpu.matmul %105, %106, %cst_78 {dimension_numbers = #tpu.dot_dimension_numbers<[1], [0], [0], [1], [0, 0, 1, 1], [], []>} : vector<8x32xbf16>, vector<32x512xbf16>, vector<8x512xf32> -> vector<8x512xf32>
      %108 = arith.truncf %107 : vector<8x512xf32> to vector<8x512xbf16>
      %c0_79 = arith.constant 0 : index
      %c0_80 = arith.constant 0 : index
      %109 = vector.load %arg13[%c0_79, %c0_80] : memref<8x512xbf16, #tpu.memory_space<vmem>>, vector<8x512xbf16>
      tpu.vector_store %arg13[%c0_79, %c0_80], %108 {strides = array<i32>} : memref<8x512xbf16, #tpu.memory_space<vmem>>, vector<8x512xbf16>,
    } else {
    }
    %c0 = arith.constant 0 : index
    %c0_1 = arith.constant 0 : index
    %c0_2 = arith.constant 0 : index
    %3 = vector.load %arg2[%c0, %c0_1, %c0_2] : memref<1x8x32xbf16, #tpu.memory_space<vmem>>, vector<1x8x32xbf16>
    %4 = vector.shape_cast %3 : vector<1x8x32xbf16> to vector<8x32xbf16>
    %c0_3 = arith.constant 0 : index
    %c0_4 = arith.constant 0 : index
    %5 = vector.load %arg6[%c0_3, %c0_4] : memref<32x512xbf16, #tpu.memory_space<vmem>>, vector<32x512xbf16>
    %cst = arith.constant dense<0.000000e+00> : vector<8x512xf32>
    %6 = tpu.matmul %4, %5, %cst {dimension_numbers = #tpu.dot_dimension_numbers<[1], [0], [0], [1], [0, 0, 1, 1], [], []>} : vector<8x32xbf16>, vector<32x512xbf16>, vector<8x512xf32> -> vector<8x512xf32>
    %7 = arith.truncf %6 : vector<8x512xf32> to vector<8x512xbf16>
    %c0_5 = arith.constant 0 : index
    %c0_6 = arith.constant 0 : index
    %8 = vector.load %arg11[%c0_5, %c0_6] : memref<8x512xbf16, #tpu.memory_space<vmem>>, vector<8x512xbf16>
    tpu.vector_store %arg11[%c0_5, %c0_6], %7 {strides = array<i32>} : memref<8x512xbf16, #tpu.memory_space<vmem>>, vector<8x512xbf16>,
    %c0_7 = arith.constant 0 : index
    %c0_8 = arith.constant 0 : index
    %c0_9 = arith.constant 0 : index
    %9 = vector.load %arg5[%c0_7, %c0_8, %c0_9] : memref<1x8x8xi8, #tpu.memory_space<vmem>>, vector<1x8x8xi8>
    %10 = vector.shape_cast %9 : vector<1x8x8xi8> to vector<8x8xi8>
    %11 = arith.sitofp %10 : vector<8x8xi8> to vector<8x8xf32>
    %cst_10 = arith.constant 1.000000e+00 : f32
    %12 = vector.broadcast %cst_10 : f32 to vector<8x8xf32>
    %13 = arith.subf %12, %11 : vector<8x8xf32>
    %cst_11 = arith.constant -1.000000e+05 : f32
    %14 = vector.broadcast %cst_11 : f32 to vector<8x8xf32>
    %15 = arith.mulf %13, %14 : vector<8x8xf32>
    %c0_12 = arith.constant 0 : index
    %c0_13 = arith.constant 0 : index
    %16 = vector.load %arg11[%c0_12, %c0_13] : memref<8x512xbf16, #tpu.memory_space<vmem>>, vector<8x128xbf16>
    %c0_14 = arith.constant 0 : index
    %c0_15 = arith.constant 0 : index
    %17 = vector.load %arg12[%c0_14, %c0_15] : memref<8x512xbf16, #tpu.memory_space<vmem>>, vector<8x128xbf16>
    %c0_16 = arith.constant 0 : index
    %c0_17 = arith.constant 0 : index
    %18 = vector.load %arg13[%c0_16, %c0_17] : memref<8x512xbf16, #tpu.memory_space<vmem>>, vector<8x128xbf16>
    %cst_18 = arith.constant dense<0.000000e+00> : vector<8x8xf32>
    %19 = tpu.matmul %16, %17, %cst_18 {dimension_numbers = #tpu.dot_dimension_numbers<[1], [1], [0], [0], [0, 0, 1, 0], [], []>} : vector<8x128xbf16>, vector<8x128xbf16>, vector<8x8xf32> -> vector<8x8xf32>
    %20 = arith.addf %19, %15 : vector<8x8xf32>
    %cst_19 = arith.constant dense<0xFF800000> : vector<8xf32>
    %21 = vector.multi_reduction <maximumf>, %20, %cst_19 [1] : vector<8x8xf32> to vector<8xf32>
    %22 = vector.shape_cast %21 : vector<8xf32> to vector<8x1xf32>
    %23 = vector.broadcast %22 : vector<8x1xf32> to vector<8x8xf32>
    %24 = arith.subf %20, %23 : vector<8x8xf32>
    %25 = math.exp %24 : vector<8x8xf32>
    %cst_20 = arith.constant dense<0.000000e+00> : vector<8xf32>
    %26 = vector.multi_reduction <add>, %25, %cst_20 [1] : vector<8x8xf32> to vector<8xf32>
    %27 = vector.shape_cast %26 : vector<8xf32> to vector<8x1xf32>
    %28 = tpu.reciprocal %27 {approx = true} : vector<8x1xf32> -> vector<8x1xf32>
    %29 = arith.truncf %25 : vector<8x8xf32> to vector<8x8xbf16>
    %cst_21 = arith.constant dense<0.000000e+00> : vector<8x128xf32>
    %30 = tpu.matmul %29, %18, %cst_21 {dimension_numbers = #tpu.dot_dimension_numbers<[1], [0], [0], [1], [0, 0, 1, 1], [], []>} : vector<8x8xbf16>, vector<8x128xbf16>, vector<8x128xf32> -> vector<8x128xf32>
    %31 = vector.broadcast %28 : vector<8x1xf32> to vector<8x128xf32>
    %32 = arith.mulf %30, %31 : vector<8x128xf32>
    %33 = arith.truncf %32 : vector<8x128xf32> to vector<8x128xbf16>
    %c0_22 = arith.constant 0 : index
    %c0_23 = arith.constant 0 : index
    %34 = vector.load %arg14[%c0_22, %c0_23] : memref<8x512xbf16, #tpu.memory_space<vmem>>, vector<8x128xbf16>
    tpu.vector_store %arg14[%c0_22, %c0_23], %33 {strides = array<i32>} : memref<8x512xbf16, #tpu.memory_space<vmem>>, vector<8x128xbf16>,
    %c0_24 = arith.constant 0 : index
    %c128 = arith.constant 128 : index
    %35 = vector.load %arg11[%c0_24, %c128] : memref<8x512xbf16, #tpu.memory_space<vmem>>, vector<8x128xbf16>
    %c0_25 = arith.constant 0 : index
    %c128_26 = arith.constant 128 : index
    %36 = vector.load %arg12[%c0_25, %c128_26] : memref<8x512xbf16, #tpu.memory_space<vmem>>, vector<8x128xbf16>
    %c0_27 = arith.constant 0 : index
    %c128_28 = arith.constant 128 : index
    %37 = vector.load %arg13[%c0_27, %c128_28] : memref<8x512xbf16, #tpu.memory_space<vmem>>, vector<8x128xbf16>
    %cst_29 = arith.constant dense<0.000000e+00> : vector<8x8xf32>
    %38 = tpu.matmul %35, %36, %cst_29 {dimension_numbers = #tpu.dot_dimension_numbers<[1], [1], [0], [0], [0, 0, 1, 0], [], []>} : vector<8x128xbf16>, vector<8x128xbf16>, vector<8x8xf32> -> vector<8x8xf32>
    %39 = arith.addf %38, %15 : vector<8x8xf32>
    %cst_30 = arith.constant dense<0xFF800000> : vector<8xf32>
    %40 = vector.multi_reduction <maximumf>, %39, %cst_30 [1] : vector<8x8xf32> to vector<8xf32>
    %41 = vector.shape_cast %40 : vector<8xf32> to vector<8x1xf32>
    %42 = vector.broadcast %41 : vector<8x1xf32> to vector<8x8xf32>
    %43 = arith.subf %39, %42 : vector<8x8xf32>
    %44 = math.exp %43 : vector<8x8xf32>
    %cst_31 = arith.constant dense<0.000000e+00> : vector<8xf32>
    %45 = vector.multi_reduction <add>, %44, %cst_31 [1] : vector<8x8xf32> to vector<8xf32>
    %46 = vector.shape_cast %45 : vector<8xf32> to vector<8x1xf32>
    %47 = tpu.reciprocal %46 {approx = true} : vector<8x1xf32> -> vector<8x1xf32>
    %48 = arith.truncf %44 : vector<8x8xf32> to vector<8x8xbf16>
    %cst_32 = arith.constant dense<0.000000e+00> : vector<8x128xf32>
    %49 = tpu.matmul %48, %37, %cst_32 {dimension_numbers = #tpu.dot_dimension_numbers<[1], [0], [0], [1], [0, 0, 1, 1], [], []>} : vector<8x8xbf16>, vector<8x128xbf16>, vector<8x128xf32> -> vector<8x128xf32>
    %50 = vector.broadcast %47 : vector<8x1xf32> to vector<8x128xf32>
    %51 = arith.mulf %49, %50 : vector<8x128xf32>
    %52 = arith.truncf %51 : vector<8x128xf32> to vector<8x128xbf16>
    %c0_33 = arith.constant 0 : index
    %c128_34 = arith.constant 128 : index
    %53 = vector.load %arg14[%c0_33, %c128_34] : memref<8x512xbf16, #tpu.memory_space<vmem>>, vector<8x128xbf16>
    tpu.vector_store %arg14[%c0_33, %c128_34], %52 {strides = array<i32>} : memref<8x512xbf16, #tpu.memory_space<vmem>>, vector<8x128xbf16>,
    %c0_35 = arith.constant 0 : index
    %c256 = arith.constant 256 : index
    %54 = vector.load %arg11[%c0_35, %c256] : memref<8x512xbf16, #tpu.memory_space<vmem>>, vector<8x128xbf16>
    %c0_36 = arith.constant 0 : index
    %c256_37 = arith.constant 256 : index
    %55 = vector.load %arg12[%c0_36, %c256_37] : memref<8x512xbf16, #tpu.memory_space<vmem>>, vector<8x128xbf16>
    %c0_38 = arith.constant 0 : index
    %c256_39 = arith.constant 256 : index
    %56 = vector.load %arg13[%c0_38, %c256_39] : memref<8x512xbf16, #tpu.memory_space<vmem>>, vector<8x128xbf16>
    %cst_40 = arith.constant dense<0.000000e+00> : vector<8x8xf32>
    %57 = tpu.matmul %54, %55, %cst_40 {dimension_numbers = #tpu.dot_dimension_numbers<[1], [1], [0], [0], [0, 0, 1, 0], [], []>} : vector<8x128xbf16>, vector<8x128xbf16>, vector<8x8xf32> -> vector<8x8xf32>
    %58 = arith.addf %57, %15 : vector<8x8xf32>
    %cst_41 = arith.constant dense<0xFF800000> : vector<8xf32>
    %59 = vector.multi_reduction <maximumf>, %58, %cst_41 [1] : vector<8x8xf32> to vector<8xf32>
    %60 = vector.shape_cast %59 : vector<8xf32> to vector<8x1xf32>
    %61 = vector.broadcast %60 : vector<8x1xf32> to vector<8x8xf32>
    %62 = arith.subf %58, %61 : vector<8x8xf32>
    %63 = math.exp %62 : vector<8x8xf32>
    %cst_42 = arith.constant dense<0.000000e+00> : vector<8xf32>
    %64 = vector.multi_reduction <add>, %63, %cst_42 [1] : vector<8x8xf32> to vector<8xf32>
    %65 = vector.shape_cast %64 : vector<8xf32> to vector<8x1xf32>
    %66 = tpu.reciprocal %65 {approx = true} : vector<8x1xf32> -> vector<8x1xf32>
    %67 = arith.truncf %63 : vector<8x8xf32> to vector<8x8xbf16>
    %cst_43 = arith.constant dense<0.000000e+00> : vector<8x128xf32>
    %68 = tpu.matmul %67, %56, %cst_43 {dimension_numbers = #tpu.dot_dimension_numbers<[1], [0], [0], [1], [0, 0, 1, 1], [], []>} : vector<8x8xbf16>, vector<8x128xbf16>, vector<8x128xf32> -> vector<8x128xf32>
    %69 = vector.broadcast %66 : vector<8x1xf32> to vector<8x128xf32>
    %70 = arith.mulf %68, %69 : vector<8x128xf32>
    %71 = arith.truncf %70 : vector<8x128xf32> to vector<8x128xbf16>
    %c0_44 = arith.constant 0 : index
    %c256_45 = arith.constant 256 : index
    %72 = vector.load %arg14[%c0_44, %c256_45] : memref<8x512xbf16, #tpu.memory_space<vmem>>, vector<8x128xbf16>
    tpu.vector_store %arg14[%c0_44, %c256_45], %71 {strides = array<i32>} : memref<8x512xbf16, #tpu.memory_space<vmem>>, vector<8x128xbf16>,
    %c0_46 = arith.constant 0 : index
    %c384 = arith.constant 384 : index
    %73 = vector.load %arg11[%c0_46, %c384] : memref<8x512xbf16, #tpu.memory_space<vmem>>, vector<8x128xbf16>
    %c0_47 = arith.constant 0 : index
    %c384_48 = arith.constant 384 : index
    %74 = vector.load %arg12[%c0_47, %c384_48] : memref<8x512xbf16, #tpu.memory_space<vmem>>, vector<8x128xbf16>
    %c0_49 = arith.constant 0 : index
    %c384_50 = arith.constant 384 : index
    %75 = vector.load %arg13[%c0_49, %c384_50] : memref<8x512xbf16, #tpu.memory_space<vmem>>, vector<8x128xbf16>
    %cst_51 = arith.constant dense<0.000000e+00> : vector<8x8xf32>
    %76 = tpu.matmul %73, %74, %cst_51 {dimension_numbers = #tpu.dot_dimension_numbers<[1], [1], [0], [0], [0, 0, 1, 0], [], []>} : vector<8x128xbf16>, vector<8x128xbf16>, vector<8x8xf32> -> vector<8x8xf32>
    %77 = arith.addf %76, %15 : vector<8x8xf32>
    %cst_52 = arith.constant dense<0xFF800000> : vector<8xf32>
    %78 = vector.multi_reduction <maximumf>, %77, %cst_52 [1] : vector<8x8xf32> to vector<8xf32>
    %79 = vector.shape_cast %78 : vector<8xf32> to vector<8x1xf32>
    %80 = vector.broadcast %79 : vector<8x1xf32> to vector<8x8xf32>
    %81 = arith.subf %77, %80 : vector<8x8xf32>
    %82 = math.exp %81 : vector<8x8xf32>
    %cst_53 = arith.constant dense<0.000000e+00> : vector<8xf32>
    %83 = vector.multi_reduction <add>, %82, %cst_53 [1] : vector<8x8xf32> to vector<8xf32>
    %84 = vector.shape_cast %83 : vector<8xf32> to vector<8x1xf32>
    %85 = tpu.reciprocal %84 {approx = true} : vector<8x1xf32> -> vector<8x1xf32>
    %86 = arith.truncf %82 : vector<8x8xf32> to vector<8x8xbf16>
    %cst_54 = arith.constant dense<0.000000e+00> : vector<8x128xf32>
    %87 = tpu.matmul %86, %75, %cst_54 {dimension_numbers = #tpu.dot_dimension_numbers<[1], [0], [0], [1], [0, 0, 1, 1], [], []>} : vector<8x8xbf16>, vector<8x128xbf16>, vector<8x128xf32> -> vector<8x128xf32>
    %88 = vector.broadcast %85 : vector<8x1xf32> to vector<8x128xf32>
    %89 = arith.mulf %87, %88 : vector<8x128xf32>
    %90 = arith.truncf %89 : vector<8x128xf32> to vector<8x128xbf16>
    %c0_55 = arith.constant 0 : index
    %c384_56 = arith.constant 384 : index
    %91 = vector.load %arg14[%c0_55, %c384_56] : memref<8x512xbf16, #tpu.memory_space<vmem>>, vector<8x128xbf16>
    tpu.vector_store %arg14[%c0_55, %c384_56], %90 {strides = array<i32>} : memref<8x512xbf16, #tpu.memory_space<vmem>>, vector<8x128xbf16>,
    %c0_57 = arith.constant 0 : index
    %c0_58 = arith.constant 0 : index
    %92 = vector.load %arg14[%c0_57, %c0_58] : memref<8x512xbf16, #tpu.memory_space<vmem>>, vector<8x512xbf16>
    %c0_59 = arith.constant 0 : index
    %c0_60 = arith.constant 0 : index
    %93 = vector.load %arg9[%c0_59, %c0_60] : memref<512x32xbf16, #tpu.memory_space<vmem>>, vector<512x32xbf16>
    %cst_61 = arith.constant dense<0.000000e+00> : vector<8x32xf32>
    %94 = tpu.matmul %92, %93, %cst_61 {dimension_numbers = #tpu.dot_dimension_numbers<[1], [0], [0], [1], [0, 0, 1, 1], [], []>} : vector<8x512xbf16>, vector<512x32xbf16>, vector<8x32xf32> -> vector<8x32xf32>
    %c0_62 = arith.constant 0 : index
    %c0_63 = arith.constant 0 : index
    %c0_64 = arith.constant 0 : index
    %95 = vector.load %arg10[%c0_62, %c0_63, %c0_64] : memref<1x8x32xf32, #tpu.memory_space<vmem>>, vector<1x8x32xf32>
    %96 = vector.shape_cast %95 : vector<1x8x32xf32> to vector<8x32xf32>
    %97 = vector.shape_cast %94 : vector<8x32xf32> to vector<1x8x32xf32>
    tpu.vector_store %arg10[%c0_62, %c0_63, %c0_64], %97 {strides = array<i32>} : memref<1x8x32xf32, #tpu.memory_space<vmem>>, vector<1x8x32xf32>,
    return
  }
  func.func @transform_0(%arg0: i32, %arg1: i32) -> (i32, i32, i32) {
    %c0_i32 = arith.constant 0 : i32
    %c0_i32_0 = arith.constant 0 : i32
    return %arg0, %arg1, %c0_i32 : i32, i32, i32
  }
  func.func @transform_1(%arg0: i32, %arg1: i32) -> (i32, i32, i32) {
    %c0_i32 = arith.constant 0 : i32
    %c0_i32_0 = arith.constant 0 : i32
    %c0_i32_1 = arith.constant 0 : i32
    return %arg0, %c0_i32, %c0_i32_0 : i32, i32, i32
  }
  func.func @transform_2(%arg0: i32, %arg1: i32) -> (i32, i32, i32) {
    %c0_i32 = arith.constant 0 : i32
    %c0_i32_0 = arith.constant 0 : i32
    %c0_i32_1 = arith.constant 0 : i32
    return %arg0, %c0_i32, %c0_i32_0 : i32, i32, i32
  }
  func.func @transform_3(%arg0: i32, %arg1: i32) -> (i32, i32, i32) {
    %c0_i32 = arith.constant 0 : i32
    %c0_i32_0 = arith.constant 0 : i32
    return %arg0, %arg1, %c0_i32 : i32, i32, i32
  }
  func.func @transform_4(%arg0: i32, %arg1: i32) -> (i32, i32) {
    %c0_i32 = arith.constant 0 : i32
    %c0_i32_0 = arith.constant 0 : i32
    %c0_i32_1 = arith.constant 0 : i32
    return %c0_i32, %c0_i32_0 : i32, i32
  }
  func.func @transform_5(%arg0: i32, %arg1: i32) -> (i32, i32) {
    %c0_i32 = arith.constant 0 : i32
    %c0_i32_0 = arith.constant 0 : i32
    %c0_i32_1 = arith.constant 0 : i32
    return %c0_i32, %c0_i32_0 : i32, i32
  }
  func.func @transform_6(%arg0: i32, %arg1: i32) -> (i32, i32) {
    %c0_i32 = arith.constant 0 : i32
    %c0_i32_0 = arith.constant 0 : i32
    %c0_i32_1 = arith.constant 0 : i32
    return %c0_i32, %c0_i32_0 : i32, i32
  }
  func.func @transform_7(%arg0: i32, %arg1: i32) -> (i32, i32) {
    %c0_i32 = arith.constant 0 : i32
    %c0_i32_0 = arith.constant 0 : i32
    %c0_i32_1 = arith.constant 0 : i32
    return %c0_i32, %c0_i32_0 : i32, i32
  }
  func.func @transform_8(%arg0: i32, %arg1: i32) -> (i32, i32, i32) {
    %c0_i32 = arith.constant 0 : i32
    %c0_i32_0 = arith.constant 0 : i32
    return %arg0, %arg1, %c0_i32 : i32, i32, i32
  }
}

</mosaic_0001>

<llo_original>
// kernel: tpu_custom_call.1
$region0: #{tpu_custom_call.1}
  #allocation0 [shape = 'u32[]', space=smem, size = 0x4, offset = 0x4, fixed_abs, tag = 'smem constant byte address 0x4 - core index']
  #allocation1 [shape = 'u32[72,128]{1,0:T(1,128)}', space=vmem, size = 0x9000, scoped, tag = 'internal scratch']
  #allocation2 [shape = 'bf16[8,512]{1,0:T(8,128)(2,1)}', space=vmem, size = 0x2000, scoped, tag = 'scratch operand']
  #allocation3 [shape = 'bf16[8,512]{1,0:T(8,128)(2,1)}', space=vmem, size = 0x2000, scoped, tag = 'scratch operand']
  #allocation4 [shape = 'bf16[8,512]{1,0:T(8,128)(2,1)}', space=vmem, size = 0x2000, scoped, tag = 'scratch operand']
  #allocation5 [shape = 'bf16[8,512]{1,0:T(8,128)(2,1)}', space=vmem, size = 0x2000, scoped, tag = 'scratch operand']
  %s0 = inlined_call_operand.vmem [shape: bf16[2,8,32], index: 0, kind: input, shape index: {}]
  %s1 = inlined_call_operand.vmem [shape: bf16[2,8,32], index: 1, kind: input, shape index: {}]
  %s2 = inlined_call_operand.vmem [shape: bf16[2,8,32], index: 2, kind: input, shape index: {}]
  %s3 = inlined_call_operand.vmem [shape: s8[2,8,8], index: 3, kind: input, shape index: {}]
  %s4 = inlined_call_operand.vmem [shape: bf16[32,512], index: 4, kind: input, shape index: {}]
  %s5 = inlined_call_operand.vmem [shape: bf16[32,512], index: 5, kind: input, shape index: {}]
  %s6 = inlined_call_operand.vmem [shape: bf16[32,512], index: 6, kind: input, shape index: {}]
  %s7 = inlined_call_operand.vmem [shape: bf16[512,32], index: 7, kind: input, shape index: {}]
  %s8 = inlined_call_operand.hbm [shape: f32[2,8,32], index: 8, kind: output, shape index: {}]
  %s9 = sld [smem:[#allocation0]]
  $region69: #{tpu_custom_call.1} parent=0
    _
  %s11 = ssub.s32 1, %s9
  %s12 = scalar_select 0, %s11, %s9
  $region1: #{tpu_custom_call.1} parent=0
    #allocation6 [shape = 'u8[8192]{0}', space=vmem, size = 0x2000, scoped, tag = 'output window, operand 0']
    #allocation7 [shape = 's32[2]{0}', space=sflag, size = 0x8, scoped, tag = 'scoped memory for tpu_custom_call.1']
    %13 = vsyncpa [#allocation7], 0
    %s14 = scalar_lea.sflag [#allocation7], 1
    %15 = vsyncpa %s14, 0
    loop: start=0, step=1, limit=4
    $region2: #{tpu_custom_call.1} parent=1 // loop_pre_header
      _
    $region3: #{tpu_custom_call.1} parent=1 // loop_header
      %s17 = sphi 0, %s21
      %p18 = scmp.ge.s32.totalorder %s17, 4
      %s24 = sphi 0, %s36
      %s25 = sphi 0, %s32
      %s26 = sphi 0, %s24
      %s27 = sphi 0, %s25
      %s28 = sphi 0, %s26
      %s29 = sphi 0, %s27
      %s41 = sphi 0, %s43
      %s44 = sphi 0, %s41
      %s45 = sphi 0, %s44
      %s61 = sphi 0, %s45
      %s67 = sphi 0, %s69
      %s70 = sphi 0, %s67
      %s71 = sphi 0, %s70
      %s87 = sphi 0, %s71
      %s93 = sphi 0, %s95
      %s96 = sphi 0, %s93
      %s97 = sphi 0, %s96
      %s113 = sphi 0, %s97
      %s121 = sphi 0, %s123
      %s124 = sphi 0, %s121
      %s125 = sphi 0, %s124
      %s141 = sphi 0, %s125
      %s145 = sphi 0, %s145
      %s147 = sphi 0, %s145
      %s148 = sphi 0, %s147
      %s162 = sphi 0, %s148
      %s166 = sphi 0, %s166
      %s168 = sphi 0, %s166
      %s169 = sphi 0, %s168
      %s183 = sphi 0, %s169
      %s187 = sphi 0, %s187
      %s189 = sphi 0, %s187
      %s190 = sphi 0, %s189
      %s204 = sphi 0, %s190
      %s208 = sphi 0, %s208
      %s210 = sphi 0, %s208
      %s211 = sphi 0, %s210
      %s225 = sphi 0, %s211
      %s233 = sphi 0, %s235
      %s236 = sphi 0, %s233
      %s237 = sphi 0, %s236
      %s253 = sphi 0, %s237
    $region4: #{tpu_custom_call.1} parent=1 // loop_header_branch
      %20 = sbr.rel (%p18) target = $region8
    $region5: #{tpu_custom_call.1} parent=1 // loop_body
      %s22 = ssub.s32 %s17, 1
      %s23 = ssub.s32 %s17, 2
      %s30 = sadd.s32 1, %s25
      %p31 = scmp.ge.s32.totalorder %s30, 1
      %s32 = scalar_select %p31, 0, %s30
      %s33 = sadd.s32 1, %s24
      %s34 = scalar_select %p31, %s33, %s24
      %p35 = scmp.ge.s32.totalorder %s34, 2
      %s36 = scalar_select %p35, 0, %s34
      %s37 = ssub.s32 %s24, %s36
      %s38 = ssub.s32 %s25, %s32
      %s39 = sor.u32 %s37, %s38
      %p40 = scmp.eq.s32.totalorder %s39, 0
      %s42 = sadd.s32 %s41, 1
      %s43 = scalar_select %p40, %s41, %s42
      %p46 = pneg %p40
      %p47 = scmp.eq.s32.totalorder %s17, 1
      %p48 = por %p46, %p47
      %p49 = scmp.ne.s32.totalorder %s41, %s44
      %p50 = scmp.eq.s32.totalorder %s17, 0
      %p51 = por %p49, %p50
      %p52 = scmp.ne.s32.totalorder %s41, %s44
      %p53 = scmp.eq.s32.totalorder %s22, 1
      %p54 = por %p52, %p53
      %p55 = scmp.ne.s32.totalorder %s44, %s45
      %p56 = scmp.eq.s32.totalorder %s22, 0
      %p57 = por %p55, %p56
      %p58 = scmp.ne.s32.totalorder %s44, %s45
      %p59 = scmp.eq.s32.totalorder %s23, 1
      %p60 = por %p58, %p59
      %p62 = scmp.ne.s32.totalorder %s45, %s61
      %p63 = scmp.eq.s32.totalorder %s23, 0
      %p64 = por %p62, %p63
      %s65 = ssub.s32 %s24, %s36
      %p66 = scmp.eq.s32.totalorder %s65, 0
      %s68 = sadd.s32 %s67, 1
      %s69 = scalar_select %p66, %s67, %s68
      %p72 = pneg %p66
      %p73 = scmp.eq.s32.totalorder %s17, 1
      %p74 = por %p72, %p73
      %p75 = scmp.ne.s32.totalorder %s67, %s70
      %p76 = scmp.eq.s32.totalorder %s17, 0
      %p77 = por %p75, %p76
      %p78 = scmp.ne.s32.totalorder %s67, %s70
      %p79 = scmp.eq.s32.totalorder %s22, 1
      %p80 = por %p78, %p79
      %p81 = scmp.ne.s32.totalorder %s70, %s71
      %p82 = scmp.eq.s32.totalorder %s22, 0
      %p83 = por %p81, %p82
      %p84 = scmp.ne.s32.totalorder %s70, %s71
      %p85 = scmp.eq.s32.totalorder %s23, 1
      %p86 = por %p84, %p85
      %p88 = scmp.ne.s32.totalorder %s71, %s87
      %p89 = scmp.eq.s32.totalorder %s23, 0
      %p90 = por %p88, %p89
      %s91 = ssub.s32 %s24, %s36
      %p92 = scmp.eq.s32.totalorder %s91, 0
      %s94 = sadd.s32 %s93, 1
      %s95 = scalar_select %p92, %s93, %s94
      %p98 = pneg %p92
      %p99 = scmp.eq.s32.totalorder %s17, 1
      %p100 = por %p98, %p99
      %p101 = scmp.ne.s32.totalorder %s93, %s96
      %p102 = scmp.eq.s32.totalorder %s17, 0
      %p103 = por %p101, %p102
      %p104 = scmp.ne.s32.totalorder %s93, %s96
      %p105 = scmp.eq.s32.totalorder %s22, 1
      %p106 = por %p104, %p105
      %p107 = scmp.ne.s32.totalorder %s96, %s97
      %p108 = scmp.eq.s32.totalorder %s22, 0
      %p109 = por %p107, %p108
      %p110 = scmp.ne.s32.totalorder %s96, %s97
      %p111 = scmp.eq.s32.totalorder %s23, 1
      %p112 = por %p110, %p111
      %p114 = scmp.ne.s32.totalorder %s97, %s113
      %p115 = scmp.eq.s32.totalorder %s23, 0
      %p116 = por %p114, %p115
      %s117 = ssub.s32 %s24, %s36
      %s118 = ssub.s32 %s25, %s32
      %s119 = sor.u32 %s117, %s118
      %p120 = scmp.eq.s32.totalorder %s119, 0
      %s122 = sadd.s32 %s121, 1
      %s123 = scalar_select %p120, %s121, %s122
      %p126 = pneg %p120
      %p127 = scmp.eq.s32.totalorder %s17, 1
      %p128 = por %p126, %p127
      %p129 = scmp.ne.s32.totalorder %s121, %s124
      %p130 = scmp.eq.s32.totalorder %s17, 0
      %p131 = por %p129, %p130
      %p132 = scmp.ne.s32.totalorder %s121, %s124
      %p133 = scmp.eq.s32.totalorder %s22, 1
      %p134 = por %p132, %p133
      %p135 = scmp.ne.s32.totalorder %s124, %s125
      %p136 = scmp.eq.s32.totalorder %s22, 0
      %p137 = por %p135, %p136
      %p138 = scmp.ne.s32.totalorder %s124, %s125
      %p139 = scmp.eq.s32.totalorder %s23, 1
      %p140 = por %p138, %p139
      %p142 = scmp.ne.s32.totalorder %s125, %s141
      %p143 = scmp.eq.s32.totalorder %s23, 0
      %p144 = por %p142, %p143
      %s146 = sadd.s32 %s145, 1
      %p149 = scmp.eq.s32.totalorder %s17, 1
      %p150 = scmp.ne.s32.totalorder %s145, %s147
      %p151 = scmp.eq.s32.totalorder %s17, 0
      %p152 = por %p150, %p151
      %p153 = scmp.ne.s32.totalorder %s145, %s147
      %p154 = scmp.eq.s32.totalorder %s22, 1
      %p155 = por %p153, %p154
      %p156 = scmp.ne.s32.totalorder %s147, %s148
      %p157 = scmp.eq.s32.totalorder %s22, 0
      %p158 = por %p156, %p157
      %p159 = scmp.ne.s32.totalorder %s147, %s148
      %p160 = scmp.eq.s32.totalorder %s23, 1
      %p161 = por %p159, %p160
      %p163 = scmp.ne.s32.totalorder %s148, %s162
      %p164 = scmp.eq.s32.totalorder %s23, 0
      %p165 = por %p163, %p164
      %s167 = sadd.s32 %s166, 1
      %p170 = scmp.eq.s32.totalorder %s17, 1
      %p171 = scmp.ne.s32.totalorder %s166, %s168
      %p172 = scmp.eq.s32.totalorder %s17, 0
      %p173 = por %p171, %p172
      %p174 = scmp.ne.s32.totalorder %s166, %s168
      %p175 = scmp.eq.s32.totalorder %s22, 1
      %p176 = por %p174, %p175
      %p177 = scmp.ne.s32.totalorder %s168, %s169
      %p178 = scmp.eq.s32.totalorder %s22, 0
      %p179 = por %p177, %p178
      %p180 = scmp.ne.s32.totalorder %s168, %s169
      %p181 = scmp.eq.s32.totalorder %s23, 1
      %p182 = por %p180, %p181
      %p184 = scmp.ne.s32.totalorder %s169, %s183
      %p185 = scmp.eq.s32.totalorder %s23, 0
      %p186 = por %p184, %p185
      %s188 = sadd.s32 %s187, 1
      %p191 = scmp.eq.s32.totalorder %s17, 1
      %p192 = scmp.ne.s32.totalorder %s187, %s189
      %p193 = scmp.eq.s32.totalorder %s17, 0
      %p194 = por %p192, %p193
      %p195 = scmp.ne.s32.totalorder %s187, %s189
      %p196 = scmp.eq.s32.totalorder %s22, 1
      %p197 = por %p195, %p196
      %p198 = scmp.ne.s32.totalorder %s189, %s190
      %p199 = scmp.eq.s32.totalorder %s22, 0
      %p200 = por %p198, %p199
      %p201 = scmp.ne.s32.totalorder %s189, %s190
      %p202 = scmp.eq.s32.totalorder %s23, 1
      %p203 = por %p201, %p202
      %p205 = scmp.ne.s32.totalorder %s190, %s204
      %p206 = scmp.eq.s32.totalorder %s23, 0
      %p207 = por %p205, %p206
      %s209 = sadd.s32 %s208, 1
      %p212 = scmp.eq.s32.totalorder %s17, 1
      %p213 = scmp.ne.s32.totalorder %s208, %s210
      %p214 = scmp.eq.s32.totalorder %s17, 0
      %p215 = por %p213, %p214
      %p216 = scmp.ne.s32.totalorder %s208, %s210
      %p217 = scmp.eq.s32.totalorder %s22, 1
      %p218 = por %p216, %p217
      %p219 = scmp.ne.s32.totalorder %s210, %s211
      %p220 = scmp.eq.s32.totalorder %s22, 0
      %p221 = por %p219, %p220
      %p222 = scmp.ne.s32.totalorder %s210, %s211
      %p223 = scmp.eq.s32.totalorder %s23, 1
      %p224 = por %p222, %p223
      %p226 = scmp.ne.s32.totalorder %s211, %s225
      %p227 = scmp.eq.s32.totalorder %s23, 0
      %p228 = por %p226, %p227
      %s229 = ssub.s32 %s24, %s36
      %s230 = ssub.s32 %s25, %s32
      %s231 = sor.u32 %s229, %s230
      %p232 = scmp.eq.s32.totalorder %s231, 0
      %s234 = sadd.s32 %s233, 1
      %s235 = scalar_select %p232, %s233, %s234
      %p238 = pneg %p232
      %p239 = scmp.eq.s32.totalorder %s17, 1
      %p240 = por %p238, %p239
      %p241 = scmp.ne.s32.totalorder %s233, %s236
      %p242 = scmp.eq.s32.totalorder %s17, 0
      %p243 = por %p241, %p242
      %p244 = scmp.ne.s32.totalorder %s233, %s236
      %p245 = scmp.eq.s32.totalorder %s22, 1
      %p246 = por %p244, %p245
      %p247 = scmp.ne.s32.totalorder %s236, %s237
      %p248 = scmp.eq.s32.totalorder %s22, 0
      %p249 = por %p247, %p248
      %p250 = scmp.ne.s32.totalorder %s236, %s237
      %p251 = scmp.eq.s32.totalorder %s23, 1
      %p252 = por %p250, %p251
      %p254 = scmp.ne.s32.totalorder %s237, %s253
      %p255 = scmp.eq.s32.totalorder %s23, 0
      %p256 = por %p254, %p255
      %p257 = scmp.le.s32.totalorder 1, %s17
      %p258 = scmp.lt.s32.totalorder %s17, 3
      %p259 = pnand %p257, %p258
      %p260 = pneg %p259
      // Predicated region
      $region9: #{tpu_custom_call.1} parent=5 // pred_check
        _
      $region10: #{tpu_custom_call.1} parent=5 // pred_check_branch
        %262 = sbr.rel (%p259) target = $region12
      $region11: #{tpu_custom_call.1} parent=5 // pred_region
        %s263 = ssub.s32 %s17, 1
        // Predicated region
        $region13: #{tpu_custom_call.1} parent=11 // pred_check
          %p264 = pneg %p158
        $region14: #{tpu_custom_call.1} parent=11 // pred_check_branch
          %266 = sbr.rel (%p264) target = $region16
        $region15: #{tpu_custom_call.1} parent=11 // pred_region
          _
        $region16: #{tpu_custom_call.1} parent=11 // pred_fallthru
          _
        // Predicated region
        $region17: #{tpu_custom_call.1} parent=11 // pred_check
          %p267 = pneg %p179
        $region18: #{tpu_custom_call.1} parent=11 // pred_check_branch
          %269 = sbr.rel (%p267) target = $region20
        $region19: #{tpu_custom_call.1} parent=11 // pred_region
          _
        $region20: #{tpu_custom_call.1} parent=11 // pred_fallthru
          _
        // Predicated region
        $region21: #{tpu_custom_call.1} parent=11 // pred_check
          %p270 = pneg %p200
        $region22: #{tpu_custom_call.1} parent=11 // pred_check_branch
          %272 = sbr.rel (%p270) target = $region24
        $region23: #{tpu_custom_call.1} parent=11 // pred_region
          _
        $region24: #{tpu_custom_call.1} parent=11 // pred_fallthru
          _
        // Predicated region
        $region25: #{tpu_custom_call.1} parent=11 // pred_check
          %p273 = pneg %p221
        $region26: #{tpu_custom_call.1} parent=11 // pred_check_branch
          %275 = sbr.rel (%p273) target = $region28
        $region27: #{tpu_custom_call.1} parent=11 // pred_region
          _
        $region28: #{tpu_custom_call.1} parent=11 // pred_fallthru
          _
      $region12: #{tpu_custom_call.1} parent=5 // pred_fallthru
        _
      %p276 = scmp.lt.s32.totalorder %s17, 2
      // Predicated region
      $region29: #{tpu_custom_call.1} parent=5 // pred_check
        %p277 = pneg %p276
      $region30: #{tpu_custom_call.1} parent=5 // pred_check_branch
        %279 = sbr.rel (%p277) target = $region32
      $region31: #{tpu_custom_call.1} parent=5 // pred_region
        // Predicated region
        $region33: #{tpu_custom_call.1} parent=31 // pred_check
          %p280 = pneg %p51
        $region34: #{tpu_custom_call.1} parent=31 // pred_check_branch
          %282 = sbr.rel (%p280) target = $region36
        $region35: #{tpu_custom_call.1} parent=31 // pred_region
          %p283 = scmp.lt.s32.totalorder %s24, 1
          %s284 = scalar_select %p283, %s24, 1
          %p285 = scmp.lt.s32.totalorder %s25, 0
          %s286 = scalar_select %p285, %s25, 0
          %s287 = sadd.s32 %s286, %s284
          %s288 = smul.addr %s287, 4
          %s289 = scalar_lea.vmem %s0, %s288
        $region36: #{tpu_custom_call.1} parent=31 // pred_fallthru
          _
        // Predicated region
        $region37: #{tpu_custom_call.1} parent=31 // pred_check
          %p290 = pneg %p77
        $region38: #{tpu_custom_call.1} parent=31 // pred_check_branch
          %292 = sbr.rel (%p290) target = $region40
        $region39: #{tpu_custom_call.1} parent=31 // pred_region
          %p293 = scmp.lt.s32.totalorder %s24, 1
          %s294 = scalar_select %p293, %s24, 1
          %s295 = smul.addr %s294, 4
          %s296 = scalar_lea.vmem %s1, %s295
        $region40: #{tpu_custom_call.1} parent=31 // pred_fallthru
          _
        // Predicated region
        $region41: #{tpu_custom_call.1} parent=31 // pred_check
          %p297 = pneg %p103
        $region42: #{tpu_custom_call.1} parent=31 // pred_check_branch
          %299 = sbr.rel (%p297) target = $region44
        $region43: #{tpu_custom_call.1} parent=31 // pred_region
          %p300 = scmp.lt.s32.totalorder %s24, 1
          %s301 = scalar_select %p300, %s24, 1
          %s302 = smul.addr %s301, 4
          %s303 = scalar_lea.vmem %s2, %s302
        $region44: #{tpu_custom_call.1} parent=31 // pred_fallthru
          _
        // Predicated region
        $region45: #{tpu_custom_call.1} parent=31 // pred_check
          %p304 = pneg %p131
        $region46: #{tpu_custom_call.1} parent=31 // pred_check_branch
          %306 = sbr.rel (%p304) target = $region48
        $region47: #{tpu_custom_call.1} parent=31 // pred_region
          %p307 = scmp.lt.s32.totalorder %s24, 1
          %s308 = scalar_select %p307, %s24, 1
          %p309 = scmp.lt.s32.totalorder %s25, 0
          %s310 = scalar_select %p309, %s25, 0
          %s311 = sadd.s32 %s310, %s308
          %s312 = smul.addr %s311, 2
          %s313 = scalar_lea.vmem %s3, %s312
        $region48: #{tpu_custom_call.1} parent=31 // pred_fallthru
          _
      $region32: #{tpu_custom_call.1} parent=5 // pred_fallthru
        _
      %p314 = scmp.le.s32.totalorder 1, %s17
      %p315 = scmp.lt.s32.totalorder %s17, 3
      %p316 = pnand %p314, %p315
      %p317 = pneg %p316
      // Predicated region
      $region49: #{tpu_custom_call.1} parent=5 // pred_check
        _
      $region50: #{tpu_custom_call.1} parent=5 // pred_check_branch
        %319 = sbr.rel (%p316) target = $region52
      $region51: #{tpu_custom_call.1} parent=5 // pred_region
        %s320 = ssub.s32 %s17, 1
        %p321 = scmp.lt.s32.totalorder %s26, 1
        %s322 = scalar_select %p321, %s26, 1
        %p323 = scmp.lt.s32.totalorder %s27, 0
        %s324 = scalar_select %p323, %s27, 0
        %s325 = sadd.s32 %s324, %s322
        %s326 = smul.addr %s325, 4
        %s327 = scalar_lea.vmem %s0, %s326
        %p328 = pneg %p57
        %p329 = pneg %p54
        %p330 = scmp.lt.s32.totalorder %s26, 1
        %s331 = scalar_select %p330, %s26, 1
        %s332 = smul.addr %s331, 4
        %s333 = scalar_lea.vmem %s1, %s332
        %p334 = pneg %p83
        %p335 = pneg %p80
        %p336 = scmp.lt.s32.totalorder %s26, 1
        %s337 = scalar_select %p336, %s26, 1
        %s338 = smul.addr %s337, 4
        %s339 = scalar_lea.vmem %s2, %s338
        %p340 = pneg %p109
        %p341 = pneg %p106
        %p342 = scmp.lt.s32.totalorder %s26, 1
        %s343 = scalar_select %p342, %s26, 1
        %p344 = scmp.lt.s32.totalorder %s27, 0
        %s345 = scalar_select %p344, %s27, 0
        %s346 = sadd.s32 %s345, %s343
        %s347 = smul.addr %s346, 2
        %s348 = scalar_lea.vmem %s3, %s347
        %p349 = pneg %p137
        %p350 = pneg %p134
        %p351 = pneg %p158
        %p352 = pneg %p155
        %p353 = pneg %p179
        %p354 = pneg %p176
        %p355 = pneg %p200
        %p356 = pneg %p197
        %p357 = pneg %p221
        %p358 = pneg %p218
        %p359 = pneg %p249
        %p360 = pneg %p246
        %s361 = sand.u32 %s236, 1
        %s362 = scalar_lea.sflag [#allocation7], %s361
        %s363 = sand.u32 %s236, 1
        %s364 = smul.addr %s363, 8
        %s365 = scalar_lea.vmem [#allocation6], %s364
        %p366 = scmp.lt.s32.totalorder %s26, 1
        %s367 = scalar_select %p366, %s26, 1
        %p368 = scmp.lt.s32.totalorder %s27, 0
        %s369 = scalar_select %p368, %s27, 0
        %s370 = sadd.s32 %s369, %s367
        %s371 = smul.addr %s370, 4
        %s372 = scalar_lea.vmem %s0, %s371
        %p373 = scmp.lt.s32.totalorder %s26, 1
        %s374 = scalar_select %p373, %s26, 1
        %s375 = smul.addr %s374, 4
        %s376 = scalar_lea.vmem %s1, %s375
        %p377 = scmp.lt.s32.totalorder %s26, 1
        %s378 = scalar_select %p377, %s26, 1
        %s379 = smul.addr %s378, 4
        %s380 = scalar_lea.vmem %s2, %s379
        %p381 = scmp.lt.s32.totalorder %s26, 1
        %s382 = scalar_select %p381, %s26, 1
        %p383 = scmp.lt.s32.totalorder %s27, 0
        %s384 = scalar_select %p383, %s27, 0
        %s385 = sadd.s32 %s384, %s382
        %s386 = smul.addr %s385, 2
        %s387 = scalar_lea.vmem %s3, %s386
        %p389 = scmp.eq.s32.totalorder %s27, 0
        // Predicated region
        $region53: #{tpu_custom_call.1} parent=51 // pred_check
          %p390 = pneg %p389
        $region54: #{tpu_custom_call.1} parent=51 // pred_check_branch
          %392 = sbr.rel (%p390) target = $region56
        $region55: #{tpu_custom_call.1} parent=51 // pred_region
          %v393 = vld [vmem:[%s376] sm:$0xf]
          %v394 = vld [vmem:[%s5] sm:$0xff]
          %v395 = vld [vmem:[%s5 + $0x8] sm:$0xff]
          %v396 = vld [vmem:[%s5 + $0x10] sm:$0xff]
          %v397 = vld [vmem:[%s5 + $0x18] sm:$0xff]
          %v398 = vld [vmem:[%s5 + $0x20] sm:$0xff]
          %v399 = vld [vmem:[%s5 + $0x28] sm:$0xff]
          %v400 = vld [vmem:[%s5 + $0x30] sm:$0xff]
          %v401 = vld [vmem:[%s5 + $0x38] sm:$0xff]
          %v410 = vunpack.c.l.b16 %v394
          %v411 = vunpack.c.h.b16 %v394
          %v412 = vunpack.c.l.b16 %v395
          %v413 = vunpack.c.h.b16 %v395
          %v414 = vunpack.c.l.b16 %v396
          %v415 = vunpack.c.h.b16 %v396
          %v416 = vunpack.c.l.b16 %v397
          %v417 = vunpack.c.h.b16 %v397
          %v418 = vunpack.c.l.b16 %v398
          %v419 = vunpack.c.h.b16 %v398
          %v420 = vunpack.c.l.b16 %v399
          %v421 = vunpack.c.h.b16 %v399
          %v422 = vunpack.c.l.b16 %v400
          %v423 = vunpack.c.h.b16 %v400
          %v424 = vunpack.c.l.b16 %v401
          %v425 = vunpack.c.h.b16 %v401
          %v426 = vpack.c.b16 %v414, %v410
          %v427 = vpack.c.b16 %v415, %v411
          %v428 = vpack.c.b16 %v416, %v412
          %v429 = vpack.c.b16 %v417, %v413
          %v430 = vpack.c.b16 %v422, %v418
          %v431 = vpack.c.b16 %v423, %v419
          %v432 = vpack.c.b16 %v424, %v420
          %v433 = vpack.c.b16 %v425, %v421
          %vm442 = vcmask 261120
          %v444 = vsel %vm442, %v393, 0
          %446 = vmatpush.bf16.msra.mxu0 0
          %447 = vmatpush.bf16.msra.mxu0 0
          %448 = vmatpush.bf16.msra.mxu0 0
          %449 = vmatpush.bf16.msra.mxu0 0
          %450 = vmatpush.bf16.msra.mxu0 0
          %451 = vmatpush.bf16.msra.mxu0 0
          %452 = vmatpush.bf16.msra.mxu0 %v430
          %453 = vmatpush.bf16.msra.mxu0 %v426
          %454 = vmatmul.bf16.gmra.mxu0 %v444
          %v455 = vpop.f32.mrf.mxu0
          %v456 = vadd.f32 0.0, %v455
          %v457 = vpop.f32.mrf.mxu0
          %458 = vdwg.mxu0
          %459 = vmatpush.bf16.msra.mxu0 0
          %460 = vmatpush.bf16.msra.mxu0 0
          %461 = vmatpush.bf16.msra.mxu0 0
          %462 = vmatpush.bf16.msra.mxu0 0
          %463 = vmatpush.bf16.msra.mxu0 0
          %464 = vmatpush.bf16.msra.mxu0 0
          %465 = vmatpush.bf16.msra.mxu0 %v431
          %466 = vmatpush.bf16.msra.mxu0 %v427
          %467 = vmatmul.bf16.gmra.mxu0 %v444
          %v468 = vpop.f32.mrf.mxu0
          %v469 = vadd.f32 0.0, %v468
          %v470 = vpop.f32.mrf.mxu0
          %471 = vdwg.mxu0
          %472 = vmatpush.bf16.msra.mxu0 0
          %473 = vmatpush.bf16.msra.mxu0 0
          %474 = vmatpush.bf16.msra.mxu0 0
          %475 = vmatpush.bf16.msra.mxu0 0
          %476 = vmatpush.bf16.msra.mxu0 0
          %477 = vmatpush.bf16.msra.mxu0 0
          %478 = vmatpush.bf16.msra.mxu0 %v432
          %479 = vmatpush.bf16.msra.mxu0 %v428
          %480 = vmatmul.bf16.gmra.mxu0 %v444
          %v481 = vpop.f32.mrf.mxu0
          %v482 = vadd.f32 0.0, %v481
          %v483 = vpop.f32.mrf.mxu0
          %484 = vdwg.mxu0
          %485 = vmatpush.bf16.msra.mxu0 0
          %486 = vmatpush.bf16.msra.mxu0 0
          %487 = vmatpush.bf16.msra.mxu0 0
          %488 = vmatpush.bf16.msra.mxu0 0
          %489 = vmatpush.bf16.msra.mxu0 0
          %490 = vmatpush.bf16.msra.mxu0 0
          %491 = vmatpush.bf16.msra.mxu0 %v433
          %492 = vmatpush.bf16.msra.mxu0 %v429
          %493 = vmatmul.bf16.gmra.mxu0 %v444
          %v494 = vpop.f32.mrf.mxu0
          %v495 = vadd.f32 0.0, %v494
          %v496 = vpop.f32.mrf.mxu0
          %497 = vdwg.mxu0
          %v498 = vpack.c.bf16 %v469, %v456
          %v499 = vpack.c.bf16 %v495, %v482
          %500 = vst [vmem:[#allocation3] sm:$0xff] %v498
          %501 = vst [vmem:[#allocation3 + $0x8] sm:$0xff] %v499
          %v502 = vld [vmem:[%s380] sm:$0xf]
          %v503 = vld [vmem:[%s6] sm:$0xff]
          %v504 = vld [vmem:[%s6 + $0x8] sm:$0xff]
          %v505 = vld [vmem:[%s6 + $0x10] sm:$0xff]
          %v506 = vld [vmem:[%s6 + $0x18] sm:$0xff]
          %v507 = vld [vmem:[%s6 + $0x20] sm:$0xff]
          %v508 = vld [vmem:[%s6 + $0x28] sm:$0xff]
          %v509 = vld [vmem:[%s6 + $0x30] sm:$0xff]
          %v510 = vld [vmem:[%s6 + $0x38] sm:$0xff]
          %v519 = vunpack.c.l.b16 %v503
          %v520 = vunpack.c.h.b16 %v503
          %v521 = vunpack.c.l.b16 %v504
          %v522 = vunpack.c.h.b16 %v504
          %v523 = vunpack.c.l.b16 %v505
          %v524 = vunpack.c.h.b16 %v505
          %v525 = vunpack.c.l.b16 %v506
          %v526 = vunpack.c.h.b16 %v506
          %v527 = vunpack.c.l.b16 %v507
          %v528 = vunpack.c.h.b16 %v507
          %v529 = vunpack.c.l.b16 %v508
          %v530 = vunpack.c.h.b16 %v508
          %v531 = vunpack.c.l.b16 %v509
          %v532 = vunpack.c.h.b16 %v509
          %v533 = vunpack.c.l.b16 %v510
          %v534 = vunpack.c.h.b16 %v510
          %v535 = vpack.c.b16 %v523, %v519
          %v536 = vpack.c.b16 %v524, %v520
          %v537 = vpack.c.b16 %v525, %v521
          %v538 = vpack.c.b16 %v526, %v522
          %v539 = vpack.c.b16 %v531, %v527
          %v540 = vpack.c.b16 %v532, %v528
          %v541 = vpack.c.b16 %v533, %v529
          %v542 = vpack.c.b16 %v534, %v530
          %v552 = vsel %vm442, %v502, 0
          %554 = vmatpush.bf16.msra.mxu0 0
          %555 = vmatpush.bf16.msra.mxu0 0
          %556 = vmatpush.bf16.msra.mxu0 0
          %557 = vmatpush.bf16.msra.mxu0 0
          %558 = vmatpush.bf16.msra.mxu0 0
          %559 = vmatpush.bf16.msra.mxu0 0
          %560 = vmatpush.bf16.msra.mxu0 %v539
          %561 = vmatpush.bf16.msra.mxu0 %v535
          %562 = vmatmul.bf16.gmra.mxu0 %v552
          %v563 = vpop.f32.mrf.mxu0
          %v564 = vadd.f32 0.0, %v563
          %v565 = vpop.f32.mrf.mxu0
          %566 = vdwg.mxu0
          %567 = vmatpush.bf16.msra.mxu0 0
          %568 = vmatpush.bf16.msra.mxu0 0
          %569 = vmatpush.bf16.msra.mxu0 0
          %570 = vmatpush.bf16.msra.mxu0 0
          %571 = vmatpush.bf16.msra.mxu0 0
          %572 = vmatpush.bf16.msra.mxu0 0
          %573 = vmatpush.bf16.msra.mxu0 %v540
          %574 = vmatpush.bf16.msra.mxu0 %v536
          %575 = vmatmul.bf16.gmra.mxu0 %v552
          %v576 = vpop.f32.mrf.mxu0
          %v577 = vadd.f32 0.0, %v576
          %v578 = vpop.f32.mrf.mxu0
          %579 = vdwg.mxu0
          %580 = vmatpush.bf16.msra.mxu0 0
          %581 = vmatpush.bf16.msra.mxu0 0
          %582 = vmatpush.bf16.msra.mxu0 0
          %583 = vmatpush.bf16.msra.mxu0 0
          %584 = vmatpush.bf16.msra.mxu0 0
          %585 = vmatpush.bf16.msra.mxu0 0
          %586 = vmatpush.bf16.msra.mxu0 %v541
          %587 = vmatpush.bf16.msra.mxu0 %v537
          %588 = vmatmul.bf16.gmra.mxu0 %v552
          %v589 = vpop.f32.mrf.mxu0
          %v590 = vadd.f32 0.0, %v589
          %v591 = vpop.f32.mrf.mxu0
          %592 = vdwg.mxu0
          %593 = vmatpush.bf16.msra.mxu0 0
          %594 = vmatpush.bf16.msra.mxu0 0
          %595 = vmatpush.bf16.msra.mxu0 0
          %596 = vmatpush.bf16.msra.mxu0 0
          %597 = vmatpush.bf16.msra.mxu0 0
          %598 = vmatpush.bf16.msra.mxu0 0
          %599 = vmatpush.bf16.msra.mxu0 %v542
          %600 = vmatpush.bf16.msra.mxu0 %v538
          %601 = vmatmul.bf16.gmra.mxu0 %v552
          %v602 = vpop.f32.mrf.mxu0
          %v603 = vadd.f32 0.0, %v602
          %v604 = vpop.f32.mrf.mxu0
          %605 = vdwg.mxu0
          %v606 = vpack.c.bf16 %v577, %v564
          %v607 = vpack.c.bf16 %v603, %v590
          %608 = vst [vmem:[#allocation4] sm:$0xff] %v606
          %609 = vst [vmem:[#allocation4 + $0x8] sm:$0xff] %v607
        $region56: #{tpu_custom_call.1} parent=51 // pred_fallthru
          _
        %v610 = vld [vmem:[%s372] sm:$0xf]
        %v611 = vld [vmem:[%s4] sm:$0xff]
        %v612 = vld [vmem:[%s4 + $0x8] sm:$0xff]
        %v613 = vld [vmem:[%s4 + $0x10] sm:$0xff]
        %v614 = vld [vmem:[%s4 + $0x18] sm:$0xff]
        %v615 = vld [vmem:[%s4 + $0x20] sm:$0xff]
        %v616 = vld [vmem:[%s4 + $0x28] sm:$0xff]
        %v617 = vld [vmem:[%s4 + $0x30] sm:$0xff]
        %v618 = vld [vmem:[%s4 + $0x38] sm:$0xff]
        %v627 = vunpack.c.l.b16 %v611
        %v628 = vunpack.c.h.b16 %v611
        %v629 = vunpack.c.l.b16 %v612
        %v630 = vunpack.c.h.b16 %v612
        %v631 = vunpack.c.l.b16 %v613
        %v632 = vunpack.c.h.b16 %v613
        %v633 = vunpack.c.l.b16 %v614
        %v634 = vunpack.c.h.b16 %v614
        %v635 = vunpack.c.l.b16 %v615
        %v636 = vunpack.c.h.b16 %v615
        %v637 = vunpack.c.l.b16 %v616
        %v638 = vunpack.c.h.b16 %v616
        %v639 = vunpack.c.l.b16 %v617
        %v640 = vunpack.c.h.b16 %v617
        %v641 = vunpack.c.l.b16 %v618
        %v642 = vunpack.c.h.b16 %v618
        %v643 = vpack.c.b16 %v631, %v627
        %v644 = vpack.c.b16 %v632, %v628
        %v645 = vpack.c.b16 %v633, %v629
        %v646 = vpack.c.b16 %v634, %v630
        %v647 = vpack.c.b16 %v639, %v635
        %v648 = vpack.c.b16 %v640, %v636
        %v649 = vpack.c.b16 %v641, %v637
        %v650 = vpack.c.b16 %v642, %v638
        %vm659 = vcmask 261120
        %v661 = vsel %vm659, %v610, 0
        %663 = vmatpush.bf16.msra.mxu0 0
        %664 = vmatpush.bf16.msra.mxu0 0
        %665 = vmatpush.bf16.msra.mxu0 0
        %666 = vmatpush.bf16.msra.mxu0 0
        %667 = vmatpush.bf16.msra.mxu0 0
        %668 = vmatpush.bf16.msra.mxu0 0
        %669 = vmatpush.bf16.msra.mxu0 %v647
        %670 = vmatpush.bf16.msra.mxu0 %v643
        %671 = vmatmul.bf16.gmra.mxu0 %v661
        %v672 = vpop.f32.mrf.mxu0
        %v673 = vadd.f32 0.0, %v672
        %v674 = vpop.f32.mrf.mxu0
        %675 = vdwg.mxu0
        %676 = vmatpush.bf16.msra.mxu0 0
        %677 = vmatpush.bf16.msra.mxu0 0
        %678 = vmatpush.bf16.msra.mxu0 0
        %679 = vmatpush.bf16.msra.mxu0 0
        %680 = vmatpush.bf16.msra.mxu0 0
        %681 = vmatpush.bf16.msra.mxu0 0
        %682 = vmatpush.bf16.msra.mxu0 %v648
        %683 = vmatpush.bf16.msra.mxu0 %v644
        %684 = vmatmul.bf16.gmra.mxu0 %v661
        %v685 = vpop.f32.mrf.mxu0
        %v686 = vadd.f32 0.0, %v685
        %v687 = vpop.f32.mrf.mxu0
        %688 = vdwg.mxu0
        %689 = vmatpush.bf16.msra.mxu0 0
        %690 = vmatpush.bf16.msra.mxu0 0
        %691 = vmatpush.bf16.msra.mxu0 0
        %692 = vmatpush.bf16.msra.mxu0 0
        %693 = vmatpush.bf16.msra.mxu0 0
        %694 = vmatpush.bf16.msra.mxu0 0
        %695 = vmatpush.bf16.msra.mxu0 %v649
        %696 = vmatpush.bf16.msra.mxu0 %v645
        %697 = vmatmul.bf16.gmra.mxu0 %v661
        %v698 = vpop.f32.mrf.mxu0
        %v699 = vadd.f32 0.0, %v698
        %v700 = vpop.f32.mrf.mxu0
        %701 = vdwg.mxu0
        %702 = vmatpush.bf16.msra.mxu0 0
        %703 = vmatpush.bf16.msra.mxu0 0
        %704 = vmatpush.bf16.msra.mxu0 0
        %705 = vmatpush.bf16.msra.mxu0 0
        %706 = vmatpush.bf16.msra.mxu0 0
        %707 = vmatpush.bf16.msra.mxu0 0
        %708 = vmatpush.bf16.msra.mxu0 %v650
        %709 = vmatpush.bf16.msra.mxu0 %v646
        %710 = vmatmul.bf16.gmra.mxu0 %v661
        %v711 = vpop.f32.mrf.mxu0
        %v712 = vadd.f32 0.0, %v711
        %v713 = vpop.f32.mrf.mxu0
        %714 = vdwg.mxu0
        %v715 = vpack.c.bf16 %v686, %v673
        %v716 = vpack.c.bf16 %v712, %v699
        %717 = vst [vmem:[#allocation2] sm:$0xff] %v715
        %718 = vst [vmem:[#allocation2 + $0x8] sm:$0xff] %v716
        %v719 = vld [vmem:[%s387] sm:$0x3]
        %v720 = vunpack.c.0.s8 %v719
        %v721 = vcvt.s32.f32 %v720
        %v722 = vsub.f32 1.0, %v721
        %v723 = vmul.f32 %v722, -100000.0
        %v724 = vld [vmem:[#allocation2] sm:$0xf]
        %v725 = vld [vmem:[#allocation3] sm:$0xf]
        %v726 = vld [vmem:[#allocation4] sm:$0xf]
        %727 = vmatpush.bf16.xpose.msra.mxu0 0
        %728 = vmatpush.bf16.xpose.msra.mxu0 0
        %729 = vmatpush.bf16.xpose.msra.mxu0 0
        %730 = vmatpush.bf16.xpose.msra.mxu0 0
        %731 = vmatpush.bf16.xpose.msra.mxu0 0
        %732 = vmatpush.bf16.xpose.msra.mxu0 0
        %733 = vmatpush.bf16.xpose.msra.mxu0 0
        %734 = vmatpush.bf16.xpose.msra.mxu0 %v725
        %735 = vmatmul.bf16.gmra.mxu0 %v724
        %v736 = vpop.f32.mrf.mxu0
        %v737 = vadd.f32 %v723, %v736
        %v738 = vpop.f32.mrf.mxu0
        %739 = vdwg.mxu0
        %vm740 = vcmask 64512
        %v741 = vsel %vm740, %v737, -inf
        %742 = vmax.xlane.f32.xlu0 %v741
        %v743 = vpop.xlane.xlu0 %742
        %v744 = vsub.f32 %v737, %v743
        %v745 = vmul.f32 %v744, 1.442695
        %v746 = vpow.pop %v745
        %v747 = vsel %vm740, %v746, 0.0
        %748 = vadd.xlane.f32.xlu0 %v747
        %v749 = vpop.xlane.xlu0 %748
        %v750 = vrcp.pop %v749
        %v751 = vpack.c.bf16 %v746, %v746
        %v753 = vsel %vm740, %v751, 0
        %vm755 = vcmask 1043456
        %v757 = vsel %vm755, %v726, 0
        %759 = vmatpush.bf16.msra.mxu0 0
        %760 = vmatpush.bf16.msra.mxu0 0
        %761 = vmatpush.bf16.msra.mxu0 0
        %762 = vmatpush.bf16.msra.mxu0 0
        %763 = vmatpush.bf16.msra.mxu0 0
        %764 = vmatpush.bf16.msra.mxu0 0
        %765 = vmatpush.bf16.msra.mxu0 0
        %766 = vmatpush.bf16.msra.mxu0 %v757
        %767 = vmatmul.bf16.gmra.mxu0 %v753
        %v768 = vpop.f32.mrf.mxu0
        %v769 = vadd.f32 0.0, %v768
        %v770 = vpop.f32.mrf.mxu0
        %771 = vdwg.mxu0
        %v772 = vmul.f32 %v769, %v750
        %v773 = vpack.c.bf16 %v772, %v772
        %774 = vst [vmem:[#allocation5] sm:$0xf] %v773
        %v775 = vld [vmem:[#allocation2 + $0x4] sm:$0xf]
        %v776 = vld [vmem:[#allocation3 + $0x4] sm:$0xf]
        %v777 = vld [vmem:[#allocation4 + $0x4] sm:$0xf]
        %778 = vmatpush.bf16.xpose.msra.mxu0 0
        %779 = vmatpush.bf16.xpose.msra.mxu0 0
        %780 = vmatpush.bf16.xpose.msra.mxu0 0
        %781 = vmatpush.bf16.xpose.msra.mxu0 0
        %782 = vmatpush.bf16.xpose.msra.mxu0 0
        %783 = vmatpush.bf16.xpose.msra.mxu0 0
        %784 = vmatpush.bf16.xpose.msra.mxu0 0
        %785 = vmatpush.bf16.xpose.msra.mxu0 %v776
        %786 = vmatmul.bf16.gmra.mxu0 %v775
        %v787 = vpop.f32.mrf.mxu0
        %v788 = vadd.f32 %v723, %v787
        %v789 = vpop.f32.mrf.mxu0
        %790 = vdwg.mxu0
        %v791 = vsel %vm740, %v788, -inf
        %792 = vmax.xlane.f32.xlu0 %v791
        %v793 = vpop.xlane.xlu0 %792
        %v794 = vsub.f32 %v788, %v793
        %v795 = vmul.f32 %v794, 1.442695
        %v796 = vpow.pop %v795
        %v797 = vsel %vm740, %v796, 0.0
        %798 = vadd.xlane.f32.xlu0 %v797
        %v799 = vpop.xlane.xlu0 %798
        %v800 = vrcp.pop %v799
        %v801 = vpack.c.bf16 %v796, %v796
        %v803 = vsel %vm740, %v801, 0
        %v806 = vsel %vm755, %v777, 0
        %808 = vmatpush.bf16.msra.mxu0 0
        %809 = vmatpush.bf16.msra.mxu0 0
        %810 = vmatpush.bf16.msra.mxu0 0
        %811 = vmatpush.bf16.msra.mxu0 0
        %812 = vmatpush.bf16.msra.mxu0 0
        %813 = vmatpush.bf16.msra.mxu0 0
        %814 = vmatpush.bf16.msra.mxu0 0
        %815 = vmatpush.bf16.msra.mxu0 %v806
        %816 = vmatmul.bf16.gmra.mxu0 %v803
        %v817 = vpop.f32.mrf.mxu0
        %v818 = vadd.f32 0.0, %v817
        %v819 = vpop.f32.mrf.mxu0
        %820 = vdwg.mxu0
        %v821 = vmul.f32 %v818, %v800
        %v822 = vpack.c.bf16 %v821, %v821
        %823 = vst [vmem:[#allocation5 + $0x4] sm:$0xf] %v822
        %v824 = vld [vmem:[#allocation2 + $0x8] sm:$0xf]
        %v825 = vld [vmem:[#allocation3 + $0x8] sm:$0xf]
        %v826 = vld [vmem:[#allocation4 + $0x8] sm:$0xf]
        %827 = vmatpush.bf16.xpose.msra.mxu0 0
        %828 = vmatpush.bf16.xpose.msra.mxu0 0
        %829 = vmatpush.bf16.xpose.msra.mxu0 0
        %830 = vmatpush.bf16.xpose.msra.mxu0 0
        %831 = vmatpush.bf16.xpose.msra.mxu0 0
        %832 = vmatpush.bf16.xpose.msra.mxu0 0
        %833 = vmatpush.bf16.xpose.msra.mxu0 0
        %834 = vmatpush.bf16.xpose.msra.mxu0 %v825
        %835 = vmatmul.bf16.gmra.mxu0 %v824
        %v836 = vpop.f32.mrf.mxu0
        %v837 = vadd.f32 %v723, %v836
        %v838 = vpop.f32.mrf.mxu0
        %839 = vdwg.mxu0
        %v840 = vsel %vm740, %v837, -inf
        %841 = vmax.xlane.f32.xlu0 %v840
        %v842 = vpop.xlane.xlu0 %841
        %v843 = vsub.f32 %v837, %v842
        %v844 = vmul.f32 %v843, 1.442695
        %v845 = vpow.pop %v844
        %v846 = vsel %vm740, %v845, 0.0
        %847 = vadd.xlane.f32.xlu0 %v846
        %v848 = vpop.xlane.xlu0 %847
        %v849 = vrcp.pop %v848
        %v850 = vpack.c.bf16 %v845, %v845
        %v852 = vsel %vm740, %v850, 0
        %v855 = vsel %vm755, %v826, 0
        %857 = vmatpush.bf16.msra.mxu0 0
        %858 = vmatpush.bf16.msra.mxu0 0
        %859 = vmatpush.bf16.msra.mxu0 0
        %860 = vmatpush.bf16.msra.mxu0 0
        %861 = vmatpush.bf16.msra.mxu0 0
        %862 = vmatpush.bf16.msra.mxu0 0
        %863 = vmatpush.bf16.msra.mxu0 0
        %864 = vmatpush.bf16.msra.mxu0 %v855
        %865 = vmatmul.bf16.gmra.mxu0 %v852
        %v866 = vpop.f32.mrf.mxu0
        %v867 = vadd.f32 0.0, %v866
        %v868 = vpop.f32.mrf.mxu0
        %869 = vdwg.mxu0
        %v870 = vmul.f32 %v867, %v849
        %v871 = vpack.c.bf16 %v870, %v870
        %872 = vst [vmem:[#allocation5 + $0x8] sm:$0xf] %v871
        %v873 = vld [vmem:[#allocation2 + $0xc] sm:$0xf]
        %v874 = vld [vmem:[#allocation3 + $0xc] sm:$0xf]
        %v875 = vld [vmem:[#allocation4 + $0xc] sm:$0xf]
        %876 = vmatpush.bf16.xpose.msra.mxu0 0
        %877 = vmatpush.bf16.xpose.msra.mxu0 0
        %878 = vmatpush.bf16.xpose.msra.mxu0 0
        %879 = vmatpush.bf16.xpose.msra.mxu0 0
        %880 = vmatpush.bf16.xpose.msra.mxu0 0
        %881 = vmatpush.bf16.xpose.msra.mxu0 0
        %882 = vmatpush.bf16.xpose.msra.mxu0 0
        %883 = vmatpush.bf16.xpose.msra.mxu0 %v874
        %884 = vmatmul.bf16.gmra.mxu0 %v873
        %v885 = vpop.f32.mrf.mxu0
        %v886 = vadd.f32 %v723, %v885
        %v887 = vpop.f32.mrf.mxu0
        %888 = vdwg.mxu0
        %v889 = vsel %vm740, %v886, -inf
        %890 = vmax.xlane.f32.xlu0 %v889
        %v891 = vpop.xlane.xlu0 %890
        %v892 = vsub.f32 %v886, %v891
        %v893 = vmul.f32 %v892, 1.442695
        %v894 = vpow.pop %v893
        %v895 = vsel %vm740, %v894, 0.0
        %896 = vadd.xlane.f32.xlu0 %v895
        %v897 = vpop.xlane.xlu0 %896
        %v898 = vrcp.pop %v897
        %v899 = vpack.c.bf16 %v894, %v894
        %v901 = vsel %vm740, %v899, 0
        %v904 = vsel %vm755, %v875, 0
        %906 = vmatpush.bf16.msra.mxu0 0
        %907 = vmatpush.bf16.msra.mxu0 0
        %908 = vmatpush.bf16.msra.mxu0 0
        %909 = vmatpush.bf16.msra.mxu0 0
        %910 = vmatpush.bf16.msra.mxu0 0
        %911 = vmatpush.bf16.msra.mxu0 0
        %912 = vmatpush.bf16.msra.mxu0 0
        %913 = vmatpush.bf16.msra.mxu0 %v904
        %914 = vmatmul.bf16.gmra.mxu0 %v901
        %v915 = vpop.f32.mrf.mxu0
        %v916 = vadd.f32 0.0, %v915
        %v917 = vpop.f32.mrf.mxu0
        %918 = vdwg.mxu0
        %v919 = vmul.f32 %v916, %v898
        %v920 = vpack.c.bf16 %v919, %v919
        %921 = vst [vmem:[#allocation5 + $0xc] sm:$0xf] %v920
        %v922 = vld [vmem:[#allocation5] sm:$0xff]
        %v923 = vld [vmem:[#allocation5 + $0x8] sm:$0xff]
        %v924 = vld [vmem:[%s7] sm:$0xf]
        %v925 = vld [vmem:[%s7 + $0x4] sm:$0xf]
        %v926 = vld [vmem:[%s7 + $0x8] sm:$0xf]
        %v927 = vld [vmem:[%s7 + $0xc] sm:$0xf]
        %v928 = vld [vmem:[%s7 + $0x10] sm:$0xf]
        %v929 = vld [vmem:[%s7 + $0x14] sm:$0xf]
        %v930 = vld [vmem:[%s7 + $0x18] sm:$0xf]
        %v931 = vld [vmem:[%s7 + $0x1c] sm:$0xf]
        %v932 = vld [vmem:[%s7 + $0x20] sm:$0xf]
        %v933 = vld [vmem:[%s7 + $0x24] sm:$0xf]
        %v934 = vld [vmem:[%s7 + $0x28] sm:$0xf]
        %v935 = vld [vmem:[%s7 + $0x2c] sm:$0xf]
        %v936 = vld [vmem:[%s7 + $0x30] sm:$0xf]
        %v937 = vld [vmem:[%s7 + $0x34] sm:$0xf]
        %v938 = vld [vmem:[%s7 + $0x38] sm:$0xf]
        %v939 = vld [vmem:[%s7 + $0x3c] sm:$0xf]
        %v940 = vld [vmem:[%s7 + $0x40] sm:$0xf]
        %v941 = vld [vmem:[%s7 + $0x44] sm:$0xf]
        %v942 = vld [vmem:[%s7 + $0x48] sm:$0xf]
        %v943 = vld [vmem:[%s7 + $0x4c] sm:$0xf]
        %v944 = vld [vmem:[%s7 + $0x50] sm:$0xf]
        %v945 = vld [vmem:[%s7 + $0x54] sm:$0xf]
        %v946 = vld [vmem:[%s7 + $0x58] sm:$0xf]
        %v947 = vld [vmem:[%s7 + $0x5c] sm:$0xf]
        %v948 = vld [vmem:[%s7 + $0x60] sm:$0xf]
        %v949 = vld [vmem:[%s7 + $0x64] sm:$0xf]
        %v950 = vld [vmem:[%s7 + $0x68] sm:$0xf]
        %v951 = vld [vmem:[%s7 + $0x6c] sm:$0xf]
        %v952 = vld [vmem:[%s7 + $0x70] sm:$0xf]
        %v953 = vld [vmem:[%s7 + $0x74] sm:$0xf]
        %v954 = vld [vmem:[%s7 + $0x78] sm:$0xf]
        %v955 = vld [vmem:[%s7 + $0x7c] sm:$0xf]
        %v956 = vld [vmem:[%s7 + $0x80] sm:$0xf]
        %v957 = vld [vmem:[%s7 + $0x84] sm:$0xf]
        %v958 = vld [vmem:[%s7 + $0x88] sm:$0xf]
        %v959 = vld [vmem:[%s7 + $0x8c] sm:$0xf]
        %v960 = vld [vmem:[%s7 + $0x90] sm:$0xf]
        %v961 = vld [vmem:[%s7 + $0x94] sm:$0xf]
        %v962 = vld [vmem:[%s7 + $0x98] sm:$0xf]
        %v963 = vld [vmem:[%s7 + $0x9c] sm:$0xf]
        %v964 = vld [vmem:[%s7 + $0xa0] sm:$0xf]
        %v965 = vld [vmem:[%s7 + $0xa4] sm:$0xf]
        %v966 = vld [vmem:[%s7 + $0xa8] sm:$0xf]
        %v967 = vld [vmem:[%s7 + $0xac] sm:$0xf]
        %v968 = vld [vmem:[%s7 + $0xb0] sm:$0xf]
        %v969 = vld [vmem:[%s7 + $0xb4] sm:$0xf]
        %v970 = vld [vmem:[%s7 + $0xb8] sm:$0xf]
        %v971 = vld [vmem:[%s7 + $0xbc] sm:$0xf]
        %v972 = vld [vmem:[%s7 + $0xc0] sm:$0xf]
        %v973 = vld [vmem:[%s7 + $0xc4] sm:$0xf]
        %v974 = vld [vmem:[%s7 + $0xc8] sm:$0xf]
        %v975 = vld [vmem:[%s7 + $0xcc] sm:$0xf]
        %v976 = vld [vmem:[%s7 + $0xd0] sm:$0xf]
        %v977 = vld [vmem:[%s7 + $0xd4] sm:$0xf]
        %v978 = vld [vmem:[%s7 + $0xd8] sm:$0xf]
        %v979 = vld [vmem:[%s7 + $0xdc] sm:$0xf]
        %v980 = vld [vmem:[%s7 + $0xe0] sm:$0xf]
        %v981 = vld [vmem:[%s7 + $0xe4] sm:$0xf]
        %v982 = vld [vmem:[%s7 + $0xe8] sm:$0xf]
        %v983 = vld [vmem:[%s7 + $0xec] sm:$0xf]
        %v984 = vld [vmem:[%s7 + $0xf0] sm:$0xf]
        %v985 = vld [vmem:[%s7 + $0xf4] sm:$0xf]
        %v986 = vld [vmem:[%s7 + $0xf8] sm:$0xf]
        %v987 = vld [vmem:[%s7 + $0xfc] sm:$0xf]
        %v990 = vunpack.c.l.b16 %v922
        %v991 = vunpack.c.h.b16 %v922
        %v992 = vunpack.c.l.b16 %v923
        %v993 = vunpack.c.h.b16 %v923
        %v994 = vpack.c.b16 %v990, %v990
        %v995 = vpack.c.b16 %v991, %v991
        %v996 = vpack.c.b16 %v992, %v992
        %v997 = vpack.c.b16 %v993, %v993
        %v1066 = vunpack.c.l.b16 %v924
        %v1067 = vunpack.c.l.b16 %v925
        %v1068 = vunpack.c.l.b16 %v926
        %v1069 = vunpack.c.l.b16 %v927
        %v1070 = vunpack.c.l.b16 %v928
        %v1071 = vunpack.c.l.b16 %v929
        %v1072 = vunpack.c.l.b16 %v930
        %v1073 = vunpack.c.l.b16 %v931
        %v1074 = vunpack.c.l.b16 %v932
        %v1075 = vunpack.c.l.b16 %v933
        %v1076 = vunpack.c.l.b16 %v934
        %v1077 = vunpack.c.l.b16 %v935
        %v1078 = vunpack.c.l.b16 %v936
        %v1079 = vunpack.c.l.b16 %v937
        %v1080 = vunpack.c.l.b16 %v938
        %v1081 = vunpack.c.l.b16 %v939
        %v1082 = vunpack.c.l.b16 %v940
        %v1083 = vunpack.c.l.b16 %v941
        %v1084 = vunpack.c.l.b16 %v942
        %v1085 = vunpack.c.l.b16 %v943
        %v1086 = vunpack.c.l.b16 %v944
        %v1087 = vunpack.c.l.b16 %v945
        %v1088 = vunpack.c.l.b16 %v946
        %v1089 = vunpack.c.l.b16 %v947
        %v1090 = vunpack.c.l.b16 %v948
        %v1091 = vunpack.c.l.b16 %v949
        %v1092 = vunpack.c.l.b16 %v950
        %v1093 = vunpack.c.l.b16 %v951
        %v1094 = vunpack.c.l.b16 %v952
        %v1095 = vunpack.c.l.b16 %v953
        %v1096 = vunpack.c.l.b16 %v954
        %v1097 = vunpack.c.l.b16 %v955
        %v1098 = vunpack.c.l.b16 %v956
        %v1099 = vunpack.c.l.b16 %v957
        %v1100 = vunpack.c.l.b16 %v958
        %v1101 = vunpack.c.l.b16 %v959
        %v1102 = vunpack.c.l.b16 %v960
        %v1103 = vunpack.c.l.b16 %v961
        %v1104 = vunpack.c.l.b16 %v962
        %v1105 = vunpack.c.l.b16 %v963
        %v1106 = vunpack.c.l.b16 %v964
        %v1107 = vunpack.c.l.b16 %v965
        %v1108 = vunpack.c.l.b16 %v966
        %v1109 = vunpack.c.l.b16 %v967
        %v1110 = vunpack.c.l.b16 %v968
        %v1111 = vunpack.c.l.b16 %v969
        %v1112 = vunpack.c.l.b16 %v970
        %v1113 = vunpack.c.l.b16 %v971
        %v1114 = vunpack.c.l.b16 %v972
        %v1115 = vunpack.c.l.b16 %v973
        %v1116 = vunpack.c.l.b16 %v974
        %v1117 = vunpack.c.l.b16 %v975
        %v1118 = vunpack.c.l.b16 %v976
        %v1119 = vunpack.c.l.b16 %v977
        %v1120 = vunpack.c.l.b16 %v978
        %v1121 = vunpack.c.l.b16 %v979
        %v1122 = vunpack.c.l.b16 %v980
        %v1123 = vunpack.c.l.b16 %v981
        %v1124 = vunpack.c.l.b16 %v982
        %v1125 = vunpack.c.l.b16 %v983
        %v1126 = vunpack.c.l.b16 %v984
        %v1127 = vunpack.c.l.b16 %v985
        %v1128 = vunpack.c.l.b16 %v986
        %v1129 = vunpack.c.l.b16 %v987
        %v1130 = vpack.c.b16 %v1067, %v1066
        %v1131 = vpack.c.b16 %v1069, %v1068
        %v1132 = vpack.c.b16 %v1071, %v1070
        %v1133 = vpack.c.b16 %v1073, %v1072
        %v1134 = vpack.c.b16 %v1075, %v1074
        %v1135 = vpack.c.b16 %v1077, %v1076
        %v1136 = vpack.c.b16 %v1079, %v1078
        %v1137 = vpack.c.b16 %v1081, %v1080
        %v1138 = vpack.c.b16 %v1083, %v1082
        %v1139 = vpack.c.b16 %v1085, %v1084
        %v1140 = vpack.c.b16 %v1087, %v1086
        %v1141 = vpack.c.b16 %v1089, %v1088
        %v1142 = vpack.c.b16 %v1091, %v1090
        %v1143 = vpack.c.b16 %v1093, %v1092
        %v1144 = vpack.c.b16 %v1095, %v1094
        %v1145 = vpack.c.b16 %v1097, %v1096
        %v1146 = vpack.c.b16 %v1099, %v1098
        %v1147 = vpack.c.b16 %v1101, %v1100
        %v1148 = vpack.c.b16 %v1103, %v1102
        %v1149 = vpack.c.b16 %v1105, %v1104
        %v1150 = vpack.c.b16 %v1107, %v1106
        %v1151 = vpack.c.b16 %v1109, %v1108
        %v1152 = vpack.c.b16 %v1111, %v1110
        %v1153 = vpack.c.b16 %v1113, %v1112
        %v1154 = vpack.c.b16 %v1115, %v1114
        %v1155 = vpack.c.b16 %v1117, %v1116
        %v1156 = vpack.c.b16 %v1119, %v1118
        %v1157 = vpack.c.b16 %v1121, %v1120
        %v1158 = vpack.c.b16 %v1123, %v1122
        %v1159 = vpack.c.b16 %v1125, %v1124
        %v1160 = vpack.c.b16 %v1127, %v1126
        %v1161 = vpack.c.b16 %v1129, %v1128
        %1194 = vmatpush.bf16.msra.mxu0 %v1137
        %1195 = vmatpush.bf16.msra.mxu0 %v1136
        %1196 = vmatpush.bf16.msra.mxu0 %v1135
        %1197 = vmatpush.bf16.msra.mxu0 %v1134
        %1198 = vmatpush.bf16.msra.mxu0 %v1133
        %1199 = vmatpush.bf16.msra.mxu0 %v1132
        %1200 = vmatpush.bf16.msra.mxu0 %v1131
        %1201 = vmatpush.bf16.msra.mxu0 %v1130
        %1202 = vmatmul.bf16.gmra.mxu0 %v994
        %v1203 = vpop.f32.mrf.mxu0
        %v1204 = vadd.f32 0.0, %v1203
        %v1205 = vpop.f32.mrf.mxu0
        %1206 = vdwg.mxu0
        %1207 = vmatpush.bf16.msra.mxu0 %v1145
        %1208 = vmatpush.bf16.msra.mxu0 %v1144
        %1209 = vmatpush.bf16.msra.mxu0 %v1143
        %1210 = vmatpush.bf16.msra.mxu0 %v1142
        %1211 = vmatpush.bf16.msra.mxu0 %v1141
        %1212 = vmatpush.bf16.msra.mxu0 %v1140
        %1213 = vmatpush.bf16.msra.mxu0 %v1139
        %1214 = vmatpush.bf16.msra.mxu0 %v1138
        %1215 = vmatmul.bf16.gmra.mxu0 %v995
        %v1216 = vpop.f32.mrf.mxu0
        %v1217 = vadd.f32 %v1204, %v1216
        %v1218 = vpop.f32.mrf.mxu0
        %1219 = vdwg.mxu0
        %1220 = vmatpush.bf16.msra.mxu0 %v1153
        %1221 = vmatpush.bf16.msra.mxu0 %v1152
        %1222 = vmatpush.bf16.msra.mxu0 %v1151
        %1223 = vmatpush.bf16.msra.mxu0 %v1150
        %1224 = vmatpush.bf16.msra.mxu0 %v1149
        %1225 = vmatpush.bf16.msra.mxu0 %v1148
        %1226 = vmatpush.bf16.msra.mxu0 %v1147
        %1227 = vmatpush.bf16.msra.mxu0 %v1146
        %1228 = vmatmul.bf16.gmra.mxu0 %v996
        %v1229 = vpop.f32.mrf.mxu0
        %v1230 = vadd.f32 %v1217, %v1229
        %v1231 = vpop.f32.mrf.mxu0
        %1232 = vdwg.mxu0
        %1233 = vmatpush.bf16.msra.mxu0 %v1161
        %1234 = vmatpush.bf16.msra.mxu0 %v1160
        %1235 = vmatpush.bf16.msra.mxu0 %v1159
        %1236 = vmatpush.bf16.msra.mxu0 %v1158
        %1237 = vmatpush.bf16.msra.mxu0 %v1157
        %1238 = vmatpush.bf16.msra.mxu0 %v1156
        %1239 = vmatpush.bf16.msra.mxu0 %v1155
        %1240 = vmatpush.bf16.msra.mxu0 %v1154
        %1241 = vmatmul.bf16.gmra.mxu0 %v997
        %v1242 = vpop.f32.mrf.mxu0
        %v1243 = vadd.f32 %v1230, %v1242
        %v1244 = vpop.f32.mrf.mxu0
        %1245 = vdwg.mxu0
        %1246 = vst.msk [vmem:[%s365] sm:$0xff] %vm659, %v1243
        %s1247 = sand.u32 %s236, 1
        %s1248 = scalar_lea.sflag [#allocation7], %s1247
        %s1249 = sand.u32 %s236, 1
        %s1250 = smul.addr %s1249, 8
        %s1251 = scalar_lea.vmem [#allocation6], %s1250
        // Predicated region
        $region57: #{tpu_custom_call.1} parent=51 // pred_check
          %p1252 = pneg %p246
        $region58: #{tpu_custom_call.1} parent=51 // pred_check_branch
          %1254 = sbr.rel (%p1252) target = $region60
        $region59: #{tpu_custom_call.1} parent=51 // pred_region
          %1256 = vsyncadd %s1248, 0
          %s1257 = sadd.s32 %s27, %s26
          %s1258 = smul.addr %s1257, 8
          %s1259 = scalar_lea.hbm %s8, %s1258
          %s1261 = sshll.u32 %s1251, 4
          %s1262 = int_to_ptr.vmem [resolvable:$true] %s1261
          %s1263 = sshll.u32 %s1259, 4
          %s1264 = int_to_ptr.hbm [resolvable:$true] %s1263
          %1266 = dma.vmem_to_hbm [thread:$0]  %s1262, 128, %s1264, %s1248
        $region60: #{tpu_custom_call.1} parent=51 // pred_fallthru
          _
      $region52: #{tpu_custom_call.1} parent=5 // pred_fallthru
        _
      %p1267 = scmp.le.s32.totalorder 2, %s17
      // Predicated region
      $region61: #{tpu_custom_call.1} parent=5 // pred_check
        %p1268 = pneg %p1267
      $region62: #{tpu_custom_call.1} parent=5 // pred_check_branch
        %1270 = sbr.rel (%p1268) target = $region64
      $region63: #{tpu_custom_call.1} parent=5 // pred_region
        %s1271 = ssub.s32 %s17, 2
        // Predicated region
        $region65: #{tpu_custom_call.1} parent=63 // pred_check
          %p1272 = pneg %p252
        $region66: #{tpu_custom_call.1} parent=63 // pred_check_branch
          %1274 = sbr.rel (%p1272) target = $region68
        $region67: #{tpu_custom_call.1} parent=63 // pred_region
          %s1275 = sand.u32 %s237, 1
          %s1276 = scalar_lea.sflag [#allocation7], %s1275
          %s1277 = sand.u32 %s237, 1
          %s1278 = smul.addr %s1277, 8
          %s1279 = scalar_lea.vmem [#allocation6], %s1278
          %1281 = dma.done %s1276, 128
        $region68: #{tpu_custom_call.1} parent=63 // pred_fallthru
          _
      $region64: #{tpu_custom_call.1} parent=5 // pred_fallthru
        _
    $region6: #{tpu_custom_call.1} parent=1 // loop_footer
      %s21 = sadd.s32 1, %s17
    $region7: #{tpu_custom_call.1} parent=1 // loop_footer_branch
      %16 = sbr.rel target = $region3
    $region8: #{tpu_custom_call.1} parent=1 // loop_exit
      _
    %1282 = vsyncpa [#allocation7], 1
    %s1283 = scalar_lea.sflag [#allocation7], 1
    %1284 = vsyncpa %s1283, 1

// kernel: tpu_custom_call.1
$region0: #{tpu_custom_call.1}
  #allocation0 [shape = 'u32[]', space=smem, size = 0x4, offset = 0x4, fixed_abs, tag = 'smem constant byte address 0x4 - core index']
  #allocation1 [shape = 'u32[72,128]{1,0:T(1,128)}', space=vmem, size = 0x9000, scoped, tag = 'internal scratch']
  #allocation2 [shape = 'bf16[8,512]{1,0:T(8,128)(2,1)}', space=vmem, size = 0x2000, scoped, tag = 'scratch operand']
  #allocation3 [shape = 'bf16[8,512]{1,0:T(8,128)(2,1)}', space=vmem, size = 0x2000, scoped, tag = 'scratch operand']
  #allocation4 [shape = 'bf16[8,512]{1,0:T(8,128)(2,1)}', space=vmem, size = 0x2000, scoped, tag = 'scratch operand']
  #allocation5 [shape = 'bf16[8,512]{1,0:T(8,128)(2,1)}', space=vmem, size = 0x2000, scoped, tag = 'scratch operand']
  %s0 = inlined_call_operand.vmem [shape: bf16[2,8,32], index: 0, kind: input, shape index: {}]
  %s1 = inlined_call_operand.vmem [shape: bf16[2,8,32], index: 1, kind: input, shape index: {}]
  %s2 = inlined_call_operand.vmem [shape: bf16[2,8,32], index: 2, kind: input, shape index: {}]
  %s3 = inlined_call_operand.vmem [shape: s8[2,8,8], index: 3, kind: input, shape index: {}]
  %s4 = inlined_call_operand.vmem [shape: bf16[32,512], index: 4, kind: input, shape index: {}]
  %s5 = inlined_call_operand.vmem [shape: bf16[32,512], index: 5, kind: input, shape index: {}]
  %s6 = inlined_call_operand.vmem [shape: bf16[32,512], index: 6, kind: input, shape index: {}]
  %s7 = inlined_call_operand.vmem [shape: bf16[512,32], index: 7, kind: input, shape index: {}]
  %s8 = inlined_call_operand.hbm [shape: f32[2,8,32], index: 8, kind: output, shape index: {}]
  %s9 = sld [smem:[#allocation0]]
  $region69: #{tpu_custom_call.1} parent=0
    _
  %s11 = ssub.s32 1, %s9
  %s12 = scalar_select 0, %s11, %s9
  $region1: #{tpu_custom_call.1} parent=0
    #allocation6 [shape = 'u8[8192]{0}', space=vmem, size = 0x2000, scoped, tag = 'output window, operand 0']
    #allocation7 [shape = 's32[2]{0}', space=sflag, size = 0x8, scoped, tag = 'scoped memory for tpu_custom_call.1']
    %13 = vsyncpa [#allocation7], 0
    %s14 = scalar_lea.sflag [#allocation7], 1
    %15 = vsyncpa %s14, 0
    loop: start=0, step=1, limit=4
    $region2: #{tpu_custom_call.1} parent=1 // loop_pre_header
      _
    $region3: #{tpu_custom_call.1} parent=1 // loop_header
      %s17 = sphi 0, %s21
      %p18 = scmp.ge.s32.totalorder %s17, 4
      %s24 = sphi 0, %s36
      %s25 = sphi 0, %s32
      %s26 = sphi 0, %s24
      %s27 = sphi 0, %s25
      %s28 = sphi 0, %s26
      %s29 = sphi 0, %s27
      %s41 = sphi 0, %s43
      %s44 = sphi 0, %s41
      %s45 = sphi 0, %s44
      %s61 = sphi 0, %s45
      %s67 = sphi 0, %s69
      %s70 = sphi 0, %s67
      %s71 = sphi 0, %s70
      %s87 = sphi 0, %s71
      %s93 = sphi 0, %s95
      %s96 = sphi 0, %s93
      %s97 = sphi 0, %s96
      %s113 = sphi 0, %s97
      %s121 = sphi 0, %s123
      %s124 = sphi 0, %s121
      %s125 = sphi 0, %s124
      %s141 = sphi 0, %s125
      %s145 = sphi 0, %s145
      %s147 = sphi 0, %s145
      %s148 = sphi 0, %s147
      %s162 = sphi 0, %s148
      %s166 = sphi 0, %s166
      %s168 = sphi 0, %s166
      %s169 = sphi 0, %s168
      %s183 = sphi 0, %s169
      %s187 = sphi 0, %s187
      %s189 = sphi 0, %s187
      %s190 = sphi 0, %s189
      %s204 = sphi 0, %s190
      %s208 = sphi 0, %s208
      %s210 = sphi 0, %s208
      %s211 = sphi 0, %s210
      %s225 = sphi 0, %s211
      %s233 = sphi 0, %s235
      %s236 = sphi 0, %s233
      %s237 = sphi 0, %s236
      %s253 = sphi 0, %s237
    $region4: #{tpu_custom_call.1} parent=1 // loop_header_branch
      %20 = sbr.rel (%p18) target = $region8
    $region5: #{tpu_custom_call.1} parent=1 // loop_body
      %s22 = ssub.s32 %s17, 1
      %s23 = ssub.s32 %s17, 2
      %s30 = sadd.s32 1, %s25
      %p31 = scmp.ge.s32.totalorder %s30, 1
      %s32 = scalar_select %p31, 0, %s30
      %s33 = sadd.s32 1, %s24
      %s34 = scalar_select %p31, %s33, %s24
      %p35 = scmp.ge.s32.totalorder %s34, 2
      %s36 = scalar_select %p35, 0, %s34
      %s37 = ssub.s32 %s24, %s36
      %s38 = ssub.s32 %s25, %s32
      %s39 = sor.u32 %s37, %s38
      %p40 = scmp.eq.s32.totalorder %s39, 0
      %s42 = sadd.s32 %s41, 1
      %s43 = scalar_select %p40, %s41, %s42
      %p46 = pneg %p40
      %p47 = scmp.eq.s32.totalorder %s17, 1
      %p48 = por %p46, %p47
      %p49 = scmp.ne.s32.totalorder %s41, %s44
      %p50 = scmp.eq.s32.totalorder %s17, 0
      %p51 = por %p49, %p50
      %p52 = scmp.ne.s32.totalorder %s41, %s44
      %p53 = scmp.eq.s32.totalorder %s22, 1
      %p54 = por %p52, %p53
      %p55 = scmp.ne.s32.totalorder %s44, %s45
      %p56 = scmp.eq.s32.totalorder %s22, 0
      %p57 = por %p55, %p56
      %p58 = scmp.ne.s32.totalorder %s44, %s45
      %p59 = scmp.eq.s32.totalorder %s23, 1
      %p60 = por %p58, %p59
      %p62 = scmp.ne.s32.totalorder %s45, %s61
      %p63 = scmp.eq.s32.totalorder %s23, 0
      %p64 = por %p62, %p63
      %s65 = ssub.s32 %s24, %s36
      %p66 = scmp.eq.s32.totalorder %s65, 0
      %s68 = sadd.s32 %s67, 1
      %s69 = scalar_select %p66, %s67, %s68
      %p72 = pneg %p66
      %p73 = scmp.eq.s32.totalorder %s17, 1
      %p74 = por %p72, %p73
      %p75 = scmp.ne.s32.totalorder %s67, %s70
      %p76 = scmp.eq.s32.totalorder %s17, 0
      %p77 = por %p75, %p76
      %p78 = scmp.ne.s32.totalorder %s67, %s70
      %p79 = scmp.eq.s32.totalorder %s22, 1
      %p80 = por %p78, %p79
      %p81 = scmp.ne.s32.totalorder %s70, %s71
      %p82 = scmp.eq.s32.totalorder %s22, 0
      %p83 = por %p81, %p82
      %p84 = scmp.ne.s32.totalorder %s70, %s71
      %p85 = scmp.eq.s32.totalorder %s23, 1
      %p86 = por %p84, %p85
      %p88 = scmp.ne.s32.totalorder %s71, %s87
      %p89 = scmp.eq.s32.totalorder %s23, 0
      %p90 = por %p88, %p89
      %s91 = ssub.s32 %s24, %s36
      %p92 = scmp.eq.s32.totalorder %s91, 0
      %s94 = sadd.s32 %s93, 1
      %s95 = scalar_select %p92, %s93, %s94
      %p98 = pneg %p92
      %p99 = scmp.eq.s32.totalorder %s17, 1
      %p100 = por %p98, %p99
      %p101 = scmp.ne.s32.totalorder %s93, %s96
      %p102 = scmp.eq.s32.totalorder %s17, 0
      %p103 = por %p101, %p102
      %p104 = scmp.ne.s32.totalorder %s93, %s96
      %p105 = scmp.eq.s32.totalorder %s22, 1
      %p106 = por %p104, %p105
      %p107 = scmp.ne.s32.totalorder %s96, %s97
      %p108 = scmp.eq.s32.totalorder %s22, 0
      %p109 = por %p107, %p108
      %p110 = scmp.ne.s32.totalorder %s96, %s97
      %p111 = scmp.eq.s32.totalorder %s23, 1
      %p112 = por %p110, %p111
      %p114 = scmp.ne.s32.totalorder %s97, %s113
      %p115 = scmp.eq.s32.totalorder %s23, 0
      %p116 = por %p114, %p115
      %s117 = ssub.s32 %s24, %s36
      %s118 = ssub.s32 %s25, %s32
      %s119 = sor.u32 %s117, %s118
      %p120 = scmp.eq.s32.totalorder %s119, 0
      %s122 = sadd.s32 %s121, 1
      %s123 = scalar_select %p120, %s121, %s122
      %p126 = pneg %p120
      %p127 = scmp.eq.s32.totalorder %s17, 1
      %p128 = por %p126, %p127
      %p129 = scmp.ne.s32.totalorder %s121, %s124
      %p130 = scmp.eq.s32.totalorder %s17, 0
      %p131 = por %p129, %p130
      %p132 = scmp.ne.s32.totalorder %s121, %s124
      %p133 = scmp.eq.s32.totalorder %s22, 1
      %p134 = por %p132, %p133
      %p135 = scmp.ne.s32.totalorder %s124, %s125
      %p136 = scmp.eq.s32.totalorder %s22, 0
      %p137 = por %p135, %p136
      %p138 = scmp.ne.s32.totalorder %s124, %s125
      %p139 = scmp.eq.s32.totalorder %s23, 1
      %p140 = por %p138, %p139
      %p142 = scmp.ne.s32.totalorder %s125, %s141
      %p143 = scmp.eq.s32.totalorder %s23, 0
      %p144 = por %p142, %p143
      %s146 = sadd.s32 %s145, 1
      %p149 = scmp.eq.s32.totalorder %s17, 1
      %p150 = scmp.ne.s32.totalorder %s145, %s147
      %p151 = scmp.eq.s32.totalorder %s17, 0
      %p152 = por %p150, %p151
      %p153 = scmp.ne.s32.totalorder %s145, %s147
      %p154 = scmp.eq.s32.totalorder %s22, 1
      %p155 = por %p153, %p154
      %p156 = scmp.ne.s32.totalorder %s147, %s148
      %p157 = scmp.eq.s32.totalorder %s22, 0
      %p158 = por %p156, %p157
      %p159 = scmp.ne.s32.totalorder %s147, %s148
      %p160 = scmp.eq.s32.totalorder %s23, 1
      %p161 = por %p159, %p160
      %p163 = scmp.ne.s32.totalorder %s148, %s162
      %p164 = scmp.eq.s32.totalorder %s23, 0
      %p165 = por %p163, %p164
      %s167 = sadd.s32 %s166, 1
      %p170 = scmp.eq.s32.totalorder %s17, 1
      %p171 = scmp.ne.s32.totalorder %s166, %s168
      %p172 = scmp.eq.s32.totalorder %s17, 0
      %p173 = por %p171, %p172
      %p174 = scmp.ne.s32.totalorder %s166, %s168
      %p175 = scmp.eq.s32.totalorder %s22, 1
      %p176 = por %p174, %p175
      %p177 = scmp.ne.s32.totalorder %s168, %s169
      %p178 = scmp.eq.s32.totalorder %s22, 0
      %p179 = por %p177, %p178
      %p180 = scmp.ne.s32.totalorder %s168, %s169
      %p181 = scmp.eq.s32.totalorder %s23, 1
      %p182 = por %p180, %p181
      %p184 = scmp.ne.s32.totalorder %s169, %s183
      %p185 = scmp.eq.s32.totalorder %s23, 0
      %p186 = por %p184, %p185
      %s188 = sadd.s32 %s187, 1
      %p191 = scmp.eq.s32.totalorder %s17, 1
      %p192 = scmp.ne.s32.totalorder %s187, %s189
      %p193 = scmp.eq.s32.totalorder %s17, 0
      %p194 = por %p192, %p193
      %p195 = scmp.ne.s32.totalorder %s187, %s189
      %p196 = scmp.eq.s32.totalorder %s22, 1
      %p197 = por %p195, %p196
      %p198 = scmp.ne.s32.totalorder %s189, %s190
      %p199 = scmp.eq.s32.totalorder %s22, 0
      %p200 = por %p198, %p199
      %p201 = scmp.ne.s32.totalorder %s189, %s190
      %p202 = scmp.eq.s32.totalorder %s23, 1
      %p203 = por %p201, %p202
      %p205 = scmp.ne.s32.totalorder %s190, %s204
      %p206 = scmp.eq.s32.totalorder %s23, 0
      %p207 = por %p205, %p206
      %s209 = sadd.s32 %s208, 1
      %p212 = scmp.eq.s32.totalorder %s17, 1
      %p213 = scmp.ne.s32.totalorder %s208, %s210
      %p214 = scmp.eq.s32.totalorder %s17, 0
      %p215 = por %p213, %p214
      %p216 = scmp.ne.s32.totalorder %s208, %s210
      %p217 = scmp.eq.s32.totalorder %s22, 1
      %p218 = por %p216, %p217
      %p219 = scmp.ne.s32.totalorder %s210, %s211
      %p220 = scmp.eq.s32.totalorder %s22, 0
      %p221 = por %p219, %p220
      %p222 = scmp.ne.s32.totalorder %s210, %s211
      %p223 = scmp.eq.s32.totalorder %s23, 1
      %p224 = por %p222, %p223
      %p226 = scmp.ne.s32.totalorder %s211, %s225
      %p227 = scmp.eq.s32.totalorder %s23, 0
      %p228 = por %p226, %p227
      %s229 = ssub.s32 %s24, %s36
      %s230 = ssub.s32 %s25, %s32
      %s231 = sor.u32 %s229, %s230
      %p232 = scmp.eq.s32.totalorder %s231, 0
      %s234 = sadd.s32 %s233, 1
      %s235 = scalar_select %p232, %s233, %s234
      %p238 = pneg %p232
      %p239 = scmp.eq.s32.totalorder %s17, 1
      %p240 = por %p238, %p239
      %p241 = scmp.ne.s32.totalorder %s233, %s236
      %p242 = scmp.eq.s32.totalorder %s17, 0
      %p243 = por %p241, %p242
      %p244 = scmp.ne.s32.totalorder %s233, %s236
      %p245 = scmp.eq.s32.totalorder %s22, 1
      %p246 = por %p244, %p245
      %p247 = scmp.ne.s32.totalorder %s236, %s237
      %p248 = scmp.eq.s32.totalorder %s22, 0
      %p249 = por %p247, %p248
      %p250 = scmp.ne.s32.totalorder %s236, %s237
      %p251 = scmp.eq.s32.totalorder %s23, 1
      %p252 = por %p250, %p251
      %p254 = scmp.ne.s32.totalorder %s237, %s253
      %p255 = scmp.eq.s32.totalorder %s23, 0
      %p256 = por %p254, %p255
      %p257 = scmp.le.s32.totalorder 1, %s17
      %p258 = scmp.lt.s32.totalorder %s17, 3
      %p259 = pnand %p257, %p258
      %p260 = pneg %p259
      // Predicated region
      $region9: #{tpu_custom_call.1} parent=5 // pred_check
        _
      $region10: #{tpu_custom_call.1} parent=5 // pred_check_branch
        %262 = sbr.rel (%p259) target = $region12
      $region11: #{tpu_custom_call.1} parent=5 // pred_region
        %s263 = ssub.s32 %s17, 1
        // Predicated region
        $region13: #{tpu_custom_call.1} parent=11 // pred_check
          %p264 = pneg %p158
        $region14: #{tpu_custom_call.1} parent=11 // pred_check_branch
          %266 = sbr.rel (%p264) target = $region16
        $region15: #{tpu_custom_call.1} parent=11 // pred_region
          _
        $region16: #{tpu_custom_call.1} parent=11 // pred_fallthru
          _
        // Predicated region
        $region17: #{tpu_custom_call.1} parent=11 // pred_check
          %p267 = pneg %p179
        $region18: #{tpu_custom_call.1} parent=11 // pred_check_branch
          %269 = sbr.rel (%p267) target = $region20
        $region19: #{tpu_custom_call.1} parent=11 // pred_region
          _
        $region20: #{tpu_custom_call.1} parent=11 // pred_fallthru
          _
        // Predicated region
        $region21: #{tpu_custom_call.1} parent=11 // pred_check
          %p270 = pneg %p200
        $region22: #{tpu_custom_call.1} parent=11 // pred_check_branch
          %272 = sbr.rel (%p270) target = $region24
        $region23: #{tpu_custom_call.1} parent=11 // pred_region
          _
        $region24: #{tpu_custom_call.1} parent=11 // pred_fallthru
          _
        // Predicated region
        $region25: #{tpu_custom_call.1} parent=11 // pred_check
          %p273 = pneg %p221
        $region26: #{tpu_custom_call.1} parent=11 // pred_check_branch
          %275 = sbr.rel (%p273) target = $region28
        $region27: #{tpu_custom_call.1} parent=11 // pred_region
          _
        $region28: #{tpu_custom_call.1} parent=11 // pred_fallthru
          _
      $region12: #{tpu_custom_call.1} parent=5 // pred_fallthru
        _
      %p276 = scmp.lt.s32.totalorder %s17, 2
      // Predicated region
      $region29: #{tpu_custom_call.1} parent=5 // pred_check
        %p277 = pneg %p276
      $region30: #{tpu_custom_call.1} parent=5 // pred_check_branch
        %279 = sbr.rel (%p277) target = $region32
      $region31: #{tpu_custom_call.1} parent=5 // pred_region
        // Predicated region
        $region33: #{tpu_custom_call.1} parent=31 // pred_check
          %p280 = pneg %p51
        $region34: #{tpu_custom_call.1} parent=31 // pred_check_branch
          %282 = sbr.rel (%p280) target = $region36
        $region35: #{tpu_custom_call.1} parent=31 // pred_region
          %p283 = scmp.lt.s32.totalorder %s24, 1
          %s284 = scalar_select %p283, %s24, 1
          %p285 = scmp.lt.s32.totalorder %s25, 0
          %s286 = scalar_select %p285, %s25, 0
          %s287 = sadd.s32 %s286, %s284
          %s288 = smul.addr %s287, 4
          %s289 = scalar_lea.vmem %s0, %s288
        $region36: #{tpu_custom_call.1} parent=31 // pred_fallthru
          _
        // Predicated region
        $region37: #{tpu_custom_call.1} parent=31 // pred_check
          %p290 = pneg %p77
        $region38: #{tpu_custom_call.1} parent=31 // pred_check_branch
          %292 = sbr.rel (%p290) target = $region40
        $region39: #{tpu_custom_call.1} parent=31 // pred_region
          %p293 = scmp.lt.s32.totalorder %s24, 1
          %s294 = scalar_select %p293, %s24, 1
          %s295 = smul.addr %s294, 4
          %s296 = scalar_lea.vmem %s1, %s295
        $region40: #{tpu_custom_call.1} parent=31 // pred_fallthru
          _
        // Predicated region
        $region41: #{tpu_custom_call.1} parent=31 // pred_check
          %p297 = pneg %p103
        $region42: #{tpu_custom_call.1} parent=31 // pred_check_branch
          %299 = sbr.rel (%p297) target = $region44
        $region43: #{tpu_custom_call.1} parent=31 // pred_region
          %p300 = scmp.lt.s32.totalorder %s24, 1
          %s301 = scalar_select %p300, %s24, 1
          %s302 = smul.addr %s301, 4
          %s303 = scalar_lea.vmem %s2, %s302
        $region44: #{tpu_custom_call.1} parent=31 // pred_fallthru
          _
        // Predicated region
        $region45: #{tpu_custom_call.1} parent=31 // pred_check
          %p304 = pneg %p131
        $region46: #{tpu_custom_call.1} parent=31 // pred_check_branch
          %306 = sbr.rel (%p304) target = $region48
        $region47: #{tpu_custom_call.1} parent=31 // pred_region
          %p307 = scmp.lt.s32.totalorder %s24, 1
          %s308 = scalar_select %p307, %s24, 1
          %p309 = scmp.lt.s32.totalorder %s25, 0
          %s310 = scalar_select %p309, %s25, 0
          %s311 = sadd.s32 %s310, %s308
          %s312 = smul.addr %s311, 2
          %s313 = scalar_lea.vmem %s3, %s312
        $region48: #{tpu_custom_call.1} parent=31 // pred_fallthru
          _
      $region32: #{tpu_custom_call.1} parent=5 // pred_fallthru
        _
      %p314 = scmp.le.s32.totalorder 1, %s17
      %p315 = scmp.lt.s32.totalorder %s17, 3
      %p316 = pnand %p314, %p315
      %p317 = pneg %p316
      // Predicated region
      $region49: #{tpu_custom_call.1} parent=5 // pred_check
        _
      $region50: #{tpu_custom_call.1} parent=5 // pred_check_branch
        %319 = sbr.rel (%p316) target = $region52
      $region51: #{tpu_custom_call.1} parent=5 // pred_region
        %s320 = ssub.s32 %s17, 1
        %p321 = scmp.lt.s32.totalorder %s26, 1
        %s322 = scalar_select %p321, %s26, 1
        %p323 = scmp.lt.s32.totalorder %s27, 0
        %s324 = scalar_select %p323, %s27, 0
        %s325 = sadd.s32 %s324, %s322
        %s326 = smul.addr %s325, 4
        %s327 = scalar_lea.vmem %s0, %s326
        %p328 = pneg %p57
        %p329 = pneg %p54
        %p330 = scmp.lt.s32.totalorder %s26, 1
        %s331 = scalar_select %p330, %s26, 1
        %s332 = smul.addr %s331, 4
        %s333 = scalar_lea.vmem %s1, %s332
        %p334 = pneg %p83
        %p335 = pneg %p80
        %p336 = scmp.lt.s32.totalorder %s26, 1
        %s337 = scalar_select %p336, %s26, 1
        %s338 = smul.addr %s337, 4
        %s339 = scalar_lea.vmem %s2, %s338
        %p340 = pneg %p109
        %p341 = pneg %p106
        %p342 = scmp.lt.s32.totalorder %s26, 1
        %s343 = scalar_select %p342, %s26, 1
        %p344 = scmp.lt.s32.totalorder %s27, 0
        %s345 = scalar_select %p344, %s27, 0
        %s346 = sadd.s32 %s345, %s343
        %s347 = smul.addr %s346, 2
        %s348 = scalar_lea.vmem %s3, %s347
        %p349 = pneg %p137
        %p350 = pneg %p134
        %p351 = pneg %p158
        %p352 = pneg %p155
        %p353 = pneg %p179
        %p354 = pneg %p176
        %p355 = pneg %p200
        %p356 = pneg %p197
        %p357 = pneg %p221
        %p358 = pneg %p218
        %p359 = pneg %p249
        %p360 = pneg %p246
        %s361 = sand.u32 %s236, 1
        %s362 = scalar_lea.sflag [#allocation7], %s361
        %s363 = sand.u32 %s236, 1
        %s364 = smul.addr %s363, 8
        %s365 = scalar_lea.vmem [#allocation6], %s364
        %p366 = scmp.lt.s32.totalorder %s26, 1
        %s367 = scalar_select %p366, %s26, 1
        %p368 = scmp.lt.s32.totalorder %s27, 0
        %s369 = scalar_select %p368, %s27, 0
        %s370 = sadd.s32 %s369, %s367
        %s371 = smul.addr %s370, 4
        %s372 = scalar_lea.vmem %s0, %s371
        %p373 = scmp.lt.s32.totalorder %s26, 1
        %s374 = scalar_select %p373, %s26, 1
        %s375 = smul.addr %s374, 4
        %s376 = scalar_lea.vmem %s1, %s375
        %p377 = scmp.lt.s32.totalorder %s26, 1
        %s378 = scalar_select %p377, %s26, 1
        %s379 = smul.addr %s378, 4
        %s380 = scalar_lea.vmem %s2, %s379
        %p381 = scmp.lt.s32.totalorder %s26, 1
        %s382 = scalar_select %p381, %s26, 1
        %p383 = scmp.lt.s32.totalorder %s27, 0
        %s384 = scalar_select %p383, %s27, 0
        %s385 = sadd.s32 %s384, %s382
        %s386 = smul.addr %s385, 2
        %s387 = scalar_lea.vmem %s3, %s386
        %p389 = scmp.eq.s32.totalorder %s27, 0
        // Predicated region
        $region53: #{tpu_custom_call.1} parent=51 // pred_check
          %p390 = pneg %p389
        $region54: #{tpu_custom_call.1} parent=51 // pred_check_branch
          %392 = sbr.rel (%p390) target = $region56
        $region55: #{tpu_custom_call.1} parent=51 // pred_region
          %v393 = vld [vmem:[%s376] sm:$0xf]
          %v394 = vld [vmem:[%s5] sm:$0xff]
          %v395 = vld [vmem:[%s5 + $0x8] sm:$0xff]
          %v396 = vld [vmem:[%s5 + $0x10] sm:$0xff]
          %v397 = vld [vmem:[%s5 + $0x18] sm:$0xff]
          %v398 = vld [vmem:[%s5 + $0x20] sm:$0xff]
          %v399 = vld [vmem:[%s5 + $0x28] sm:$0xff]
          %v400 = vld [vmem:[%s5 + $0x30] sm:$0xff]
          %v401 = vld [vmem:[%s5 + $0x38] sm:$0xff]
          %v410 = vunpack.c.l.b16 %v394
          %v411 = vunpack.c.h.b16 %v394
          %v412 = vunpack.c.l.b16 %v395
          %v413 = vunpack.c.h.b16 %v395
          %v414 = vunpack.c.l.b16 %v396
          %v415 = vunpack.c.h.b16 %v396
          %v416 = vunpack.c.l.b16 %v397
          %v417 = vunpack.c.h.b16 %v397
          %v418 = vunpack.c.l.b16 %v398
          %v419 = vunpack.c.h.b16 %v398
          %v420 = vunpack.c.l.b16 %v399
          %v421 = vunpack.c.h.b16 %v399
          %v422 = vunpack.c.l.b16 %v400
          %v423 = vunpack.c.h.b16 %v400
          %v424 = vunpack.c.l.b16 %v401
          %v425 = vunpack.c.h.b16 %v401
          %v426 = vpack.c.b16 %v414, %v410
          %v427 = vpack.c.b16 %v415, %v411
          %v428 = vpack.c.b16 %v416, %v412
          %v429 = vpack.c.b16 %v417, %v413
          %v430 = vpack.c.b16 %v422, %v418
          %v431 = vpack.c.b16 %v423, %v419
          %v432 = vpack.c.b16 %v424, %v420
          %v433 = vpack.c.b16 %v425, %v421
          %vm442 = vcmask 261120
          %v444 = vsel %vm442, %v393, 0
          %446 = vmatpush.bf16.msra.mxu0 0
          %447 = vmatpush.bf16.msra.mxu0 0
          %448 = vmatpush.bf16.msra.mxu0 0
          %449 = vmatpush.bf16.msra.mxu0 0
          %450 = vmatpush.bf16.msra.mxu0 0
          %451 = vmatpush.bf16.msra.mxu0 0
          %452 = vmatpush.bf16.msra.mxu0 %v430
          %453 = vmatpush.bf16.msra.mxu0 %v426
          %454 = vmatmul.bf16.gmra.mxu0 %v444
          %v455 = vpop.f32.mrf.mxu0
          %v456 = vadd.f32 0.0, %v455
          %v457 = vpop.f32.mrf.mxu0
          %458 = vdwg.mxu0
          %459 = vmatpush.bf16.msra.mxu0 0
          %460 = vmatpush.bf16.msra.mxu0 0
          %461 = vmatpush.bf16.msra.mxu0 0
          %462 = vmatpush.bf16.msra.mxu0 0
          %463 = vmatpush.bf16.msra.mxu0 0
          %464 = vmatpush.bf16.msra.mxu0 0
          %465 = vmatpush.bf16.msra.mxu0 %v431
          %466 = vmatpush.bf16.msra.mxu0 %v427
          %467 = vmatmul.bf16.gmra.mxu0 %v444
          %v468 = vpop.f32.mrf.mxu0
          %v469 = vadd.f32 0.0, %v468
          %v470 = vpop.f32.mrf.mxu0
          %471 = vdwg.mxu0
          %472 = vmatpush.bf16.msra.mxu0 0
          %473 = vmatpush.bf16.msra.mxu0 0
          %474 = vmatpush.bf16.msra.mxu0 0
          %475 = vmatpush.bf16.msra.mxu0 0
          %476 = vmatpush.bf16.msra.mxu0 0
          %477 = vmatpush.bf16.msra.mxu0 0
          %478 = vmatpush.bf16.msra.mxu0 %v432
          %479 = vmatpush.bf16.msra.mxu0 %v428
          %480 = vmatmul.bf16.gmra.mxu0 %v444
          %v481 = vpop.f32.mrf.mxu0
          %v482 = vadd.f32 0.0, %v481
          %v483 = vpop.f32.mrf.mxu0
          %484 = vdwg.mxu0
          %485 = vmatpush.bf16.msra.mxu0 0
          %486 = vmatpush.bf16.msra.mxu0 0
          %487 = vmatpush.bf16.msra.mxu0 0
          %488 = vmatpush.bf16.msra.mxu0 0
          %489 = vmatpush.bf16.msra.mxu0 0
          %490 = vmatpush.bf16.msra.mxu0 0
          %491 = vmatpush.bf16.msra.mxu0 %v433
          %492 = vmatpush.bf16.msra.mxu0 %v429
          %493 = vmatmul.bf16.gmra.mxu0 %v444
          %v494 = vpop.f32.mrf.mxu0
          %v495 = vadd.f32 0.0, %v494
          %v496 = vpop.f32.mrf.mxu0
          %497 = vdwg.mxu0
          %v498 = vpack.c.bf16 %v469, %v456
          %v499 = vpack.c.bf16 %v495, %v482
          %500 = vst [vmem:[#allocation3] sm:$0xff] %v498
          %501 = vst [vmem:[#allocation3 + $0x8] sm:$0xff] %v499
          %v502 = vld [vmem:[%s380] sm:$0xf]
          %v503 = vld [vmem:[%s6] sm:$0xff]
          %v504 = vld [vmem:[%s6 + $0x8] sm:$0xff]
          %v505 = vld [vmem:[%s6 + $0x10] sm:$0xff]
          %v506 = vld [vmem:[%s6 + $0x18] sm:$0xff]
          %v507 = vld [vmem:[%s6 + $0x20] sm:$0xff]
          %v508 = vld [vmem:[%s6 + $0x28] sm:$0xff]
          %v509 = vld [vmem:[%s6 + $0x30] sm:$0xff]
          %v510 = vld [vmem:[%s6 + $0x38] sm:$0xff]
          %v519 = vunpack.c.l.b16 %v503
          %v520 = vunpack.c.h.b16 %v503
          %v521 = vunpack.c.l.b16 %v504
          %v522 = vunpack.c.h.b16 %v504
          %v523 = vunpack.c.l.b16 %v505
          %v524 = vunpack.c.h.b16 %v505
          %v525 = vunpack.c.l.b16 %v506
          %v526 = vunpack.c.h.b16 %v506
          %v527 = vunpack.c.l.b16 %v507
          %v528 = vunpack.c.h.b16 %v507
          %v529 = vunpack.c.l.b16 %v508
          %v530 = vunpack.c.h.b16 %v508
          %v531 = vunpack.c.l.b16 %v509
          %v532 = vunpack.c.h.b16 %v509
          %v533 = vunpack.c.l.b16 %v510
          %v534 = vunpack.c.h.b16 %v510
          %v535 = vpack.c.b16 %v523, %v519
          %v536 = vpack.c.b16 %v524, %v520
          %v537 = vpack.c.b16 %v525, %v521
          %v538 = vpack.c.b16 %v526, %v522
          %v539 = vpack.c.b16 %v531, %v527
          %v540 = vpack.c.b16 %v532, %v528
          %v541 = vpack.c.b16 %v533, %v529
          %v542 = vpack.c.b16 %v534, %v530
          %v552 = vsel %vm442, %v502, 0
          %554 = vmatpush.bf16.msra.mxu0 0
          %555 = vmatpush.bf16.msra.mxu0 0
          %556 = vmatpush.bf16.msra.mxu0 0
          %557 = vmatpush.bf16.msra.mxu0 0
          %558 = vmatpush.bf16.msra.mxu0 0
          %559 = vmatpush.bf16.msra.mxu0 0
          %560 = vmatpush.bf16.msra.mxu0 %v539
          %561 = vmatpush.bf16.msra.mxu0 %v535
          %562 = vmatmul.bf16.gmra.mxu0 %v552
          %v563 = vpop.f32.mrf.mxu0
          %v564 = vadd.f32 0.0, %v563
          %v565 = vpop.f32.mrf.mxu0
          %566 = vdwg.mxu0
          %567 = vmatpush.bf16.msra.mxu0 0
          %568 = vmatpush.bf16.msra.mxu0 0
          %569 = vmatpush.bf16.msra.mxu0 0
          %570 = vmatpush.bf16.msra.mxu0 0
          %571 = vmatpush.bf16.msra.mxu0 0
          %572 = vmatpush.bf16.msra.mxu0 0
          %573 = vmatpush.bf16.msra.mxu0 %v540
          %574 = vmatpush.bf16.msra.mxu0 %v536
          %575 = vmatmul.bf16.gmra.mxu0 %v552
          %v576 = vpop.f32.mrf.mxu0
          %v577 = vadd.f32 0.0, %v576
          %v578 = vpop.f32.mrf.mxu0
          %579 = vdwg.mxu0
          %580 = vmatpush.bf16.msra.mxu0 0
          %581 = vmatpush.bf16.msra.mxu0 0
          %582 = vmatpush.bf16.msra.mxu0 0
          %583 = vmatpush.bf16.msra.mxu0 0
          %584 = vmatpush.bf16.msra.mxu0 0
          %585 = vmatpush.bf16.msra.mxu0 0
          %586 = vmatpush.bf16.msra.mxu0 %v541
          %587 = vmatpush.bf16.msra.mxu0 %v537
          %588 = vmatmul.bf16.gmra.mxu0 %v552
          %v589 = vpop.f32.mrf.mxu0
          %v590 = vadd.f32 0.0, %v589
          %v591 = vpop.f32.mrf.mxu0
          %592 = vdwg.mxu0
          %593 = vmatpush.bf16.msra.mxu0 0
          %594 = vmatpush.bf16.msra.mxu0 0
          %595 = vmatpush.bf16.msra.mxu0 0
          %596 = vmatpush.bf16.msra.mxu0 0
          %597 = vmatpush.bf16.msra.mxu0 0
          %598 = vmatpush.bf16.msra.mxu0 0
          %599 = vmatpush.bf16.msra.mxu0 %v542
          %600 = vmatpush.bf16.msra.mxu0 %v538
          %601 = vmatmul.bf16.gmra.mxu0 %v552
          %v602 = vpop.f32.mrf.mxu0
          %v603 = vadd.f32 0.0, %v602
          %v604 = vpop.f32.mrf.mxu0
          %605 = vdwg.mxu0
          %v606 = vpack.c.bf16 %v577, %v564
          %v607 = vpack.c.bf16 %v603, %v590
          %608 = vst [vmem:[#allocation4] sm:$0xff] %v606
          %609 = vst [vmem:[#allocation4 + $0x8] sm:$0xff] %v607
        $region56: #{tpu_custom_call.1} parent=51 // pred_fallthru
          _
        %v610 = vld [vmem:[%s372] sm:$0xf]
        %v611 = vld [vmem:[%s4] sm:$0xff]
        %v612 = vld [vmem:[%s4 + $0x8] sm:$0xff]
        %v613 = vld [vmem:[%s4 + $0x10] sm:$0xff]
        %v614 = vld [vmem:[%s4 + $0x18] sm:$0xff]
        %v615 = vld [vmem:[%s4 + $0x20] sm:$0xff]
        %v616 = vld [vmem:[%s4 + $0x28] sm:$0xff]
        %v617 = vld [vmem:[%s4 + $0x30] sm:$0xff]
        %v618 = vld [vmem:[%s4 + $0x38] sm:$0xff]
        %v627 = vunpack.c.l.b16 %v611
        %v628 = vunpack.c.h.b16 %v611
        %v629 = vunpack.c.l.b16 %v612
        %v630 = vunpack.c.h.b16 %v612
        %v631 = vunpack.c.l.b16 %v613
        %v632 = vunpack.c.h.b16 %v613
        %v633 = vunpack.c.l.b16 %v614
        %v634 = vunpack.c.h.b16 %v614
        %v635 = vunpack.c.l.b16 %v615
        %v636 = vunpack.c.h.b16 %v615
        %v637 = vunpack.c.l.b16 %v616
        %v638 = vunpack.c.h.b16 %v616
        %v639 = vunpack.c.l.b16 %v617
        %v640 = vunpack.c.h.b16 %v617
        %v641 = vunpack.c.l.b16 %v618
        %v642 = vunpack.c.h.b16 %v618
        %v643 = vpack.c.b16 %v631, %v627
        %v644 = vpack.c.b16 %v632, %v628
        %v645 = vpack.c.b16 %v633, %v629
        %v646 = vpack.c.b16 %v634, %v630
        %v647 = vpack.c.b16 %v639, %v635
        %v648 = vpack.c.b16 %v640, %v636
        %v649 = vpack.c.b16 %v641, %v637
        %v650 = vpack.c.b16 %v642, %v638
        %vm659 = vcmask 261120
        %v661 = vsel %vm659, %v610, 0
        %663 = vmatpush.bf16.msra.mxu0 0
        %664 = vmatpush.bf16.msra.mxu0 0
        %665 = vmatpush.bf16.msra.mxu0 0
        %666 = vmatpush.bf16.msra.mxu0 0
        %667 = vmatpush.bf16.msra.mxu0 0
        %668 = vmatpush.bf16.msra.mxu0 0
        %669 = vmatpush.bf16.msra.mxu0 %v647
        %670 = vmatpush.bf16.msra.mxu0 %v643
        %671 = vmatmul.bf16.gmra.mxu0 %v661
        %v672 = vpop.f32.mrf.mxu0
        %v673 = vadd.f32 0.0, %v672
        %v674 = vpop.f32.mrf.mxu0
        %675 = vdwg.mxu0
        %676 = vmatpush.bf16.msra.mxu0 0
        %677 = vmatpush.bf16.msra.mxu0 0
        %678 = vmatpush.bf16.msra.mxu0 0
        %679 = vmatpush.bf16.msra.mxu0 0
        %680 = vmatpush.bf16.msra.mxu0 0
        %681 = vmatpush.bf16.msra.mxu0 0
        %682 = vmatpush.bf16.msra.mxu0 %v648
        %683 = vmatpush.bf16.msra.mxu0 %v644
        %684 = vmatmul.bf16.gmra.mxu0 %v661
        %v685 = vpop.f32.mrf.mxu0
        %v686 = vadd.f32 0.0, %v685
        %v687 = vpop.f32.mrf.mxu0
        %688 = vdwg.mxu0
        %689 = vmatpush.bf16.msra.mxu0 0
        %690 = vmatpush.bf16.msra.mxu0 0
        %691 = vmatpush.bf16.msra.mxu0 0
        %692 = vmatpush.bf16.msra.mxu0 0
        %693 = vmatpush.bf16.msra.mxu0 0
        %694 = vmatpush.bf16.msra.mxu0 0
        %695 = vmatpush.bf16.msra.mxu0 %v649
        %696 = vmatpush.bf16.msra.mxu0 %v645
        %697 = vmatmul.bf16.gmra.mxu0 %v661
        %v698 = vpop.f32.mrf.mxu0
        %v699 = vadd.f32 0.0, %v698
        %v700 = vpop.f32.mrf.mxu0
        %701 = vdwg.mxu0
        %702 = vmatpush.bf16.msra.mxu0 0
        %703 = vmatpush.bf16.msra.mxu0 0
        %704 = vmatpush.bf16.msra.mxu0 0
        %705 = vmatpush.bf16.msra.mxu0 0
        %706 = vmatpush.bf16.msra.mxu0 0
        %707 = vmatpush.bf16.msra.mxu0 0
        %708 = vmatpush.bf16.msra.mxu0 %v650
        %709 = vmatpush.bf16.msra.mxu0 %v646
        %710 = vmatmul.bf16.gmra.mxu0 %v661
        %v711 = vpop.f32.mrf.mxu0
        %v712 = vadd.f32 0.0, %v711
        %v713 = vpop.f32.mrf.mxu0
        %714 = vdwg.mxu0
        %v715 = vpack.c.bf16 %v686, %v673
        %v716 = vpack.c.bf16 %v712, %v699
        %717 = vst [vmem:[#allocation2] sm:$0xff] %v715
        %718 = vst [vmem:[#allocation2 + $0x8] sm:$0xff] %v716
        %v719 = vld [vmem:[%s387] sm:$0x3]
        %v720 = vunpack.c.0.s8 %v719
        %v721 = vcvt.s32.f32 %v720
        %v722 = vsub.f32 1.0, %v721
        %v723 = vmul.f32 %v722, -100000.0
        %v724 = vld [vmem:[#allocation2] sm:$0xf]
        %v725 = vld [vmem:[#allocation3] sm:$0xf]
        %v726 = vld [vmem:[#allocation4] sm:$0xf]
        %727 = vmatpush.bf16.xpose.msra.mxu0 0
        %728 = vmatpush.bf16.xpose.msra.mxu0 0
        %729 = vmatpush.bf16.xpose.msra.mxu0 0
        %730 = vmatpush.bf16.xpose.msra.mxu0 0
        %731 = vmatpush.bf16.xpose.msra.mxu0 0
        %732 = vmatpush.bf16.xpose.msra.mxu0 0
        %733 = vmatpush.bf16.xpose.msra.mxu0 0
        %734 = vmatpush.bf16.xpose.msra.mxu0 %v725
        %735 = vmatmul.bf16.gmra.mxu0 %v724
        %v736 = vpop.f32.mrf.mxu0
        %v737 = vadd.f32 %v723, %v736
        %v738 = vpop.f32.mrf.mxu0
        %739 = vdwg.mxu0
        %vm740 = vcmask 64512
        %v741 = vsel %vm740, %v737, -inf
        %742 = vmax.xlane.f32.xlu0 %v741
        %v743 = vpop.xlane.xlu0 %742
        %v744 = vsub.f32 %v737, %v743
        %v745 = vmul.f32 %v744, 1.442695
        %v746 = vpow.pop %v745
        %v747 = vsel %vm740, %v746, 0.0
        %748 = vadd.xlane.f32.xlu0 %v747
        %v749 = vpop.xlane.xlu0 %748
        %v750 = vrcp.pop %v749
        %v751 = vpack.c.bf16 %v746, %v746
        %v753 = vsel %vm740, %v751, 0
        %vm755 = vcmask 1043456
        %v757 = vsel %vm755, %v726, 0
        %759 = vmatpush.bf16.msra.mxu0 0
        %760 = vmatpush.bf16.msra.mxu0 0
        %761 = vmatpush.bf16.msra.mxu0 0
        %762 = vmatpush.bf16.msra.mxu0 0
        %763 = vmatpush.bf16.msra.mxu0 0
        %764 = vmatpush.bf16.msra.mxu0 0
        %765 = vmatpush.bf16.msra.mxu0 0
        %766 = vmatpush.bf16.msra.mxu0 %v757
        %767 = vmatmul.bf16.gmra.mxu0 %v753
        %v768 = vpop.f32.mrf.mxu0
        %v769 = vadd.f32 0.0, %v768
        %v770 = vpop.f32.mrf.mxu0
        %771 = vdwg.mxu0
        %v772 = vmul.f32 %v769, %v750
        %v773 = vpack.c.bf16 %v772, %v772
        %774 = vst [vmem:[#allocation5] sm:$0xf] %v773
        %v775 = vld [vmem:[#allocation2 + $0x4] sm:$0xf]
        %v776 = vld [vmem:[#allocation3 + $0x4] sm:$0xf]
        %v777 = vld [vmem:[#allocation4 + $0x4] sm:$0xf]
        %778 = vmatpush.bf16.xpose.msra.mxu0 0
        %779 = vmatpush.bf16.xpose.msra.mxu0 0
        %780 = vmatpush.bf16.xpose.msra.mxu0 0
        %781 = vmatpush.bf16.xpose.msra.mxu0 0
        %782 = vmatpush.bf16.xpose.msra.mxu0 0
        %783 = vmatpush.bf16.xpose.msra.mxu0 0
        %784 = vmatpush.bf16.xpose.msra.mxu0 0
        %785 = vmatpush.bf16.xpose.msra.mxu0 %v776
        %786 = vmatmul.bf16.gmra.mxu0 %v775
        %v787 = vpop.f32.mrf.mxu0
        %v788 = vadd.f32 %v723, %v787
        %v789 = vpop.f32.mrf.mxu0
        %790 = vdwg.mxu0
        %v791 = vsel %vm740, %v788, -inf
        %792 = vmax.xlane.f32.xlu0 %v791
        %v793 = vpop.xlane.xlu0 %792
        %v794 = vsub.f32 %v788, %v793
        %v795 = vmul.f32 %v794, 1.442695
        %v796 = vpow.pop %v795
        %v797 = vsel %vm740, %v796, 0.0
        %798 = vadd.xlane.f32.xlu0 %v797
        %v799 = vpop.xlane.xlu0 %798
        %v800 = vrcp.pop %v799
        %v801 = vpack.c.bf16 %v796, %v796
        %v803 = vsel %vm740, %v801, 0
        %v806 = vsel %vm755, %v777, 0
        %808 = vmatpush.bf16.msra.mxu0 0
        %809 = vmatpush.bf16.msra.mxu0 0
        %810 = vmatpush.bf16.msra.mxu0 0
        %811 = vmatpush.bf16.msra.mxu0 0
        %812 = vmatpush.bf16.msra.mxu0 0
        %813 = vmatpush.bf16.msra.mxu0 0
        %814 = vmatpush.bf16.msra.mxu0 0
        %815 = vmatpush.bf16.msra.mxu0 %v806
        %816 = vmatmul.bf16.gmra.mxu0 %v803
        %v817 = vpop.f32.mrf.mxu0
        %v818 = vadd.f32 0.0, %v817
        %v819 = vpop.f32.mrf.mxu0
        %820 = vdwg.mxu0
        %v821 = vmul.f32 %v818, %v800
        %v822 = vpack.c.bf16 %v821, %v821
        %823 = vst [vmem:[#allocation5 + $0x4] sm:$0xf] %v822
        %v824 = vld [vmem:[#allocation2 + $0x8] sm:$0xf]
        %v825 = vld [vmem:[#allocation3 + $0x8] sm:$0xf]
        %v826 = vld [vmem:[#allocation4 + $0x8] sm:$0xf]
        %827 = vmatpush.bf16.xpose.msra.mxu0 0
        %828 = vmatpush.bf16.xpose.msra.mxu0 0
        %829 = vmatpush.bf16.xpose.msra.mxu0 0
        %830 = vmatpush.bf16.xpose.msra.mxu0 0
        %831 = vmatpush.bf16.xpose.msra.mxu0 0
        %832 = vmatpush.bf16.xpose.msra.mxu0 0
        %833 = vmatpush.bf16.xpose.msra.mxu0 0
        %834 = vmatpush.bf16.xpose.msra.mxu0 %v825
        %835 = vmatmul.bf16.gmra.mxu0 %v824
        %v836 = vpop.f32.mrf.mxu0
        %v837 = vadd.f32 %v723, %v836
        %v838 = vpop.f32.mrf.mxu0
        %839 = vdwg.mxu0
        %v840 = vsel %vm740, %v837, -inf
        %841 = vmax.xlane.f32.xlu0 %v840
        %v842 = vpop.xlane.xlu0 %841
        %v843 = vsub.f32 %v837, %v842
        %v844 = vmul.f32 %v843, 1.442695
        %v845 = vpow.pop %v844
        %v846 = vsel %vm740, %v845, 0.0
        %847 = vadd.xlane.f32.xlu0 %v846
        %v848 = vpop.xlane.xlu0 %847
        %v849 = vrcp.pop %v848
        %v850 = vpack.c.bf16 %v845, %v845
        %v852 = vsel %vm740, %v850, 0
        %v855 = vsel %vm755, %v826, 0
        %857 = vmatpush.bf16.msra.mxu0 0
        %858 = vmatpush.bf16.msra.mxu0 0
        %859 = vmatpush.bf16.msra.mxu0 0
        %860 = vmatpush.bf16.msra.mxu0 0
        %861 = vmatpush.bf16.msra.mxu0 0
        %862 = vmatpush.bf16.msra.mxu0 0
        %863 = vmatpush.bf16.msra.mxu0 0
        %864 = vmatpush.bf16.msra.mxu0 %v855
        %865 = vmatmul.bf16.gmra.mxu0 %v852
        %v866 = vpop.f32.mrf.mxu0
        %v867 = vadd.f32 0.0, %v866
        %v868 = vpop.f32.mrf.mxu0
        %869 = vdwg.mxu0
        %v870 = vmul.f32 %v867, %v849
        %v871 = vpack.c.bf16 %v870, %v870
        %872 = vst [vmem:[#allocation5 + $0x8] sm:$0xf] %v871
        %v873 = vld [vmem:[#allocation2 + $0xc] sm:$0xf]
        %v874 = vld [vmem:[#allocation3 + $0xc] sm:$0xf]
        %v875 = vld [vmem:[#allocation4 + $0xc] sm:$0xf]
        %876 = vmatpush.bf16.xpose.msra.mxu0 0
        %877 = vmatpush.bf16.xpose.msra.mxu0 0
        %878 = vmatpush.bf16.xpose.msra.mxu0 0
        %879 = vmatpush.bf16.xpose.msra.mxu0 0
        %880 = vmatpush.bf16.xpose.msra.mxu0 0
        %881 = vmatpush.bf16.xpose.msra.mxu0 0
        %882 = vmatpush.bf16.xpose.msra.mxu0 0
        %883 = vmatpush.bf16.xpose.msra.mxu0 %v874
        %884 = vmatmul.bf16.gmra.mxu0 %v873
        %v885 = vpop.f32.mrf.mxu0
        %v886 = vadd.f32 %v723, %v885
        %v887 = vpop.f32.mrf.mxu0
        %888 = vdwg.mxu0
        %v889 = vsel %vm740, %v886, -inf
        %890 = vmax.xlane.f32.xlu0 %v889
        %v891 = vpop.xlane.xlu0 %890
        %v892 = vsub.f32 %v886, %v891
        %v893 = vmul.f32 %v892, 1.442695
        %v894 = vpow.pop %v893
        %v895 = vsel %vm740, %v894, 0.0
        %896 = vadd.xlane.f32.xlu0 %v895
        %v897 = vpop.xlane.xlu0 %896
        %v898 = vrcp.pop %v897
        %v899 = vpack.c.bf16 %v894, %v894
        %v901 = vsel %vm740, %v899, 0
        %v904 = vsel %vm755, %v875, 0
        %906 = vmatpush.bf16.msra.mxu0 0
        %907 = vmatpush.bf16.msra.mxu0 0
        %908 = vmatpush.bf16.msra.mxu0 0
        %909 = vmatpush.bf16.msra.mxu0 0
        %910 = vmatpush.bf16.msra.mxu0 0
        %911 = vmatpush.bf16.msra.mxu0 0
        %912 = vmatpush.bf16.msra.mxu0 0
        %913 = vmatpush.bf16.msra.mxu0 %v904
        %914 = vmatmul.bf16.gmra.mxu0 %v901
        %v915 = vpop.f32.mrf.mxu0
        %v916 = vadd.f32 0.0, %v915
        %v917 = vpop.f32.mrf.mxu0
        %918 = vdwg.mxu0
        %v919 = vmul.f32 %v916, %v898
        %v920 = vpack.c.bf16 %v919, %v919
        %921 = vst [vmem:[#allocation5 + $0xc] sm:$0xf] %v920
        %v922 = vld [vmem:[#allocation5] sm:$0xff]
        %v923 = vld [vmem:[#allocation5 + $0x8] sm:$0xff]
        %v924 = vld [vmem:[%s7] sm:$0xf]
        %v925 = vld [vmem:[%s7 + $0x4] sm:$0xf]
        %v926 = vld [vmem:[%s7 + $0x8] sm:$0xf]
        %v927 = vld [vmem:[%s7 + $0xc] sm:$0xf]
        %v928 = vld [vmem:[%s7 + $0x10] sm:$0xf]
        %v929 = vld [vmem:[%s7 + $0x14] sm:$0xf]
        %v930 = vld [vmem:[%s7 + $0x18] sm:$0xf]
        %v931 = vld [vmem:[%s7 + $0x1c] sm:$0xf]
        %v932 = vld [vmem:[%s7 + $0x20] sm:$0xf]
        %v933 = vld [vmem:[%s7 + $0x24] sm:$0xf]
        %v934 = vld [vmem:[%s7 + $0x28] sm:$0xf]
        %v935 = vld [vmem:[%s7 + $0x2c] sm:$0xf]
        %v936 = vld [vmem:[%s7 + $0x30] sm:$0xf]
        %v937 = vld [vmem:[%s7 + $0x34] sm:$0xf]
        %v938 = vld [vmem:[%s7 + $0x38] sm:$0xf]
        %v939 = vld [vmem:[%s7 + $0x3c] sm:$0xf]
        %v940 = vld [vmem:[%s7 + $0x40] sm:$0xf]
        %v941 = vld [vmem:[%s7 + $0x44] sm:$0xf]
        %v942 = vld [vmem:[%s7 + $0x48] sm:$0xf]
        %v943 = vld [vmem:[%s7 + $0x4c] sm:$0xf]
        %v944 = vld [vmem:[%s7 + $0x50] sm:$0xf]
        %v945 = vld [vmem:[%s7 + $0x54] sm:$0xf]
        %v946 = vld [vmem:[%s7 + $0x58] sm:$0xf]
        %v947 = vld [vmem:[%s7 + $0x5c] sm:$0xf]
        %v948 = vld [vmem:[%s7 + $0x60] sm:$0xf]
        %v949 = vld [vmem:[%s7 + $0x64] sm:$0xf]
        %v950 = vld [vmem:[%s7 + $0x68] sm:$0xf]
        %v951 = vld [vmem:[%s7 + $0x6c] sm:$0xf]
        %v952 = vld [vmem:[%s7 + $0x70] sm:$0xf]
        %v953 = vld [vmem:[%s7 + $0x74] sm:$0xf]
        %v954 = vld [vmem:[%s7 + $0x78] sm:$0xf]
        %v955 = vld [vmem:[%s7 + $0x7c] sm:$0xf]
        %v956 = vld [vmem:[%s7 + $0x80] sm:$0xf]
        %v957 = vld [vmem:[%s7 + $0x84] sm:$0xf]
        %v958 = vld [vmem:[%s7 + $0x88] sm:$0xf]
        %v959 = vld [vmem:[%s7 + $0x8c] sm:$0xf]
        %v960 = vld [vmem:[%s7 + $0x90] sm:$0xf]
        %v961 = vld [vmem:[%s7 + $0x94] sm:$0xf]
        %v962 = vld [vmem:[%s7 + $0x98] sm:$0xf]
        %v963 = vld [vmem:[%s7 + $0x9c] sm:$0xf]
        %v964 = vld [vmem:[%s7 + $0xa0] sm:$0xf]
        %v965 = vld [vmem:[%s7 + $0xa4] sm:$0xf]
        %v966 = vld [vmem:[%s7 + $0xa8] sm:$0xf]
        %v967 = vld [vmem:[%s7 + $0xac] sm:$0xf]
        %v968 = vld [vmem:[%s7 + $0xb0] sm:$0xf]
        %v969 = vld [vmem:[%s7 + $0xb4] sm:$0xf]
        %v970 = vld [vmem:[%s7 + $0xb8] sm:$0xf]
        %v971 = vld [vmem:[%s7 + $0xbc] sm:$0xf]
        %v972 = vld [vmem:[%s7 + $0xc0] sm:$0xf]
        %v973 = vld [vmem:[%s7 + $0xc4] sm:$0xf]
        %v974 = vld [vmem:[%s7 + $0xc8] sm:$0xf]
        %v975 = vld [vmem:[%s7 + $0xcc] sm:$0xf]
        %v976 = vld [vmem:[%s7 + $0xd0] sm:$0xf]
        %v977 = vld [vmem:[%s7 + $0xd4] sm:$0xf]
        %v978 = vld [vmem:[%s7 + $0xd8] sm:$0xf]
        %v979 = vld [vmem:[%s7 + $0xdc] sm:$0xf]
        %v980 = vld [vmem:[%s7 + $0xe0] sm:$0xf]
        %v981 = vld [vmem:[%s7 + $0xe4] sm:$0xf]
        %v982 = vld [vmem:[%s7 + $0xe8] sm:$0xf]
        %v983 = vld [vmem:[%s7 + $0xec] sm:$0xf]
        %v984 = vld [vmem:[%s7 + $0xf0] sm:$0xf]
        %v985 = vld [vmem:[%s7 + $0xf4] sm:$0xf]
        %v986 = vld [vmem:[%s7 + $0xf8] sm:$0xf]
        %v987 = vld [vmem:[%s7 + $0xfc] sm:$0xf]
        %v990 = vunpack.c.l.b16 %v922
        %v991 = vunpack.c.h.b16 %v922
        %v992 = vunpack.c.l.b16 %v923
        %v993 = vunpack.c.h.b16 %v923
        %v994 = vpack.c.b16 %v990, %v990
        %v995 = vpack.c.b16 %v991, %v991
        %v996 = vpack.c.b16 %v992, %v992
        %v997 = vpack.c.b16 %v993, %v993
        %v1066 = vunpack.c.l.b16 %v924
        %v1067 = vunpack.c.l.b16 %v925
        %v1068 = vunpack.c.l.b16 %v926
        %v1069 = vunpack.c.l.b16 %v927
        %v1070 = vunpack.c.l.b16 %v928
        %v1071 = vunpack.c.l.b16 %v929
        %v1072 = vunpack.c.l.b16 %v930
        %v1073 = vunpack.c.l.b16 %v931
        %v1074 = vunpack.c.l.b16 %v932
        %v1075 = vunpack.c.l.b16 %v933
        %v1076 = vunpack.c.l.b16 %v934
        %v1077 = vunpack.c.l.b16 %v935
        %v1078 = vunpack.c.l.b16 %v936
        %v1079 = vunpack.c.l.b16 %v937
        %v1080 = vunpack.c.l.b16 %v938
        %v1081 = vunpack.c.l.b16 %v939
        %v1082 = vunpack.c.l.b16 %v940
        %v1083 = vunpack.c.l.b16 %v941
        %v1084 = vunpack.c.l.b16 %v942
        %v1085 = vunpack.c.l.b16 %v943
        %v1086 = vunpack.c.l.b16 %v944
        %v1087 = vunpack.c.l.b16 %v945
        %v1088 = vunpack.c.l.b16 %v946
        %v1089 = vunpack.c.l.b16 %v947
        %v1090 = vunpack.c.l.b16 %v948
        %v1091 = vunpack.c.l.b16 %v949
        %v1092 = vunpack.c.l.b16 %v950
        %v1093 = vunpack.c.l.b16 %v951
        %v1094 = vunpack.c.l.b16 %v952
        %v1095 = vunpack.c.l.b16 %v953
        %v1096 = vunpack.c.l.b16 %v954
        %v1097 = vunpack.c.l.b16 %v955
        %v1098 = vunpack.c.l.b16 %v956
        %v1099 = vunpack.c.l.b16 %v957
        %v1100 = vunpack.c.l.b16 %v958
        %v1101 = vunpack.c.l.b16 %v959
        %v1102 = vunpack.c.l.b16 %v960
        %v1103 = vunpack.c.l.b16 %v961
        %v1104 = vunpack.c.l.b16 %v962
        %v1105 = vunpack.c.l.b16 %v963
        %v1106 = vunpack.c.l.b16 %v964
        %v1107 = vunpack.c.l.b16 %v965
        %v1108 = vunpack.c.l.b16 %v966
        %v1109 = vunpack.c.l.b16 %v967
        %v1110 = vunpack.c.l.b16 %v968
        %v1111 = vunpack.c.l.b16 %v969
        %v1112 = vunpack.c.l.b16 %v970
        %v1113 = vunpack.c.l.b16 %v971
        %v1114 = vunpack.c.l.b16 %v972
        %v1115 = vunpack.c.l.b16 %v973
        %v1116 = vunpack.c.l.b16 %v974
        %v1117 = vunpack.c.l.b16 %v975
        %v1118 = vunpack.c.l.b16 %v976
        %v1119 = vunpack.c.l.b16 %v977
        %v1120 = vunpack.c.l.b16 %v978
        %v1121 = vunpack.c.l.b16 %v979
        %v1122 = vunpack.c.l.b16 %v980
        %v1123 = vunpack.c.l.b16 %v981
        %v1124 = vunpack.c.l.b16 %v982
        %v1125 = vunpack.c.l.b16 %v983
        %v1126 = vunpack.c.l.b16 %v984
        %v1127 = vunpack.c.l.b16 %v985
        %v1128 = vunpack.c.l.b16 %v986
        %v1129 = vunpack.c.l.b16 %v987
        %v1130 = vpack.c.b16 %v1067, %v1066
        %v1131 = vpack.c.b16 %v1069, %v1068
        %v1132 = vpack.c.b16 %v1071, %v1070
        %v1133 = vpack.c.b16 %v1073, %v1072
        %v1134 = vpack.c.b16 %v1075, %v1074
        %v1135 = vpack.c.b16 %v1077, %v1076
        %v1136 = vpack.c.b16 %v1079, %v1078
        %v1137 = vpack.c.b16 %v1081, %v1080
        %v1138 = vpack.c.b16 %v1083, %v1082
        %v1139 = vpack.c.b16 %v1085, %v1084
        %v1140 = vpack.c.b16 %v1087, %v1086
        %v1141 = vpack.c.b16 %v1089, %v1088
        %v1142 = vpack.c.b16 %v1091, %v1090
        %v1143 = vpack.c.b16 %v1093, %v1092
        %v1144 = vpack.c.b16 %v1095, %v1094
        %v1145 = vpack.c.b16 %v1097, %v1096
        %v1146 = vpack.c.b16 %v1099, %v1098
        %v1147 = vpack.c.b16 %v1101, %v1100
        %v1148 = vpack.c.b16 %v1103, %v1102
        %v1149 = vpack.c.b16 %v1105, %v1104
        %v1150 = vpack.c.b16 %v1107, %v1106
        %v1151 = vpack.c.b16 %v1109, %v1108
        %v1152 = vpack.c.b16 %v1111, %v1110
        %v1153 = vpack.c.b16 %v1113, %v1112
        %v1154 = vpack.c.b16 %v1115, %v1114
        %v1155 = vpack.c.b16 %v1117, %v1116
        %v1156 = vpack.c.b16 %v1119, %v1118
        %v1157 = vpack.c.b16 %v1121, %v1120
        %v1158 = vpack.c.b16 %v1123, %v1122
        %v1159 = vpack.c.b16 %v1125, %v1124
        %v1160 = vpack.c.b16 %v1127, %v1126
        %v1161 = vpack.c.b16 %v1129, %v1128
        %1194 = vmatpush.bf16.msra.mxu0 %v1137
        %1195 = vmatpush.bf16.msra.mxu0 %v1136
        %1196 = vmatpush.bf16.msra.mxu0 %v1135
        %1197 = vmatpush.bf16.msra.mxu0 %v1134
        %1198 = vmatpush.bf16.msra.mxu0 %v1133
        %1199 = vmatpush.bf16.msra.mxu0 %v1132
        %1200 = vmatpush.bf16.msra.mxu0 %v1131
        %1201 = vmatpush.bf16.msra.mxu0 %v1130
        %1202 = vmatmul.bf16.gmra.mxu0 %v994
        %v1203 = vpop.f32.mrf.mxu0
        %v1204 = vadd.f32 0.0, %v1203
        %v1205 = vpop.f32.mrf.mxu0
        %1206 = vdwg.mxu0
        %1207 = vmatpush.bf16.msra.mxu0 %v1145
        %1208 = vmatpush.bf16.msra.mxu0 %v1144
        %1209 = vmatpush.bf16.msra.mxu0 %v1143
        %1210 = vmatpush.bf16.msra.mxu0 %v1142
        %1211 = vmatpush.bf16.msra.mxu0 %v1141
        %1212 = vmatpush.bf16.msra.mxu0 %v1140
        %1213 = vmatpush.bf16.msra.mxu0 %v1139
        %1214 = vmatpush.bf16.msra.mxu0 %v1138
        %1215 = vmatmul.bf16.gmra.mxu0 %v995
        %v1216 = vpop.f32.mrf.mxu0
        %v1217 = vadd.f32 %v1204, %v1216
        %v1218 = vpop.f32.mrf.mxu0
        %1219 = vdwg.mxu0
        %1220 = vmatpush.bf16.msra.mxu0 %v1153
        %1221 = vmatpush.bf16.msra.mxu0 %v1152
        %1222 = vmatpush.bf16.msra.mxu0 %v1151
        %1223 = vmatpush.bf16.msra.mxu0 %v1150
        %1224 = vmatpush.bf16.msra.mxu0 %v1149
        %1225 = vmatpush.bf16.msra.mxu0 %v1148
        %1226 = vmatpush.bf16.msra.mxu0 %v1147
        %1227 = vmatpush.bf16.msra.mxu0 %v1146
        %1228 = vmatmul.bf16.gmra.mxu0 %v996
        %v1229 = vpop.f32.mrf.mxu0
        %v1230 = vadd.f32 %v1217, %v1229
        %v1231 = vpop.f32.mrf.mxu0
        %1232 = vdwg.mxu0
        %1233 = vmatpush.bf16.msra.mxu0 %v1161
        %1234 = vmatpush.bf16.msra.mxu0 %v1160
        %1235 = vmatpush.bf16.msra.mxu0 %v1159
        %1236 = vmatpush.bf16.msra.mxu0 %v1158
        %1237 = vmatpush.bf16.msra.mxu0 %v1157
        %1238 = vmatpush.bf16.msra.mxu0 %v1156
        %1239 = vmatpush.bf16.msra.mxu0 %v1155
        %1240 = vmatpush.bf16.msra.mxu0 %v1154
        %1241 = vmatmul.bf16.gmra.mxu0 %v997
        %v1242 = vpop.f32.mrf.mxu0
        %v1243 = vadd.f32 %v1230, %v1242
        %v1244 = vpop.f32.mrf.mxu0
        %1245 = vdwg.mxu0
        %1246 = vst.msk [vmem:[%s365] sm:$0xff] %vm659, %v1243
        %s1247 = sand.u32 %s236, 1
        %s1248 = scalar_lea.sflag [#allocation7], %s1247
        %s1249 = sand.u32 %s236, 1
        %s1250 = smul.addr %s1249, 8
        %s1251 = scalar_lea.vmem [#allocation6], %s1250
        // Predicated region
        $region57: #{tpu_custom_call.1} parent=51 // pred_check
          %p1252 = pneg %p246
        $region58: #{tpu_custom_call.1} parent=51 // pred_check_branch
          %1254 = sbr.rel (%p1252) target = $region60
        $region59: #{tpu_custom_call.1} parent=51 // pred_region
          %1256 = vsyncadd %s1248, 0
          %s1257 = sadd.s32 %s27, %s26
          %s1258 = smul.addr %s1257, 8
          %s1259 = scalar_lea.hbm %s8, %s1258
          %s1261 = sshll.u32 %s1251, 4
          %s1262 = int_to_ptr.vmem [resolvable:$true] %s1261
          %s1263 = sshll.u32 %s1259, 4
          %s1264 = int_to_ptr.hbm [resolvable:$true] %s1263
          %1266 = dma.vmem_to_hbm [thread:$0]  %s1262, 128, %s1264, %s1248
        $region60: #{tpu_custom_call.1} parent=51 // pred_fallthru
          _
      $region52: #{tpu_custom_call.1} parent=5 // pred_fallthru
        _
      %p1267 = scmp.le.s32.totalorder 2, %s17
      // Predicated region
      $region61: #{tpu_custom_call.1} parent=5 // pred_check
        %p1268 = pneg %p1267
      $region62: #{tpu_custom_call.1} parent=5 // pred_check_branch
        %1270 = sbr.rel (%p1268) target = $region64
      $region63: #{tpu_custom_call.1} parent=5 // pred_region
        %s1271 = ssub.s32 %s17, 2
        // Predicated region
        $region65: #{tpu_custom_call.1} parent=63 // pred_check
          %p1272 = pneg %p252
        $region66: #{tpu_custom_call.1} parent=63 // pred_check_branch
          %1274 = sbr.rel (%p1272) target = $region68
        $region67: #{tpu_custom_call.1} parent=63 // pred_region
          %s1275 = sand.u32 %s237, 1
          %s1276 = scalar_lea.sflag [#allocation7], %s1275
          %s1277 = sand.u32 %s237, 1
          %s1278 = smul.addr %s1277, 8
          %s1279 = scalar_lea.vmem [#allocation6], %s1278
          %1281 = dma.done %s1276, 128
        $region68: #{tpu_custom_call.1} parent=63 // pred_fallthru
          _
      $region64: #{tpu_custom_call.1} parent=5 // pred_fallthru
        _
    $region6: #{tpu_custom_call.1} parent=1 // loop_footer
      %s21 = sadd.s32 1, %s17
    $region7: #{tpu_custom_call.1} parent=1 // loop_footer_branch
      %16 = sbr.rel target = $region3
    $region8: #{tpu_custom_call.1} parent=1 // loop_exit
      _
    %1282 = vsyncpa [#allocation7], 1
    %s1283 = scalar_lea.sflag [#allocation7], 1
    %1284 = vsyncpa %s1283, 1

</llo_original>
